<compile_context>
chip_gen: v7x
topology: tpu7x:2x2x1
jax: 0.10.0
libtpu: 0.0.40
codegen_flags: <defaults>
</compile_context>

<pallas_src>
import functools

import jax
import jax.numpy as jnp
import numpy as np
from jax import lax
from jax.experimental import pallas as pl
from jax.experimental.pallas import tpu as pltpu


# ----------------------------------------------------------------------------
# pltpu.roll direction probe (cached).  We need  out[..., i] = x[..., i + off];
# the probe determines which shift sign pltpu.roll uses and degrades to
# jnp.roll if the probe cannot run.
# ----------------------------------------------------------------------------
_ROLL_MODE = None


def _probe_roll_mode():
    global _ROLL_MODE
    if _ROLL_MODE is not None:
        return _ROLL_MODE
    try:
        def k(x_ref, o_ref):
            o_ref[...] = pltpu.roll(x_ref[...], 1, 1)

        x = jnp.tile(jnp.arange(256, dtype=jnp.float32)[None, :], (8, 1))
        out = pl.pallas_call(
            k, out_shape=jax.ShapeDtypeStruct((8, 256), jnp.float32))(x)
        v = float(out[0, 0])
        if v == 255.0:      # pltpu.roll(x, s)[i] == x[i - s]  (jnp.roll convention)
            _ROLL_MODE = "pltpu"
        elif v == 1.0:      # pltpu.roll(x, s)[i] == x[i + s]
            _ROLL_MODE = "pltpu_neg"
        else:
            _ROLL_MODE = "jnp"
    except Exception:
        _ROLL_MODE = "jnp"
    return _ROLL_MODE


def _vmem_limit_bytes():
    # Generation-aware VMEM limit (64 MiB on v7x, 128 MiB on v5e/v6e).
    try:
        return int(0.75 * pltpu.get_tpu_info().vmem_capacity_bytes)
    except Exception:
        return 48 * 1024 * 1024


# ----------------------------------------------------------------------------
# Fused whole-network Pallas kernel (lane-dense (C, HW) dataflow)
# ----------------------------------------------------------------------------
def _build_resnet_kernel(H, W, K, n_blocks, nb, compute_dtype, roll_mode):
    HW = H * W
    ph = (K - 1) // 2
    offs = [(kh - ph) * W + (kw - ph) for kh in range(K) for kw in range(K)]
    n_wref = 4 + 6 * n_blocks          # stem(w,b) + 6 per block + head(w,b)
    cd = compute_dtype

    def shift_lanes(x, off):
        # out[..., i] = x[..., (i + off) % HW]; out-of-bounds taps masked later.
        if off % HW == 0:
            return x
        if roll_mode == "pltpu":
            return pltpu.roll(x, (-off) % HW, 1)
        if roll_mode == "pltpu_neg":
            return pltpu.roll(x, off % HW, 1)
        return jnp.roll(x, -off, axis=1)

    def kernel(x_ref, mask_ref, *rest):
        w_refs = rest[:n_wref]
        o_ref = rest[n_wref]

        def conv1x1(x, w_ref, b_ref, relu):
            # (Cout, Cin) @ (Cin, HW) on the MXU; f32 accumulation + epilogue.
            y = jnp.dot(w_ref[...], x.astype(cd),
                        preferred_element_type=jnp.float32) + b_ref[...]
            return jnp.maximum(y, 0.0) if relu else y

        def convkxk(x, w_ref, b_ref, relu):
            # KxK 'same' conv as K*K shifted matmuls: roll along the flattened
            # HW lane axis (XLU) + 0/1 border mask (VPU), then one
            # (Cout, Cin) @ (Cin, HW) MXU matmul per tap, accumulated in f32.
            acc = None
            for j, off in enumerate(offs):
                s = shift_lanes(x, off)
                if off != 0:                      # center tap needs no mask
                    s = s * mask_ref[j]           # (1, HW) broadcasts over Cin
                d = jnp.dot(w_ref[j], s.astype(cd),
                            preferred_element_type=jnp.float32)
                acc = d if acc is None else acc + d
            y = acc + b_ref[...]
            return jnp.maximum(y, 0.0) if relu else y

        # TODO(synk): for much deeper configs (n_blocks >> 8), stack per-block
        # weights and switch this unrolled loop to lax.fori_loop to bound vreg
        # live ranges.
        for b in range(nb):
            x = x_ref[b].astype(jnp.float32)                    # (cin, HW)
            h = convkxk(x, w_refs[0], w_refs[1], relu=True)     # (C, HW)
            for i in range(n_blocks):
                base = 2 + 6 * i
                w1, b1, w2, b2, w3, b3 = w_refs[base:base + 6]
                h1 = conv1x1(h, w1, b1, relu=True)              # (C//2, HW)
                h2 = convkxk(h1, w2, b2, relu=True)             # (C//2, HW)
                h = h + conv1x1(h2, w3, b3, relu=False)         # residual
            h = jnp.maximum(h, 0.0)                             # trailing ReLU
            o_ref[b] = convkxk(h, w_refs[n_wref - 2], w_refs[n_wref - 1],
                               relu=False)                      # (cout, HW)

    return kernel


# ----------------------------------------------------------------------------
# Parameter preparation (weight-norm folded + reshaped ONCE, outside the jit)
# ----------------------------------------------------------------------------
def prepare_params(params, compute_dtype=jnp.bfloat16):
    """Fold weight norm (w = g*v/||v||) and reshape every conv weight into the
    lane-dense layouts the kernel consumes:
        1x1 convs -> (Cout, Cin)
        KxK convs -> (K*K, Cout, Cin)   (one (Cout, Cin) matrix per tap)
    Biases -> (Cout, 1) float32.  Matmul inputs are cast to `compute_dtype`
    (bf16 recommended on v6e/v7x); accumulation & elementwise stay f32."""
    def fold(layer):
        v, g, b = layer
        norm = jnp.sqrt(jnp.sum(v * v, axis=(1, 2, 3), keepdims=True))
        w = (g.reshape(-1, 1, 1, 1) / norm) * v          # (Cout, Cin, KH, KW)
        co, ci, kh, kw = w.shape
        if kh == 1 and kw == 1:
            w2 = w.reshape(co, ci)
        else:
            w2 = jnp.transpose(w, (2, 3, 0, 1)).reshape(kh * kw, co, ci)
        return (w2.astype(compute_dtype), b.reshape(co, 1).astype(jnp.float32))

    flat = []
    flat += list(fold(params["stem"]))
    for bp in params["blocks"]:
        flat += list(fold(bp["c1"])) + list(fold(bp["c2"])) + list(fold(bp["c3"]))
    flat += list(fold(params["head"]))

    v_stem = params["stem"][0]
    meta = dict(
        in_channels=int(v_stem.shape[1]),
        out_channels=int(params["head"][0].shape[0]),
        filters=int(v_stem.shape[0]),
        kernel_size=int(v_stem.shape[2]),
        n_blocks=len(params["blocks"]),
    )
    return tuple(flat), meta


def _border_masks(H, W, K):
    """0/1 validity masks for each of the K*K taps of a 'same' conv,
    flattened to the (tap, 1, H*W) layout used inside the kernel."""
    ph = (K - 1) // 2
    HW = H * W
    masks = np.zeros((K * K, 1, HW), np.float32)
    ys = np.arange(H)[:, None]
    xs = np.arange(W)[None, :]
    j = 0
    for kh in range(K):
        for kw in range(K):
            dy, dx = kh - ph, kw - ph
            valid = ((ys + dy >= 0) & (ys + dy < H) &
                     (xs + dx >= 0) & (xs + dx < W))
            masks[j, 0, :] = valid.reshape(HW).astype(np.float32)
            j += 1
    return masks


# ----------------------------------------------------------------------------
# Forward wrapper (single pallas_call for the whole network)
# ----------------------------------------------------------------------------
def resnet_apply(meta, flat_weights, x_nchw, images_per_step=1):
    N, cin, H, W = x_nchw.shape
    cout = meta["out_channels"]
    K = meta["kernel_size"]
    n_blocks = meta["n_blocks"]
    nb = images_per_step
    assert cin == meta["in_channels"]
    if N % nb != 0:
        raise ValueError("images_per_step must divide the batch size")

    HW = H * W
    cd = flat_weights[0].dtype               # matmul-input dtype (f32 / bf16)
    roll_mode = _probe_roll_mode()

    # Free layout plumbing: NCHW -> (N, cin, HW) is a pure reshape (no copy).
    x = x_nchw.reshape(N, cin, HW).astype(jnp.float32)
    masks = jnp.asarray(_border_masks(H, W, K))            # (K*K, 1, HW) f32

    kernel = _build_resnet_kernel(H, W, K, n_blocks, nb, cd, roll_mode)

    in_specs = [
        pl.BlockSpec((nb, cin, HW), lambda n: (n, 0, 0)),   # input images
        pl.BlockSpec(masks.shape, lambda n: (0, 0, 0)),     # border masks
    ]
    # Weights/biases: tiny whole-tensor blocks with constant block index, so
    # they stay VMEM-resident across the grid.
    in_specs += [pl.BlockSpec(w.shape, lambda n, nd=w.ndim: (0,) * nd)
                 for w in flat_weights]

    out = pl.pallas_call(
        kernel,
        out_shape=jax.ShapeDtypeStruct((N, cout, HW), jnp.float32),
        grid=(N // nb,),
        in_specs=in_specs,
        out_specs=pl.BlockSpec((nb, cout, HW), lambda n: (n, 0, 0)),
        compiler_params=pltpu.CompilerParams(
            dimension_semantics=("parallel",),        # megacore batch split
            vmem_limit_bytes=_vmem_limit_bytes(),     # generation-aware
        ),
    )(x, masks, *flat_weights)

    # Free reshape back to NCHW.
    return out.reshape(N, cout, H, W)


def resnet_forward(params, x_nchw, compute_dtype=jnp.float32, images_per_step=1):
    flat, meta = prepare_params(params, compute_dtype)
    return resnet_apply(meta, flat, x_nchw, images_per_step=images_per_step)


# ----------------------------------------------------------------------------
# Parameter init (deterministic, mirrors the PyTorch module's shapes)
# ----------------------------------------------------------------------------
def _init_conv(key, cin, cout, k):
    kv, kg, kb = jax.random.split(key, 3)
    v = 0.1 * jax.random.normal(kv, (cout, cin, k, k), jnp.float32)
    g = 1.0 + 0.1 * jax.random.normal(kg, (cout,), jnp.float32)
    b = 0.1 * jax.random.normal(kb, (cout,), jnp.float32)
    return (v, g, b)


def init_resnet_params(key, in_channels, out_channels, n_blocks, filters, kernel_size):
    keys = jax.random.split(key, 2 + 3 * n_blocks)
    params = {
        "stem": _init_conv(keys[0], in_channels, filters, kernel_size),
        "blocks": [],
        "head": _init_conv(keys[1], filters, out_channels, kernel_size),
    }
    for i in range(n_blocks):
        k0, k1, k2 = keys[2 + 3 * i], keys[3 + 3 * i], keys[4 + 3 * i]
        params["blocks"].append({
            "c1": _init_conv(k0, filters, filters // 2, 1),
            "c2": _init_conv(k1, filters // 2, filters // 2, kernel_size),
            "c3": _init_conv(k2, filters // 2, filters, 1),
        })
    return params


# ----------------------------------------------------------------------------
# Pure-JAX reference (matches the PyTorch Sequential semantics)
# ----------------------------------------------------------------------------
def _ref_conv(x_nhwc, v, g, b, relu):
    norm = jnp.sqrt(jnp.sum(v * v, axis=(1, 2, 3), keepdims=True))
    w = (g.reshape(-1, 1, 1, 1) / norm) * v
    w = jnp.transpose(w, (2, 3, 1, 0))  # HWIO
    y = lax.conv_general_dilated(
        x_nhwc, w, window_strides=(1, 1), padding="SAME",
        dimension_numbers=("NHWC", "HWIO", "NHWC"))
    y = y + b.reshape(1, 1, 1, -1)
    return jnp.maximum(y, 0.0) if relu else y


def resnet_reference(params, x_nchw):
    x = jnp.transpose(x_nchw, (0, 2, 3, 1)).astype(jnp.float32)
    h = _ref_conv(x, *params["stem"], True)
    for bp in params["blocks"]:
        h1 = _ref_conv(h, *bp["c1"], True)
        h2 = _ref_conv(h1, *bp["c2"], True)
        h = h + _ref_conv(h2, *bp["c3"], False)
    h = jnp.maximum(h, 0.0)
    out = _ref_conv(h, *params["head"], False)
    return jnp.transpose(out, (0, 3, 1, 2))


if __name__ == "__main__":
    # ResNet(in_channels=4, out_channels=4, n_blocks=2, filters=32, kernel_size=3)
    in_channels, out_channels = 4, 4
    n_blocks, filters, kernel_size = 2, 32, 3
    N, H, W = 2, 16, 16

    key = jax.random.PRNGKey(0)
    kx, kp = jax.random.split(key)
    x = jax.random.normal(kx, (N, in_channels, H, W), jnp.float32)   # NCHW
    params = init_resnet_params(kp, in_channels, out_channels,
                                n_blocks, filters, kernel_size)

    ref = resnet_reference(params, x)
    _probe_roll_mode()      # eager probe, cached for all jitted traces below

    # f32 matmul-input path: matches the XLA reference to accumulation-order
    # level tolerance.
    flat32, meta = prepare_params(params, jnp.float32)
    fwd32 = jax.jit(functools.partial(resnet_apply, meta))
    out32 = jax.block_until_ready(fwd32(flat32, x))
    np.testing.assert_allclose(np.asarray(out32), np.asarray(ref),
                               rtol=2e-3, atol=2e-3)
    assert out32.shape == (N, out_channels, H, W)

    # bf16 matmul-input path (recommended on v6e/v7x): bf16 MXU inputs, f32
    # accumulation + f32 elementwise (v5e-safe).
    flat16, _ = prepare_params(params, jnp.bfloat16)
    fwd16 = jax.jit(functools.partial(resnet_apply, meta))
    out16 = jax.block_until_ready(fwd16(flat16, x))
    np.testing.assert_allclose(np.asarray(out16), np.asarray(ref),
                               rtol=5e-2, atol=5e-2)

    # Batched grid step (2 images / step): amortizes per-step overhead for
    # larger batches (default keeps >= 2 steps so megacore parts stay busy).
    fwd_b = jax.jit(functools.partial(resnet_apply, meta, images_per_step=2))
    out_b = jax.block_until_ready(fwd_b(flat32, x))
    np.testing.assert_allclose(np.asarray(out_b), np.asarray(ref),
                               rtol=2e-3, atol=2e-3)

    print("KERNEL_OK")
</pallas_src>

<mosaic_0001>
module attributes {stable_mosaic.version = 11 : i64} {
  func.func @k(%arg0: memref<8x256xf32, #tpu.memory_space<vmem>>, %arg1: memref<8x256xf32, #tpu.memory_space<vmem>>) attributes {dimension_semantics = [], scalar_prefetch = 0 : i64, scratch_operands = 0 : i64, tpu.core_type = #tpu.core_type<tc>} {
    %c0 = arith.constant 0 : index
    %c0_0 = arith.constant 0 : index
    %0 = vector.load %arg0[%c0, %c0_0] : memref<8x256xf32, #tpu.memory_space<vmem>>, vector<8x256xf32>
    %c1_i32 = arith.constant 1 : i32
    %1 = tpu.dynamic_rotate %0 by %c1_i32 dim 1 : vector<8x256xf32>, i32 -> vector<8x256xf32>
    %c0_1 = arith.constant 0 : index
    %c0_2 = arith.constant 0 : index
    %2 = vector.load %arg1[%c0_1, %c0_2] : memref<8x256xf32, #tpu.memory_space<vmem>>, vector<8x256xf32>
    tpu.vector_store %arg1[%c0_1, %c0_2], %1 {strides = array<i32>} : memref<8x256xf32, #tpu.memory_space<vmem>>, vector<8x256xf32>,
    return
  }
}

module attributes {stable_mosaic.version = 11 : i64} {
  func.func @kernel(%arg0: i32, %arg1: memref<1x4x256xf32, #tpu.memory_space<vmem>>, %arg2: memref<9x1x256xf32, #tpu.memory_space<vmem>>, %arg3: memref<9x32x4xf32, #tpu.memory_space<vmem>>, %arg4: memref<32x1xf32, #tpu.memory_space<vmem>>, %arg5: memref<16x32xf32, #tpu.memory_space<vmem>>, %arg6: memref<16x1xf32, #tpu.memory_space<vmem>>, %arg7: memref<9x16x16xf32, #tpu.memory_space<vmem>>, %arg8: memref<16x1xf32, #tpu.memory_space<vmem>>, %arg9: memref<32x16xf32, #tpu.memory_space<vmem>>, %arg10: memref<32x1xf32, #tpu.memory_space<vmem>>, %arg11: memref<16x32xf32, #tpu.memory_space<vmem>>, %arg12: memref<16x1xf32, #tpu.memory_space<vmem>>, %arg13: memref<9x16x16xf32, #tpu.memory_space<vmem>>, %arg14: memref<16x1xf32, #tpu.memory_space<vmem>>, %arg15: memref<32x16xf32, #tpu.memory_space<vmem>>, %arg16: memref<32x1xf32, #tpu.memory_space<vmem>>, %arg17: memref<9x4x32xf32, #tpu.memory_space<vmem>>, %arg18: memref<4x1xf32, #tpu.memory_space<vmem>>, %arg19: memref<1x4x256xf32, #tpu.memory_space<vmem>>) attributes {dimension_semantics = [#tpu.dimension_semantics<parallel>], iteration_bounds = array<i64: 2>, scalar_prefetch = 0 : i64, scratch_operands = 0 : i64, tpu.core_type = #tpu.core_type<tc>, window_params = [{transform_indices = @transform_0, window_bounds = array<i64: 1, 4, 256>}, {pipeline_mode = #tpu.pipeline_mode<synchronous>, transform_indices = @transform_1, window_bounds = array<i64: 9, 1, 256>}, {pipeline_mode = #tpu.pipeline_mode<synchronous>, transform_indices = @transform_2, window_bounds = array<i64: 9, 32, 4>}, {pipeline_mode = #tpu.pipeline_mode<synchronous>, transform_indices = @transform_3, window_bounds = array<i64: 32, 1>}, {pipeline_mode = #tpu.pipeline_mode<synchronous>, transform_indices = @transform_4, window_bounds = array<i64: 16, 32>}, {pipeline_mode = #tpu.pipeline_mode<synchronous>, transform_indices = @transform_5, window_bounds = array<i64: 16, 1>}, {pipeline_mode = #tpu.pipeline_mode<synchronous>, transform_indices = @transform_6, window_bounds = array<i64: 9, 16, 16>}, {pipeline_mode = #tpu.pipeline_mode<synchronous>, transform_indices = @transform_7, window_bounds = array<i64: 16, 1>}, {pipeline_mode = #tpu.pipeline_mode<synchronous>, transform_indices = @transform_8, window_bounds = array<i64: 32, 16>}, {pipeline_mode = #tpu.pipeline_mode<synchronous>, transform_indices = @transform_9, window_bounds = array<i64: 32, 1>}, {pipeline_mode = #tpu.pipeline_mode<synchronous>, transform_indices = @transform_10, window_bounds = array<i64: 16, 32>}, {pipeline_mode = #tpu.pipeline_mode<synchronous>, transform_indices = @transform_11, window_bounds = array<i64: 16, 1>}, {pipeline_mode = #tpu.pipeline_mode<synchronous>, transform_indices = @transform_12, window_bounds = array<i64: 9, 16, 16>}, {pipeline_mode = #tpu.pipeline_mode<synchronous>, transform_indices = @transform_13, window_bounds = array<i64: 16, 1>}, {pipeline_mode = #tpu.pipeline_mode<synchronous>, transform_indices = @transform_14, window_bounds = array<i64: 32, 16>}, {pipeline_mode = #tpu.pipeline_mode<synchronous>, transform_indices = @transform_15, window_bounds = array<i64: 32, 1>}, {pipeline_mode = #tpu.pipeline_mode<synchronous>, transform_indices = @transform_16, window_bounds = array<i64: 9, 4, 32>}, {pipeline_mode = #tpu.pipeline_mode<synchronous>, transform_indices = @transform_17, window_bounds = array<i64: 4, 1>}, {transform_indices = @transform_18, window_bounds = array<i64: 1, 4, 256>}]} {
    %c0 = arith.constant 0 : index
    %c0_0 = arith.constant 0 : index
    %c0_1 = arith.constant 0 : index
    %0 = vector.load %arg1[%c0, %c0_0, %c0_1] : memref<1x4x256xf32, #tpu.memory_space<vmem>>, vector<1x4x256xf32>
    %1 = vector.shape_cast %0 : vector<1x4x256xf32> to vector<4x256xf32>
    %2 = vector.extract_strided_slice %1 {offsets = [0, 239], sizes = [4, 17], strides = [1, 1]} : vector<4x256xf32> to vector<4x17xf32>
    %3 = vector.extract_strided_slice %1 {offsets = [0, 0], sizes = [4, 239], strides = [1, 1]} : vector<4x256xf32> to vector<4x239xf32>
    %4 = tpu.concatenate %2, %3 in 1 : vector<4x17xf32>, vector<4x239xf32> -> vector<4x256xf32>
    %c0_2 = arith.constant 0 : index
    %c0_3 = arith.constant 0 : index
    %c0_4 = arith.constant 0 : index
    %5 = vector.load %arg2[%c0_2, %c0_3, %c0_4] : memref<9x1x256xf32, #tpu.memory_space<vmem>>, vector<1x1x256xf32>
    %6 = vector.shape_cast %5 : vector<1x1x256xf32> to vector<1x256xf32>
    %7 = vector.broadcast %6 : vector<1x256xf32> to vector<4x256xf32>
    %8 = arith.mulf %4, %7 : vector<4x256xf32>
    %c0_5 = arith.constant 0 : index
    %c0_6 = arith.constant 0 : index
    %c0_7 = arith.constant 0 : index
    %9 = vector.load %arg3[%c0_5, %c0_6, %c0_7] : memref<9x32x4xf32, #tpu.memory_space<vmem>>, vector<1x32x4xf32>
    %10 = vector.shape_cast %9 : vector<1x32x4xf32> to vector<32x4xf32>
    %cst = arith.constant dense<0.000000e+00> : vector<32x256xf32>
    %11 = tpu.matmul %10, %8, %cst {dimension_numbers = #tpu.dot_dimension_numbers<[1], [0], [0], [1], [0, 0, 1, 1], [], []>} : vector<32x4xf32>, vector<4x256xf32>, vector<32x256xf32> -> vector<32x256xf32>
    %12 = vector.extract_strided_slice %1 {offsets = [0, 240], sizes = [4, 16], strides = [1, 1]} : vector<4x256xf32> to vector<4x16xf32>
    %13 = vector.extract_strided_slice %1 {offsets = [0, 0], sizes = [4, 240], strides = [1, 1]} : vector<4x256xf32> to vector<4x240xf32>
    %14 = tpu.concatenate %12, %13 in 1 : vector<4x16xf32>, vector<4x240xf32> -> vector<4x256xf32>
    %c1 = arith.constant 1 : index
    %c0_8 = arith.constant 0 : index
    %c0_9 = arith.constant 0 : index
    %15 = vector.load %arg2[%c1, %c0_8, %c0_9] : memref<9x1x256xf32, #tpu.memory_space<vmem>>, vector<1x1x256xf32>
    %16 = vector.shape_cast %15 : vector<1x1x256xf32> to vector<1x256xf32>
    %17 = vector.broadcast %16 : vector<1x256xf32> to vector<4x256xf32>
    %18 = arith.mulf %14, %17 : vector<4x256xf32>
    %c1_10 = arith.constant 1 : index
    %c0_11 = arith.constant 0 : index
    %c0_12 = arith.constant 0 : index
    %19 = vector.load %arg3[%c1_10, %c0_11, %c0_12] : memref<9x32x4xf32, #tpu.memory_space<vmem>>, vector<1x32x4xf32>
    %20 = vector.shape_cast %19 : vector<1x32x4xf32> to vector<32x4xf32>
    %cst_13 = arith.constant dense<0.000000e+00> : vector<32x256xf32>
    %21 = tpu.matmul %20, %18, %cst_13 {dimension_numbers = #tpu.dot_dimension_numbers<[1], [0], [0], [1], [0, 0, 1, 1], [], []>} : vector<32x4xf32>, vector<4x256xf32>, vector<32x256xf32> -> vector<32x256xf32>
    %22 = arith.addf %11, %21 : vector<32x256xf32>
    %23 = vector.extract_strided_slice %1 {offsets = [0, 241], sizes = [4, 15], strides = [1, 1]} : vector<4x256xf32> to vector<4x15xf32>
    %24 = vector.extract_strided_slice %1 {offsets = [0, 0], sizes = [4, 241], strides = [1, 1]} : vector<4x256xf32> to vector<4x241xf32>
    %25 = tpu.concatenate %23, %24 in 1 : vector<4x15xf32>, vector<4x241xf32> -> vector<4x256xf32>
    %c2 = arith.constant 2 : index
    %c0_14 = arith.constant 0 : index
    %c0_15 = arith.constant 0 : index
    %26 = vector.load %arg2[%c2, %c0_14, %c0_15] : memref<9x1x256xf32, #tpu.memory_space<vmem>>, vector<1x1x256xf32>
    %27 = vector.shape_cast %26 : vector<1x1x256xf32> to vector<1x256xf32>
    %28 = vector.broadcast %27 : vector<1x256xf32> to vector<4x256xf32>
    %29 = arith.mulf %25, %28 : vector<4x256xf32>
    %c2_16 = arith.constant 2 : index
    %c0_17 = arith.constant 0 : index
    %c0_18 = arith.constant 0 : index
    %30 = vector.load %arg3[%c2_16, %c0_17, %c0_18] : memref<9x32x4xf32, #tpu.memory_space<vmem>>, vector<1x32x4xf32>
    %31 = vector.shape_cast %30 : vector<1x32x4xf32> to vector<32x4xf32>
    %cst_19 = arith.constant dense<0.000000e+00> : vector<32x256xf32>
    %32 = tpu.matmul %31, %29, %cst_19 {dimension_numbers = #tpu.dot_dimension_numbers<[1], [0], [0], [1], [0, 0, 1, 1], [], []>} : vector<32x4xf32>, vector<4x256xf32>, vector<32x256xf32> -> vector<32x256xf32>
    %33 = arith.addf %22, %32 : vector<32x256xf32>
    %34 = vector.extract_strided_slice %1 {offsets = [0, 255], sizes = [4, 1], strides = [1, 1]} : vector<4x256xf32> to vector<4x1xf32>
    %35 = vector.extract_strided_slice %1 {offsets = [0, 0], sizes = [4, 255], strides = [1, 1]} : vector<4x256xf32> to vector<4x255xf32>
    %36 = tpu.concatenate %34, %35 in 1 : vector<4x1xf32>, vector<4x255xf32> -> vector<4x256xf32>
    %c3 = arith.constant 3 : index
    %c0_20 = arith.constant 0 : index
    %c0_21 = arith.constant 0 : index
    %37 = vector.load %arg2[%c3, %c0_20, %c0_21] : memref<9x1x256xf32, #tpu.memory_space<vmem>>, vector<1x1x256xf32>
    %38 = vector.shape_cast %37 : vector<1x1x256xf32> to vector<1x256xf32>
    %39 = vector.broadcast %38 : vector<1x256xf32> to vector<4x256xf32>
    %40 = arith.mulf %36, %39 : vector<4x256xf32>
    %c3_22 = arith.constant 3 : index
    %c0_23 = arith.constant 0 : index
    %c0_24 = arith.constant 0 : index
    %41 = vector.load %arg3[%c3_22, %c0_23, %c0_24] : memref<9x32x4xf32, #tpu.memory_space<vmem>>, vector<1x32x4xf32>
    %42 = vector.shape_cast %41 : vector<1x32x4xf32> to vector<32x4xf32>
    %cst_25 = arith.constant dense<0.000000e+00> : vector<32x256xf32>
    %43 = tpu.matmul %42, %40, %cst_25 {dimension_numbers = #tpu.dot_dimension_numbers<[1], [0], [0], [1], [0, 0, 1, 1], [], []>} : vector<32x4xf32>, vector<4x256xf32>, vector<32x256xf32> -> vector<32x256xf32>
    %44 = arith.addf %33, %43 : vector<32x256xf32>
    %c4 = arith.constant 4 : index
    %c0_26 = arith.constant 0 : index
    %c0_27 = arith.constant 0 : index
    %45 = vector.load %arg3[%c4, %c0_26, %c0_27] : memref<9x32x4xf32, #tpu.memory_space<vmem>>, vector<1x32x4xf32>
    %46 = vector.shape_cast %45 : vector<1x32x4xf32> to vector<32x4xf32>
    %cst_28 = arith.constant dense<0.000000e+00> : vector<32x256xf32>
    %47 = tpu.matmul %46, %1, %cst_28 {dimension_numbers = #tpu.dot_dimension_numbers<[1], [0], [0], [1], [0, 0, 1, 1], [], []>} : vector<32x4xf32>, vector<4x256xf32>, vector<32x256xf32> -> vector<32x256xf32>
    %48 = arith.addf %44, %47 : vector<32x256xf32>
    %49 = vector.extract_strided_slice %1 {offsets = [0, 1], sizes = [4, 255], strides = [1, 1]} : vector<4x256xf32> to vector<4x255xf32>
    %50 = vector.extract_strided_slice %1 {offsets = [0, 0], sizes = [4, 1], strides = [1, 1]} : vector<4x256xf32> to vector<4x1xf32>
    %51 = tpu.concatenate %49, %50 in 1 : vector<4x255xf32>, vector<4x1xf32> -> vector<4x256xf32>
    %c5 = arith.constant 5 : index
    %c0_29 = arith.constant 0 : index
    %c0_30 = arith.constant 0 : index
    %52 = vector.load %arg2[%c5, %c0_29, %c0_30] : memref<9x1x256xf32, #tpu.memory_space<vmem>>, vector<1x1x256xf32>
    %53 = vector.shape_cast %52 : vector<1x1x256xf32> to vector<1x256xf32>
    %54 = vector.broadcast %53 : vector<1x256xf32> to vector<4x256xf32>
    %55 = arith.mulf %51, %54 : vector<4x256xf32>
    %c5_31 = arith.constant 5 : index
    %c0_32 = arith.constant 0 : index
    %c0_33 = arith.constant 0 : index
    %56 = vector.load %arg3[%c5_31, %c0_32, %c0_33] : memref<9x32x4xf32, #tpu.memory_space<vmem>>, vector<1x32x4xf32>
    %57 = vector.shape_cast %56 : vector<1x32x4xf32> to vector<32x4xf32>
    %cst_34 = arith.constant dense<0.000000e+00> : vector<32x256xf32>
    %58 = tpu.matmul %57, %55, %cst_34 {dimension_numbers = #tpu.dot_dimension_numbers<[1], [0], [0], [1], [0, 0, 1, 1], [], []>} : vector<32x4xf32>, vector<4x256xf32>, vector<32x256xf32> -> vector<32x256xf32>
    %59 = arith.addf %48, %58 : vector<32x256xf32>
    %60 = vector.extract_strided_slice %1 {offsets = [0, 15], sizes = [4, 241], strides = [1, 1]} : vector<4x256xf32> to vector<4x241xf32>
    %61 = vector.extract_strided_slice %1 {offsets = [0, 0], sizes = [4, 15], strides = [1, 1]} : vector<4x256xf32> to vector<4x15xf32>
    %62 = tpu.concatenate %60, %61 in 1 : vector<4x241xf32>, vector<4x15xf32> -> vector<4x256xf32>
    %c6 = arith.constant 6 : index
    %c0_35 = arith.constant 0 : index
    %c0_36 = arith.constant 0 : index
    %63 = vector.load %arg2[%c6, %c0_35, %c0_36] : memref<9x1x256xf32, #tpu.memory_space<vmem>>, vector<1x1x256xf32>
    %64 = vector.shape_cast %63 : vector<1x1x256xf32> to vector<1x256xf32>
    %65 = vector.broadcast %64 : vector<1x256xf32> to vector<4x256xf32>
    %66 = arith.mulf %62, %65 : vector<4x256xf32>
    %c6_37 = arith.constant 6 : index
    %c0_38 = arith.constant 0 : index
    %c0_39 = arith.constant 0 : index
    %67 = vector.load %arg3[%c6_37, %c0_38, %c0_39] : memref<9x32x4xf32, #tpu.memory_space<vmem>>, vector<1x32x4xf32>
    %68 = vector.shape_cast %67 : vector<1x32x4xf32> to vector<32x4xf32>
    %cst_40 = arith.constant dense<0.000000e+00> : vector<32x256xf32>
    %69 = tpu.matmul %68, %66, %cst_40 {dimension_numbers = #tpu.dot_dimension_numbers<[1], [0], [0], [1], [0, 0, 1, 1], [], []>} : vector<32x4xf32>, vector<4x256xf32>, vector<32x256xf32> -> vector<32x256xf32>
    %70 = arith.addf %59, %69 : vector<32x256xf32>
    %71 = vector.extract_strided_slice %1 {offsets = [0, 16], sizes = [4, 240], strides = [1, 1]} : vector<4x256xf32> to vector<4x240xf32>
    %72 = vector.extract_strided_slice %1 {offsets = [0, 0], sizes = [4, 16], strides = [1, 1]} : vector<4x256xf32> to vector<4x16xf32>
    %73 = tpu.concatenate %71, %72 in 1 : vector<4x240xf32>, vector<4x16xf32> -> vector<4x256xf32>
    %c7 = arith.constant 7 : index
    %c0_41 = arith.constant 0 : index
    %c0_42 = arith.constant 0 : index
    %74 = vector.load %arg2[%c7, %c0_41, %c0_42] : memref<9x1x256xf32, #tpu.memory_space<vmem>>, vector<1x1x256xf32>
    %75 = vector.shape_cast %74 : vector<1x1x256xf32> to vector<1x256xf32>
    %76 = vector.broadcast %75 : vector<1x256xf32> to vector<4x256xf32>
    %77 = arith.mulf %73, %76 : vector<4x256xf32>
    %c7_43 = arith.constant 7 : index
    %c0_44 = arith.constant 0 : index
    %c0_45 = arith.constant 0 : index
    %78 = vector.load %arg3[%c7_43, %c0_44, %c0_45] : memref<9x32x4xf32, #tpu.memory_space<vmem>>, vector<1x32x4xf32>
    %79 = vector.shape_cast %78 : vector<1x32x4xf32> to vector<32x4xf32>
    %cst_46 = arith.constant dense<0.000000e+00> : vector<32x256xf32>
    %80 = tpu.matmul %79, %77, %cst_46 {dimension_numbers = #tpu.dot_dimension_numbers<[1], [0], [0], [1], [0, 0, 1, 1], [], []>} : vector<32x4xf32>, vector<4x256xf32>, vector<32x256xf32> -> vector<32x256xf32>
    %81 = arith.addf %70, %80 : vector<32x256xf32>
    %82 = vector.extract_strided_slice %1 {offsets = [0, 17], sizes = [4, 239], strides = [1, 1]} : vector<4x256xf32> to vector<4x239xf32>
    %83 = vector.extract_strided_slice %1 {offsets = [0, 0], sizes = [4, 17], strides = [1, 1]} : vector<4x256xf32> to vector<4x17xf32>
    %84 = tpu.concatenate %82, %83 in 1 : vector<4x239xf32>, vector<4x17xf32> -> vector<4x256xf32>
    %c8 = arith.constant 8 : index
    %c0_47 = arith.constant 0 : index
    %c0_48 = arith.constant 0 : index
    %85 = vector.load %arg2[%c8, %c0_47, %c0_48] : memref<9x1x256xf32, #tpu.memory_space<vmem>>, vector<1x1x256xf32>
    %86 = vector.shape_cast %85 : vector<1x1x256xf32> to vector<1x256xf32>
    %87 = vector.broadcast %86 : vector<1x256xf32> to vector<4x256xf32>
    %88 = arith.mulf %84, %87 : vector<4x256xf32>
    %c8_49 = arith.constant 8 : index
    %c0_50 = arith.constant 0 : index
    %c0_51 = arith.constant 0 : index
    %89 = vector.load %arg3[%c8_49, %c0_50, %c0_51] : memref<9x32x4xf32, #tpu.memory_space<vmem>>, vector<1x32x4xf32>
    %90 = vector.shape_cast %89 : vector<1x32x4xf32> to vector<32x4xf32>
    %cst_52 = arith.constant dense<0.000000e+00> : vector<32x256xf32>
    %91 = tpu.matmul %90, %88, %cst_52 {dimension_numbers = #tpu.dot_dimension_numbers<[1], [0], [0], [1], [0, 0, 1, 1], [], []>} : vector<32x4xf32>, vector<4x256xf32>, vector<32x256xf32> -> vector<32x256xf32>
    %92 = arith.addf %81, %91 : vector<32x256xf32>
    %c0_53 = arith.constant 0 : index
    %c0_54 = arith.constant 0 : index
    %93 = vector.load %arg4[%c0_53, %c0_54] : memref<32x1xf32, #tpu.memory_space<vmem>>, vector<32x1xf32>
    %94 = vector.broadcast %93 : vector<32x1xf32> to vector<32x256xf32>
    %95 = arith.addf %92, %94 : vector<32x256xf32>
    %cst_55 = arith.constant 0.000000e+00 : f32
    %96 = vector.broadcast %cst_55 : f32 to vector<32x256xf32>
    %97 = arith.maximumf %95, %96 : vector<32x256xf32>
    %c0_56 = arith.constant 0 : index
    %c0_57 = arith.constant 0 : index
    %98 = vector.load %arg5[%c0_56, %c0_57] : memref<16x32xf32, #tpu.memory_space<vmem>>, vector<16x32xf32>
    %cst_58 = arith.constant dense<0.000000e+00> : vector<16x256xf32>
    %99 = tpu.matmul %98, %97, %cst_58 {dimension_numbers = #tpu.dot_dimension_numbers<[1], [0], [0], [1], [0, 0, 1, 1], [], []>} : vector<16x32xf32>, vector<32x256xf32>, vector<16x256xf32> -> vector<16x256xf32>
    %c0_59 = arith.constant 0 : index
    %c0_60 = arith.constant 0 : index
    %100 = vector.load %arg6[%c0_59, %c0_60] : memref<16x1xf32, #tpu.memory_space<vmem>>, vector<16x1xf32>
    %101 = vector.broadcast %100 : vector<16x1xf32> to vector<16x256xf32>
    %102 = arith.addf %99, %101 : vector<16x256xf32>
    %cst_61 = arith.constant 0.000000e+00 : f32
    %103 = vector.broadcast %cst_61 : f32 to vector<16x256xf32>
    %104 = arith.maximumf %102, %103 : vector<16x256xf32>
    %105 = vector.extract_strided_slice %104 {offsets = [0, 239], sizes = [16, 17], strides = [1, 1]} : vector<16x256xf32> to vector<16x17xf32>
    %106 = vector.extract_strided_slice %104 {offsets = [0, 0], sizes = [16, 239], strides = [1, 1]} : vector<16x256xf32> to vector<16x239xf32>
    %107 = tpu.concatenate %105, %106 in 1 : vector<16x17xf32>, vector<16x239xf32> -> vector<16x256xf32>
    %c0_62 = arith.constant 0 : index
    %c0_63 = arith.constant 0 : index
    %c0_64 = arith.constant 0 : index
    %108 = vector.load %arg2[%c0_62, %c0_63, %c0_64] : memref<9x1x256xf32, #tpu.memory_space<vmem>>, vector<1x1x256xf32>
    %109 = vector.shape_cast %108 : vector<1x1x256xf32> to vector<1x256xf32>
    %110 = vector.broadcast %109 : vector<1x256xf32> to vector<16x256xf32>
    %111 = arith.mulf %107, %110 : vector<16x256xf32>
    %c0_65 = arith.constant 0 : index
    %c0_66 = arith.constant 0 : index
    %c0_67 = arith.constant 0 : index
    %112 = vector.load %arg7[%c0_65, %c0_66, %c0_67] : memref<9x16x16xf32, #tpu.memory_space<vmem>>, vector<1x16x16xf32>
    %113 = vector.shape_cast %112 : vector<1x16x16xf32> to vector<16x16xf32>
    %cst_68 = arith.constant dense<0.000000e+00> : vector<16x256xf32>
    %114 = tpu.matmul %113, %111, %cst_68 {dimension_numbers = #tpu.dot_dimension_numbers<[1], [0], [0], [1], [0, 0, 1, 1], [], []>} : vector<16x16xf32>, vector<16x256xf32>, vector<16x256xf32> -> vector<16x256xf32>
    %115 = vector.extract_strided_slice %104 {offsets = [0, 240], sizes = [16, 16], strides = [1, 1]} : vector<16x256xf32> to vector<16x16xf32>
    %116 = vector.extract_strided_slice %104 {offsets = [0, 0], sizes = [16, 240], strides = [1, 1]} : vector<16x256xf32> to vector<16x240xf32>
    %117 = tpu.concatenate %115, %116 in 1 : vector<16x16xf32>, vector<16x240xf32> -> vector<16x256xf32>
    %c1_69 = arith.constant 1 : index
    %c0_70 = arith.constant 0 : index
    %c0_71 = arith.constant 0 : index
    %118 = vector.load %arg2[%c1_69, %c0_70, %c0_71] : memref<9x1x256xf32, #tpu.memory_space<vmem>>, vector<1x1x256xf32>
    %119 = vector.shape_cast %118 : vector<1x1x256xf32> to vector<1x256xf32>
    %120 = vector.broadcast %119 : vector<1x256xf32> to vector<16x256xf32>
    %121 = arith.mulf %117, %120 : vector<16x256xf32>
    %c1_72 = arith.constant 1 : index
    %c0_73 = arith.constant 0 : index
    %c0_74 = arith.constant 0 : index
    %122 = vector.load %arg7[%c1_72, %c0_73, %c0_74] : memref<9x16x16xf32, #tpu.memory_space<vmem>>, vector<1x16x16xf32>
    %123 = vector.shape_cast %122 : vector<1x16x16xf32> to vector<16x16xf32>
    %cst_75 = arith.constant dense<0.000000e+00> : vector<16x256xf32>
    %124 = tpu.matmul %123, %121, %cst_75 {dimension_numbers = #tpu.dot_dimension_numbers<[1], [0], [0], [1], [0, 0, 1, 1], [], []>} : vector<16x16xf32>, vector<16x256xf32>, vector<16x256xf32> -> vector<16x256xf32>
    %125 = arith.addf %114, %124 : vector<16x256xf32>
    %126 = vector.extract_strided_slice %104 {offsets = [0, 241], sizes = [16, 15], strides = [1, 1]} : vector<16x256xf32> to vector<16x15xf32>
    %127 = vector.extract_strided_slice %104 {offsets = [0, 0], sizes = [16, 241], strides = [1, 1]} : vector<16x256xf32> to vector<16x241xf32>
    %128 = tpu.concatenate %126, %127 in 1 : vector<16x15xf32>, vector<16x241xf32> -> vector<16x256xf32>
    %c2_76 = arith.constant 2 : index
    %c0_77 = arith.constant 0 : index
    %c0_78 = arith.constant 0 : index
    %129 = vector.load %arg2[%c2_76, %c0_77, %c0_78] : memref<9x1x256xf32, #tpu.memory_space<vmem>>, vector<1x1x256xf32>
    %130 = vector.shape_cast %129 : vector<1x1x256xf32> to vector<1x256xf32>
    %131 = vector.broadcast %130 : vector<1x256xf32> to vector<16x256xf32>
    %132 = arith.mulf %128, %131 : vector<16x256xf32>
    %c2_79 = arith.constant 2 : index
    %c0_80 = arith.constant 0 : index
    %c0_81 = arith.constant 0 : index
    %133 = vector.load %arg7[%c2_79, %c0_80, %c0_81] : memref<9x16x16xf32, #tpu.memory_space<vmem>>, vector<1x16x16xf32>
    %134 = vector.shape_cast %133 : vector<1x16x16xf32> to vector<16x16xf32>
    %cst_82 = arith.constant dense<0.000000e+00> : vector<16x256xf32>
    %135 = tpu.matmul %134, %132, %cst_82 {dimension_numbers = #tpu.dot_dimension_numbers<[1], [0], [0], [1], [0, 0, 1, 1], [], []>} : vector<16x16xf32>, vector<16x256xf32>, vector<16x256xf32> -> vector<16x256xf32>
    %136 = arith.addf %125, %135 : vector<16x256xf32>
    %137 = vector.extract_strided_slice %104 {offsets = [0, 255], sizes = [16, 1], strides = [1, 1]} : vector<16x256xf32> to vector<16x1xf32>
    %138 = vector.extract_strided_slice %104 {offsets = [0, 0], sizes = [16, 255], strides = [1, 1]} : vector<16x256xf32> to vector<16x255xf32>
    %139 = tpu.concatenate %137, %138 in 1 : vector<16x1xf32>, vector<16x255xf32> -> vector<16x256xf32>
    %c3_83 = arith.constant 3 : index
    %c0_84 = arith.constant 0 : index
    %c0_85 = arith.constant 0 : index
    %140 = vector.load %arg2[%c3_83, %c0_84, %c0_85] : memref<9x1x256xf32, #tpu.memory_space<vmem>>, vector<1x1x256xf32>
    %141 = vector.shape_cast %140 : vector<1x1x256xf32> to vector<1x256xf32>
    %142 = vector.broadcast %141 : vector<1x256xf32> to vector<16x256xf32>
    %143 = arith.mulf %139, %142 : vector<16x256xf32>
    %c3_86 = arith.constant 3 : index
    %c0_87 = arith.constant 0 : index
    %c0_88 = arith.constant 0 : index
    %144 = vector.load %arg7[%c3_86, %c0_87, %c0_88] : memref<9x16x16xf32, #tpu.memory_space<vmem>>, vector<1x16x16xf32>
    %145 = vector.shape_cast %144 : vector<1x16x16xf32> to vector<16x16xf32>
    %cst_89 = arith.constant dense<0.000000e+00> : vector<16x256xf32>
    %146 = tpu.matmul %145, %143, %cst_89 {dimension_numbers = #tpu.dot_dimension_numbers<[1], [0], [0], [1], [0, 0, 1, 1], [], []>} : vector<16x16xf32>, vector<16x256xf32>, vector<16x256xf32> -> vector<16x256xf32>
    %147 = arith.addf %136, %146 : vector<16x256xf32>
    %c4_90 = arith.constant 4 : index
    %c0_91 = arith.constant 0 : index
    %c0_92 = arith.constant 0 : index
    %148 = vector.load %arg7[%c4_90, %c0_91, %c0_92] : memref<9x16x16xf32, #tpu.memory_space<vmem>>, vector<1x16x16xf32>
    %149 = vector.shape_cast %148 : vector<1x16x16xf32> to vector<16x16xf32>
    %cst_93 = arith.constant dense<0.000000e+00> : vector<16x256xf32>
    %150 = tpu.matmul %149, %104, %cst_93 {dimension_numbers = #tpu.dot_dimension_numbers<[1], [0], [0], [1], [0, 0, 1, 1], [], []>} : vector<16x16xf32>, vector<16x256xf32>, vector<16x256xf32> -> vector<16x256xf32>
    %151 = arith.addf %147, %150 : vector<16x256xf32>
    %152 = vector.extract_strided_slice %104 {offsets = [0, 1], sizes = [16, 255], strides = [1, 1]} : vector<16x256xf32> to vector<16x255xf32>
    %153 = vector.extract_strided_slice %104 {offsets = [0, 0], sizes = [16, 1], strides = [1, 1]} : vector<16x256xf32> to vector<16x1xf32>
    %154 = tpu.concatenate %152, %153 in 1 : vector<16x255xf32>, vector<16x1xf32> -> vector<16x256xf32>
    %c5_94 = arith.constant 5 : index
    %c0_95 = arith.constant 0 : index
    %c0_96 = arith.constant 0 : index
    %155 = vector.load %arg2[%c5_94, %c0_95, %c0_96] : memref<9x1x256xf32, #tpu.memory_space<vmem>>, vector<1x1x256xf32>
    %156 = vector.shape_cast %155 : vector<1x1x256xf32> to vector<1x256xf32>
    %157 = vector.broadcast %156 : vector<1x256xf32> to vector<16x256xf32>
    %158 = arith.mulf %154, %157 : vector<16x256xf32>
    %c5_97 = arith.constant 5 : index
    %c0_98 = arith.constant 0 : index
    %c0_99 = arith.constant 0 : index
    %159 = vector.load %arg7[%c5_97, %c0_98, %c0_99] : memref<9x16x16xf32, #tpu.memory_space<vmem>>, vector<1x16x16xf32>
    %160 = vector.shape_cast %159 : vector<1x16x16xf32> to vector<16x16xf32>
    %cst_100 = arith.constant dense<0.000000e+00> : vector<16x256xf32>
    %161 = tpu.matmul %160, %158, %cst_100 {dimension_numbers = #tpu.dot_dimension_numbers<[1], [0], [0], [1], [0, 0, 1, 1], [], []>} : vector<16x16xf32>, vector<16x256xf32>, vector<16x256xf32> -> vector<16x256xf32>
    %162 = arith.addf %151, %161 : vector<16x256xf32>
    %163 = vector.extract_strided_slice %104 {offsets = [0, 15], sizes = [16, 241], strides = [1, 1]} : vector<16x256xf32> to vector<16x241xf32>
    %164 = vector.extract_strided_slice %104 {offsets = [0, 0], sizes = [16, 15], strides = [1, 1]} : vector<16x256xf32> to vector<16x15xf32>
    %165 = tpu.concatenate %163, %164 in 1 : vector<16x241xf32>, vector<16x15xf32> -> vector<16x256xf32>
    %c6_101 = arith.constant 6 : index
    %c0_102 = arith.constant 0 : index
    %c0_103 = arith.constant 0 : index
    %166 = vector.load %arg2[%c6_101, %c0_102, %c0_103] : memref<9x1x256xf32, #tpu.memory_space<vmem>>, vector<1x1x256xf32>
    %167 = vector.shape_cast %166 : vector<1x1x256xf32> to vector<1x256xf32>
    %168 = vector.broadcast %167 : vector<1x256xf32> to vector<16x256xf32>
    %169 = arith.mulf %165, %168 : vector<16x256xf32>
    %c6_104 = arith.constant 6 : index
    %c0_105 = arith.constant 0 : index
    %c0_106 = arith.constant 0 : index
    %170 = vector.load %arg7[%c6_104, %c0_105, %c0_106] : memref<9x16x16xf32, #tpu.memory_space<vmem>>, vector<1x16x16xf32>
    %171 = vector.shape_cast %170 : vector<1x16x16xf32> to vector<16x16xf32>
    %cst_107 = arith.constant dense<0.000000e+00> : vector<16x256xf32>
    %172 = tpu.matmul %171, %169, %cst_107 {dimension_numbers = #tpu.dot_dimension_numbers<[1], [0], [0], [1], [0, 0, 1, 1], [], []>} : vector<16x16xf32>, vector<16x256xf32>, vector<16x256xf32> -> vector<16x256xf32>
    %173 = arith.addf %162, %172 : vector<16x256xf32>
    %174 = vector.extract_strided_slice %104 {offsets = [0, 16], sizes = [16, 240], strides = [1, 1]} : vector<16x256xf32> to vector<16x240xf32>
    %175 = vector.extract_strided_slice %104 {offsets = [0, 0], sizes = [16, 16], strides = [1, 1]} : vector<16x256xf32> to vector<16x16xf32>
    %176 = tpu.concatenate %174, %175 in 1 : vector<16x240xf32>, vector<16x16xf32> -> vector<16x256xf32>
    %c7_108 = arith.constant 7 : index
    %c0_109 = arith.constant 0 : index
    %c0_110 = arith.constant 0 : index
    %177 = vector.load %arg2[%c7_108, %c0_109, %c0_110] : memref<9x1x256xf32, #tpu.memory_space<vmem>>, vector<1x1x256xf32>
    %178 = vector.shape_cast %177 : vector<1x1x256xf32> to vector<1x256xf32>
    %179 = vector.broadcast %178 : vector<1x256xf32> to vector<16x256xf32>
    %180 = arith.mulf %176, %179 : vector<16x256xf32>
    %c7_111 = arith.constant 7 : index
    %c0_112 = arith.constant 0 : index
    %c0_113 = arith.constant 0 : index
    %181 = vector.load %arg7[%c7_111, %c0_112, %c0_113] : memref<9x16x16xf32, #tpu.memory_space<vmem>>, vector<1x16x16xf32>
    %182 = vector.shape_cast %181 : vector<1x16x16xf32> to vector<16x16xf32>
    %cst_114 = arith.constant dense<0.000000e+00> : vector<16x256xf32>
    %183 = tpu.matmul %182, %180, %cst_114 {dimension_numbers = #tpu.dot_dimension_numbers<[1], [0], [0], [1], [0, 0, 1, 1], [], []>} : vector<16x16xf32>, vector<16x256xf32>, vector<16x256xf32> -> vector<16x256xf32>
    %184 = arith.addf %173, %183 : vector<16x256xf32>
    %185 = vector.extract_strided_slice %104 {offsets = [0, 17], sizes = [16, 239], strides = [1, 1]} : vector<16x256xf32> to vector<16x239xf32>
    %186 = vector.extract_strided_slice %104 {offsets = [0, 0], sizes = [16, 17], strides = [1, 1]} : vector<16x256xf32> to vector<16x17xf32>
    %187 = tpu.concatenate %185, %186 in 1 : vector<16x239xf32>, vector<16x17xf32> -> vector<16x256xf32>
    %c8_115 = arith.constant 8 : index
    %c0_116 = arith.constant 0 : index
    %c0_117 = arith.constant 0 : index
    %188 = vector.load %arg2[%c8_115, %c0_116, %c0_117] : memref<9x1x256xf32, #tpu.memory_space<vmem>>, vector<1x1x256xf32>
    %189 = vector.shape_cast %188 : vector<1x1x256xf32> to vector<1x256xf32>
    %190 = vector.broadcast %189 : vector<1x256xf32> to vector<16x256xf32>
    %191 = arith.mulf %187, %190 : vector<16x256xf32>
    %c8_118 = arith.constant 8 : index
    %c0_119 = arith.constant 0 : index
    %c0_120 = arith.constant 0 : index
    %192 = vector.load %arg7[%c8_118, %c0_119, %c0_120] : memref<9x16x16xf32, #tpu.memory_space<vmem>>, vector<1x16x16xf32>
    %193 = vector.shape_cast %192 : vector<1x16x16xf32> to vector<16x16xf32>
    %cst_121 = arith.constant dense<0.000000e+00> : vector<16x256xf32>
    %194 = tpu.matmul %193, %191, %cst_121 {dimension_numbers = #tpu.dot_dimension_numbers<[1], [0], [0], [1], [0, 0, 1, 1], [], []>} : vector<16x16xf32>, vector<16x256xf32>, vector<16x256xf32> -> vector<16x256xf32>
    %195 = arith.addf %184, %194 : vector<16x256xf32>
    %c0_122 = arith.constant 0 : index
    %c0_123 = arith.constant 0 : index
    %196 = vector.load %arg8[%c0_122, %c0_123] : memref<16x1xf32, #tpu.memory_space<vmem>>, vector<16x1xf32>
    %197 = vector.broadcast %196 : vector<16x1xf32> to vector<16x256xf32>
    %198 = arith.addf %195, %197 : vector<16x256xf32>
    %cst_124 = arith.constant 0.000000e+00 : f32
    %199 = vector.broadcast %cst_124 : f32 to vector<16x256xf32>
    %200 = arith.maximumf %198, %199 : vector<16x256xf32>
    %c0_125 = arith.constant 0 : index
    %c0_126 = arith.constant 0 : index
    %201 = vector.load %arg9[%c0_125, %c0_126] : memref<32x16xf32, #tpu.memory_space<vmem>>, vector<32x16xf32>
    %cst_127 = arith.constant dense<0.000000e+00> : vector<32x256xf32>
    %202 = tpu.matmul %201, %200, %cst_127 {dimension_numbers = #tpu.dot_dimension_numbers<[1], [0], [0], [1], [0, 0, 1, 1], [], []>} : vector<32x16xf32>, vector<16x256xf32>, vector<32x256xf32> -> vector<32x256xf32>
    %c0_128 = arith.constant 0 : index
    %c0_129 = arith.constant 0 : index
    %203 = vector.load %arg10[%c0_128, %c0_129] : memref<32x1xf32, #tpu.memory_space<vmem>>, vector<32x1xf32>
    %204 = vector.broadcast %203 : vector<32x1xf32> to vector<32x256xf32>
    %205 = arith.addf %202, %204 : vector<32x256xf32>
    %206 = arith.addf %97, %205 : vector<32x256xf32>
    %c0_130 = arith.constant 0 : index
    %c0_131 = arith.constant 0 : index
    %207 = vector.load %arg11[%c0_130, %c0_131] : memref<16x32xf32, #tpu.memory_space<vmem>>, vector<16x32xf32>
    %cst_132 = arith.constant dense<0.000000e+00> : vector<16x256xf32>
    %208 = tpu.matmul %207, %206, %cst_132 {dimension_numbers = #tpu.dot_dimension_numbers<[1], [0], [0], [1], [0, 0, 1, 1], [], []>} : vector<16x32xf32>, vector<32x256xf32>, vector<16x256xf32> -> vector<16x256xf32>
    %c0_133 = arith.constant 0 : index
    %c0_134 = arith.constant 0 : index
    %209 = vector.load %arg12[%c0_133, %c0_134] : memref<16x1xf32, #tpu.memory_space<vmem>>, vector<16x1xf32>
    %210 = vector.broadcast %209 : vector<16x1xf32> to vector<16x256xf32>
    %211 = arith.addf %208, %210 : vector<16x256xf32>
    %cst_135 = arith.constant 0.000000e+00 : f32
    %212 = vector.broadcast %cst_135 : f32 to vector<16x256xf32>
    %213 = arith.maximumf %211, %212 : vector<16x256xf32>
    %214 = vector.extract_strided_slice %213 {offsets = [0, 239], sizes = [16, 17], strides = [1, 1]} : vector<16x256xf32> to vector<16x17xf32>
    %215 = vector.extract_strided_slice %213 {offsets = [0, 0], sizes = [16, 239], strides = [1, 1]} : vector<16x256xf32> to vector<16x239xf32>
    %216 = tpu.concatenate %214, %215 in 1 : vector<16x17xf32>, vector<16x239xf32> -> vector<16x256xf32>
    %c0_136 = arith.constant 0 : index
    %c0_137 = arith.constant 0 : index
    %c0_138 = arith.constant 0 : index
    %217 = vector.load %arg2[%c0_136, %c0_137, %c0_138] : memref<9x1x256xf32, #tpu.memory_space<vmem>>, vector<1x1x256xf32>
    %218 = vector.shape_cast %217 : vector<1x1x256xf32> to vector<1x256xf32>
    %219 = vector.broadcast %218 : vector<1x256xf32> to vector<16x256xf32>
    %220 = arith.mulf %216, %219 : vector<16x256xf32>
    %c0_139 = arith.constant 0 : index
    %c0_140 = arith.constant 0 : index
    %c0_141 = arith.constant 0 : index
    %221 = vector.load %arg13[%c0_139, %c0_140, %c0_141] : memref<9x16x16xf32, #tpu.memory_space<vmem>>, vector<1x16x16xf32>
    %222 = vector.shape_cast %221 : vector<1x16x16xf32> to vector<16x16xf32>
    %cst_142 = arith.constant dense<0.000000e+00> : vector<16x256xf32>
    %223 = tpu.matmul %222, %220, %cst_142 {dimension_numbers = #tpu.dot_dimension_numbers<[1], [0], [0], [1], [0, 0, 1, 1], [], []>} : vector<16x16xf32>, vector<16x256xf32>, vector<16x256xf32> -> vector<16x256xf32>
    %224 = vector.extract_strided_slice %213 {offsets = [0, 240], sizes = [16, 16], strides = [1, 1]} : vector<16x256xf32> to vector<16x16xf32>
    %225 = vector.extract_strided_slice %213 {offsets = [0, 0], sizes = [16, 240], strides = [1, 1]} : vector<16x256xf32> to vector<16x240xf32>
    %226 = tpu.concatenate %224, %225 in 1 : vector<16x16xf32>, vector<16x240xf32> -> vector<16x256xf32>
    %c1_143 = arith.constant 1 : index
    %c0_144 = arith.constant 0 : index
    %c0_145 = arith.constant 0 : index
    %227 = vector.load %arg2[%c1_143, %c0_144, %c0_145] : memref<9x1x256xf32, #tpu.memory_space<vmem>>, vector<1x1x256xf32>
    %228 = vector.shape_cast %227 : vector<1x1x256xf32> to vector<1x256xf32>
    %229 = vector.broadcast %228 : vector<1x256xf32> to vector<16x256xf32>
    %230 = arith.mulf %226, %229 : vector<16x256xf32>
    %c1_146 = arith.constant 1 : index
    %c0_147 = arith.constant 0 : index
    %c0_148 = arith.constant 0 : index
    %231 = vector.load %arg13[%c1_146, %c0_147, %c0_148] : memref<9x16x16xf32, #tpu.memory_space<vmem>>, vector<1x16x16xf32>
    %232 = vector.shape_cast %231 : vector<1x16x16xf32> to vector<16x16xf32>
    %cst_149 = arith.constant dense<0.000000e+00> : vector<16x256xf32>
    %233 = tpu.matmul %232, %230, %cst_149 {dimension_numbers = #tpu.dot_dimension_numbers<[1], [0], [0], [1], [0, 0, 1, 1], [], []>} : vector<16x16xf32>, vector<16x256xf32>, vector<16x256xf32> -> vector<16x256xf32>
    %234 = arith.addf %223, %233 : vector<16x256xf32>
    %235 = vector.extract_strided_slice %213 {offsets = [0, 241], sizes = [16, 15], strides = [1, 1]} : vector<16x256xf32> to vector<16x15xf32>
    %236 = vector.extract_strided_slice %213 {offsets = [0, 0], sizes = [16, 241], strides = [1, 1]} : vector<16x256xf32> to vector<16x241xf32>
    %237 = tpu.concatenate %235, %236 in 1 : vector<16x15xf32>, vector<16x241xf32> -> vector<16x256xf32>
    %c2_150 = arith.constant 2 : index
    %c0_151 = arith.constant 0 : index
    %c0_152 = arith.constant 0 : index
    %238 = vector.load %arg2[%c2_150, %c0_151, %c0_152] : memref<9x1x256xf32, #tpu.memory_space<vmem>>, vector<1x1x256xf32>
    %239 = vector.shape_cast %238 : vector<1x1x256xf32> to vector<1x256xf32>
    %240 = vector.broadcast %239 : vector<1x256xf32> to vector<16x256xf32>
    %241 = arith.mulf %237, %240 : vector<16x256xf32>
    %c2_153 = arith.constant 2 : index
    %c0_154 = arith.constant 0 : index
    %c0_155 = arith.constant 0 : index
    %242 = vector.load %arg13[%c2_153, %c0_154, %c0_155] : memref<9x16x16xf32, #tpu.memory_space<vmem>>, vector<1x16x16xf32>
    %243 = vector.shape_cast %242 : vector<1x16x16xf32> to vector<16x16xf32>
    %cst_156 = arith.constant dense<0.000000e+00> : vector<16x256xf32>
    %244 = tpu.matmul %243, %241, %cst_156 {dimension_numbers = #tpu.dot_dimension_numbers<[1], [0], [0], [1], [0, 0, 1, 1], [], []>} : vector<16x16xf32>, vector<16x256xf32>, vector<16x256xf32> -> vector<16x256xf32>
    %245 = arith.addf %234, %244 : vector<16x256xf32>
    %246 = vector.extract_strided_slice %213 {offsets = [0, 255], sizes = [16, 1], strides = [1, 1]} : vector<16x256xf32> to vector<16x1xf32>
    %247 = vector.extract_strided_slice %213 {offsets = [0, 0], sizes = [16, 255], strides = [1, 1]} : vector<16x256xf32> to vector<16x255xf32>
    %248 = tpu.concatenate %246, %247 in 1 : vector<16x1xf32>, vector<16x255xf32> -> vector<16x256xf32>
    %c3_157 = arith.constant 3 : index
    %c0_158 = arith.constant 0 : index
    %c0_159 = arith.constant 0 : index
    %249 = vector.load %arg2[%c3_157, %c0_158, %c0_159] : memref<9x1x256xf32, #tpu.memory_space<vmem>>, vector<1x1x256xf32>
    %250 = vector.shape_cast %249 : vector<1x1x256xf32> to vector<1x256xf32>
    %251 = vector.broadcast %250 : vector<1x256xf32> to vector<16x256xf32>
    %252 = arith.mulf %248, %251 : vector<16x256xf32>
    %c3_160 = arith.constant 3 : index
    %c0_161 = arith.constant 0 : index
    %c0_162 = arith.constant 0 : index
    %253 = vector.load %arg13[%c3_160, %c0_161, %c0_162] : memref<9x16x16xf32, #tpu.memory_space<vmem>>, vector<1x16x16xf32>
    %254 = vector.shape_cast %253 : vector<1x16x16xf32> to vector<16x16xf32>
    %cst_163 = arith.constant dense<0.000000e+00> : vector<16x256xf32>
    %255 = tpu.matmul %254, %252, %cst_163 {dimension_numbers = #tpu.dot_dimension_numbers<[1], [0], [0], [1], [0, 0, 1, 1], [], []>} : vector<16x16xf32>, vector<16x256xf32>, vector<16x256xf32> -> vector<16x256xf32>
    %256 = arith.addf %245, %255 : vector<16x256xf32>
    %c4_164 = arith.constant 4 : index
    %c0_165 = arith.constant 0 : index
    %c0_166 = arith.constant 0 : index
    %257 = vector.load %arg13[%c4_164, %c0_165, %c0_166] : memref<9x16x16xf32, #tpu.memory_space<vmem>>, vector<1x16x16xf32>
    %258 = vector.shape_cast %257 : vector<1x16x16xf32> to vector<16x16xf32>
    %cst_167 = arith.constant dense<0.000000e+00> : vector<16x256xf32>
    %259 = tpu.matmul %258, %213, %cst_167 {dimension_numbers = #tpu.dot_dimension_numbers<[1], [0], [0], [1], [0, 0, 1, 1], [], []>} : vector<16x16xf32>, vector<16x256xf32>, vector<16x256xf32> -> vector<16x256xf32>
    %260 = arith.addf %256, %259 : vector<16x256xf32>
    %261 = vector.extract_strided_slice %213 {offsets = [0, 1], sizes = [16, 255], strides = [1, 1]} : vector<16x256xf32> to vector<16x255xf32>
    %262 = vector.extract_strided_slice %213 {offsets = [0, 0], sizes = [16, 1], strides = [1, 1]} : vector<16x256xf32> to vector<16x1xf32>
    %263 = tpu.concatenate %261, %262 in 1 : vector<16x255xf32>, vector<16x1xf32> -> vector<16x256xf32>
    %c5_168 = arith.constant 5 : index
    %c0_169 = arith.constant 0 : index
    %c0_170 = arith.constant 0 : index
    %264 = vector.load %arg2[%c5_168, %c0_169, %c0_170] : memref<9x1x256xf32, #tpu.memory_space<vmem>>, vector<1x1x256xf32>
    %265 = vector.shape_cast %264 : vector<1x1x256xf32> to vector<1x256xf32>
    %266 = vector.broadcast %265 : vector<1x256xf32> to vector<16x256xf32>
    %267 = arith.mulf %263, %266 : vector<16x256xf32>
    %c5_171 = arith.constant 5 : index
    %c0_172 = arith.constant 0 : index
    %c0_173 = arith.constant 0 : index
    %268 = vector.load %arg13[%c5_171, %c0_172, %c0_173] : memref<9x16x16xf32, #tpu.memory_space<vmem>>, vector<1x16x16xf32>
    %269 = vector.shape_cast %268 : vector<1x16x16xf32> to vector<16x16xf32>
    %cst_174 = arith.constant dense<0.000000e+00> : vector<16x256xf32>
    %270 = tpu.matmul %269, %267, %cst_174 {dimension_numbers = #tpu.dot_dimension_numbers<[1], [0], [0], [1], [0, 0, 1, 1], [], []>} : vector<16x16xf32>, vector<16x256xf32>, vector<16x256xf32> -> vector<16x256xf32>
    %271 = arith.addf %260, %270 : vector<16x256xf32>
    %272 = vector.extract_strided_slice %213 {offsets = [0, 15], sizes = [16, 241], strides = [1, 1]} : vector<16x256xf32> to vector<16x241xf32>
    %273 = vector.extract_strided_slice %213 {offsets = [0, 0], sizes = [16, 15], strides = [1, 1]} : vector<16x256xf32> to vector<16x15xf32>
    %274 = tpu.concatenate %272, %273 in 1 : vector<16x241xf32>, vector<16x15xf32> -> vector<16x256xf32>
    %c6_175 = arith.constant 6 : index
    %c0_176 = arith.constant 0 : index
    %c0_177 = arith.constant 0 : index
    %275 = vector.load %arg2[%c6_175, %c0_176, %c0_177] : memref<9x1x256xf32, #tpu.memory_space<vmem>>, vector<1x1x256xf32>
    %276 = vector.shape_cast %275 : vector<1x1x256xf32> to vector<1x256xf32>
    %277 = vector.broadcast %276 : vector<1x256xf32> to vector<16x256xf32>
    %278 = arith.mulf %274, %277 : vector<16x256xf32>
    %c6_178 = arith.constant 6 : index
    %c0_179 = arith.constant 0 : index
    %c0_180 = arith.constant 0 : index
    %279 = vector.load %arg13[%c6_178, %c0_179, %c0_180] : memref<9x16x16xf32, #tpu.memory_space<vmem>>, vector<1x16x16xf32>
    %280 = vector.shape_cast %279 : vector<1x16x16xf32> to vector<16x16xf32>
    %cst_181 = arith.constant dense<0.000000e+00> : vector<16x256xf32>
    %281 = tpu.matmul %280, %278, %cst_181 {dimension_numbers = #tpu.dot_dimension_numbers<[1], [0], [0], [1], [0, 0, 1, 1], [], []>} : vector<16x16xf32>, vector<16x256xf32>, vector<16x256xf32> -> vector<16x256xf32>
    %282 = arith.addf %271, %281 : vector<16x256xf32>
    %283 = vector.extract_strided_slice %213 {offsets = [0, 16], sizes = [16, 240], strides = [1, 1]} : vector<16x256xf32> to vector<16x240xf32>
    %284 = vector.extract_strided_slice %213 {offsets = [0, 0], sizes = [16, 16], strides = [1, 1]} : vector<16x256xf32> to vector<16x16xf32>
    %285 = tpu.concatenate %283, %284 in 1 : vector<16x240xf32>, vector<16x16xf32> -> vector<16x256xf32>
    %c7_182 = arith.constant 7 : index
    %c0_183 = arith.constant 0 : index
    %c0_184 = arith.constant 0 : index
    %286 = vector.load %arg2[%c7_182, %c0_183, %c0_184] : memref<9x1x256xf32, #tpu.memory_space<vmem>>, vector<1x1x256xf32>
    %287 = vector.shape_cast %286 : vector<1x1x256xf32> to vector<1x256xf32>
    %288 = vector.broadcast %287 : vector<1x256xf32> to vector<16x256xf32>
    %289 = arith.mulf %285, %288 : vector<16x256xf32>
    %c7_185 = arith.constant 7 : index
    %c0_186 = arith.constant 0 : index
    %c0_187 = arith.constant 0 : index
    %290 = vector.load %arg13[%c7_185, %c0_186, %c0_187] : memref<9x16x16xf32, #tpu.memory_space<vmem>>, vector<1x16x16xf32>
    %291 = vector.shape_cast %290 : vector<1x16x16xf32> to vector<16x16xf32>
    %cst_188 = arith.constant dense<0.000000e+00> : vector<16x256xf32>
    %292 = tpu.matmul %291, %289, %cst_188 {dimension_numbers = #tpu.dot_dimension_numbers<[1], [0], [0], [1], [0, 0, 1, 1], [], []>} : vector<16x16xf32>, vector<16x256xf32>, vector<16x256xf32> -> vector<16x256xf32>
    %293 = arith.addf %282, %292 : vector<16x256xf32>
    %294 = vector.extract_strided_slice %213 {offsets = [0, 17], sizes = [16, 239], strides = [1, 1]} : vector<16x256xf32> to vector<16x239xf32>
    %295 = vector.extract_strided_slice %213 {offsets = [0, 0], sizes = [16, 17], strides = [1, 1]} : vector<16x256xf32> to vector<16x17xf32>
    %296 = tpu.concatenate %294, %295 in 1 : vector<16x239xf32>, vector<16x17xf32> -> vector<16x256xf32>
    %c8_189 = arith.constant 8 : index
    %c0_190 = arith.constant 0 : index
    %c0_191 = arith.constant 0 : index
    %297 = vector.load %arg2[%c8_189, %c0_190, %c0_191] : memref<9x1x256xf32, #tpu.memory_space<vmem>>, vector<1x1x256xf32>
    %298 = vector.shape_cast %297 : vector<1x1x256xf32> to vector<1x256xf32>
    %299 = vector.broadcast %298 : vector<1x256xf32> to vector<16x256xf32>
    %300 = arith.mulf %296, %299 : vector<16x256xf32>
    %c8_192 = arith.constant 8 : index
    %c0_193 = arith.constant 0 : index
    %c0_194 = arith.constant 0 : index
    %301 = vector.load %arg13[%c8_192, %c0_193, %c0_194] : memref<9x16x16xf32, #tpu.memory_space<vmem>>, vector<1x16x16xf32>
    %302 = vector.shape_cast %301 : vector<1x16x16xf32> to vector<16x16xf32>
    %cst_195 = arith.constant dense<0.000000e+00> : vector<16x256xf32>
    %303 = tpu.matmul %302, %300, %cst_195 {dimension_numbers = #tpu.dot_dimension_numbers<[1], [0], [0], [1], [0, 0, 1, 1], [], []>} : vector<16x16xf32>, vector<16x256xf32>, vector<16x256xf32> -> vector<16x256xf32>
    %304 = arith.addf %293, %303 : vector<16x256xf32>
    %c0_196 = arith.constant 0 : index
    %c0_197 = arith.constant 0 : index
    %305 = vector.load %arg14[%c0_196, %c0_197] : memref<16x1xf32, #tpu.memory_space<vmem>>, vector<16x1xf32>
    %306 = vector.broadcast %305 : vector<16x1xf32> to vector<16x256xf32>
    %307 = arith.addf %304, %306 : vector<16x256xf32>
    %cst_198 = arith.constant 0.000000e+00 : f32
    %308 = vector.broadcast %cst_198 : f32 to vector<16x256xf32>
    %309 = arith.maximumf %307, %308 : vector<16x256xf32>
    %c0_199 = arith.constant 0 : index
    %c0_200 = arith.constant 0 : index
    %310 = vector.load %arg15[%c0_199, %c0_200] : memref<32x16xf32, #tpu.memory_space<vmem>>, vector<32x16xf32>
    %cst_201 = arith.constant dense<0.000000e+00> : vector<32x256xf32>
    %311 = tpu.matmul %310, %309, %cst_201 {dimension_numbers = #tpu.dot_dimension_numbers<[1], [0], [0], [1], [0, 0, 1, 1], [], []>} : vector<32x16xf32>, vector<16x256xf32>, vector<32x256xf32> -> vector<32x256xf32>
    %c0_202 = arith.constant 0 : index
    %c0_203 = arith.constant 0 : index
    %312 = vector.load %arg16[%c0_202, %c0_203] : memref<32x1xf32, #tpu.memory_space<vmem>>, vector<32x1xf32>
    %313 = vector.broadcast %312 : vector<32x1xf32> to vector<32x256xf32>
    %314 = arith.addf %311, %313 : vector<32x256xf32>
    %315 = arith.addf %206, %314 : vector<32x256xf32>
    %cst_204 = arith.constant 0.000000e+00 : f32
    %316 = vector.broadcast %cst_204 : f32 to vector<32x256xf32>
    %317 = arith.maximumf %315, %316 : vector<32x256xf32>
    %318 = vector.extract_strided_slice %317 {offsets = [0, 239], sizes = [32, 17], strides = [1, 1]} : vector<32x256xf32> to vector<32x17xf32>
    %319 = vector.extract_strided_slice %317 {offsets = [0, 0], sizes = [32, 239], strides = [1, 1]} : vector<32x256xf32> to vector<32x239xf32>
    %320 = tpu.concatenate %318, %319 in 1 : vector<32x17xf32>, vector<32x239xf32> -> vector<32x256xf32>
    %c0_205 = arith.constant 0 : index
    %c0_206 = arith.constant 0 : index
    %c0_207 = arith.constant 0 : index
    %321 = vector.load %arg2[%c0_205, %c0_206, %c0_207] : memref<9x1x256xf32, #tpu.memory_space<vmem>>, vector<1x1x256xf32>
    %322 = vector.shape_cast %321 : vector<1x1x256xf32> to vector<1x256xf32>
    %323 = vector.broadcast %322 : vector<1x256xf32> to vector<32x256xf32>
    %324 = arith.mulf %320, %323 : vector<32x256xf32>
    %c0_208 = arith.constant 0 : index
    %c0_209 = arith.constant 0 : index
    %c0_210 = arith.constant 0 : index
    %325 = vector.load %arg17[%c0_208, %c0_209, %c0_210] : memref<9x4x32xf32, #tpu.memory_space<vmem>>, vector<1x4x32xf32>
    %326 = vector.shape_cast %325 : vector<1x4x32xf32> to vector<4x32xf32>
    %cst_211 = arith.constant dense<0.000000e+00> : vector<4x256xf32>
    %327 = tpu.matmul %326, %324, %cst_211 {dimension_numbers = #tpu.dot_dimension_numbers<[1], [0], [0], [1], [0, 0, 1, 1], [], []>} : vector<4x32xf32>, vector<32x256xf32>, vector<4x256xf32> -> vector<4x256xf32>
    %328 = vector.extract_strided_slice %317 {offsets = [0, 240], sizes = [32, 16], strides = [1, 1]} : vector<32x256xf32> to vector<32x16xf32>
    %329 = vector.extract_strided_slice %317 {offsets = [0, 0], sizes = [32, 240], strides = [1, 1]} : vector<32x256xf32> to vector<32x240xf32>
    %330 = tpu.concatenate %328, %329 in 1 : vector<32x16xf32>, vector<32x240xf32> -> vector<32x256xf32>
    %c1_212 = arith.constant 1 : index
    %c0_213 = arith.constant 0 : index
    %c0_214 = arith.constant 0 : index
    %331 = vector.load %arg2[%c1_212, %c0_213, %c0_214] : memref<9x1x256xf32, #tpu.memory_space<vmem>>, vector<1x1x256xf32>
    %332 = vector.shape_cast %331 : vector<1x1x256xf32> to vector<1x256xf32>
    %333 = vector.broadcast %332 : vector<1x256xf32> to vector<32x256xf32>
    %334 = arith.mulf %330, %333 : vector<32x256xf32>
    %c1_215 = arith.constant 1 : index
    %c0_216 = arith.constant 0 : index
    %c0_217 = arith.constant 0 : index
    %335 = vector.load %arg17[%c1_215, %c0_216, %c0_217] : memref<9x4x32xf32, #tpu.memory_space<vmem>>, vector<1x4x32xf32>
    %336 = vector.shape_cast %335 : vector<1x4x32xf32> to vector<4x32xf32>
    %cst_218 = arith.constant dense<0.000000e+00> : vector<4x256xf32>
    %337 = tpu.matmul %336, %334, %cst_218 {dimension_numbers = #tpu.dot_dimension_numbers<[1], [0], [0], [1], [0, 0, 1, 1], [], []>} : vector<4x32xf32>, vector<32x256xf32>, vector<4x256xf32> -> vector<4x256xf32>
    %338 = arith.addf %327, %337 : vector<4x256xf32>
    %339 = vector.extract_strided_slice %317 {offsets = [0, 241], sizes = [32, 15], strides = [1, 1]} : vector<32x256xf32> to vector<32x15xf32>
    %340 = vector.extract_strided_slice %317 {offsets = [0, 0], sizes = [32, 241], strides = [1, 1]} : vector<32x256xf32> to vector<32x241xf32>
    %341 = tpu.concatenate %339, %340 in 1 : vector<32x15xf32>, vector<32x241xf32> -> vector<32x256xf32>
    %c2_219 = arith.constant 2 : index
    %c0_220 = arith.constant 0 : index
    %c0_221 = arith.constant 0 : index
    %342 = vector.load %arg2[%c2_219, %c0_220, %c0_221] : memref<9x1x256xf32, #tpu.memory_space<vmem>>, vector<1x1x256xf32>
    %343 = vector.shape_cast %342 : vector<1x1x256xf32> to vector<1x256xf32>
    %344 = vector.broadcast %343 : vector<1x256xf32> to vector<32x256xf32>
    %345 = arith.mulf %341, %344 : vector<32x256xf32>
    %c2_222 = arith.constant 2 : index
    %c0_223 = arith.constant 0 : index
    %c0_224 = arith.constant 0 : index
    %346 = vector.load %arg17[%c2_222, %c0_223, %c0_224] : memref<9x4x32xf32, #tpu.memory_space<vmem>>, vector<1x4x32xf32>
    %347 = vector.shape_cast %346 : vector<1x4x32xf32> to vector<4x32xf32>
    %cst_225 = arith.constant dense<0.000000e+00> : vector<4x256xf32>
    %348 = tpu.matmul %347, %345, %cst_225 {dimension_numbers = #tpu.dot_dimension_numbers<[1], [0], [0], [1], [0, 0, 1, 1], [], []>} : vector<4x32xf32>, vector<32x256xf32>, vector<4x256xf32> -> vector<4x256xf32>
    %349 = arith.addf %338, %348 : vector<4x256xf32>
    %350 = vector.extract_strided_slice %317 {offsets = [0, 255], sizes = [32, 1], strides = [1, 1]} : vector<32x256xf32> to vector<32x1xf32>
    %351 = vector.extract_strided_slice %317 {offsets = [0, 0], sizes = [32, 255], strides = [1, 1]} : vector<32x256xf32> to vector<32x255xf32>
    %352 = tpu.concatenate %350, %351 in 1 : vector<32x1xf32>, vector<32x255xf32> -> vector<32x256xf32>
    %c3_226 = arith.constant 3 : index
    %c0_227 = arith.constant 0 : index
    %c0_228 = arith.constant 0 : index
    %353 = vector.load %arg2[%c3_226, %c0_227, %c0_228] : memref<9x1x256xf32, #tpu.memory_space<vmem>>, vector<1x1x256xf32>
    %354 = vector.shape_cast %353 : vector<1x1x256xf32> to vector<1x256xf32>
    %355 = vector.broadcast %354 : vector<1x256xf32> to vector<32x256xf32>
    %356 = arith.mulf %352, %355 : vector<32x256xf32>
    %c3_229 = arith.constant 3 : index
    %c0_230 = arith.constant 0 : index
    %c0_231 = arith.constant 0 : index
    %357 = vector.load %arg17[%c3_229, %c0_230, %c0_231] : memref<9x4x32xf32, #tpu.memory_space<vmem>>, vector<1x4x32xf32>
    %358 = vector.shape_cast %357 : vector<1x4x32xf32> to vector<4x32xf32>
    %cst_232 = arith.constant dense<0.000000e+00> : vector<4x256xf32>
    %359 = tpu.matmul %358, %356, %cst_232 {dimension_numbers = #tpu.dot_dimension_numbers<[1], [0], [0], [1], [0, 0, 1, 1], [], []>} : vector<4x32xf32>, vector<32x256xf32>, vector<4x256xf32> -> vector<4x256xf32>
    %360 = arith.addf %349, %359 : vector<4x256xf32>
    %c4_233 = arith.constant 4 : index
    %c0_234 = arith.constant 0 : index
    %c0_235 = arith.constant 0 : index
    %361 = vector.load %arg17[%c4_233, %c0_234, %c0_235] : memref<9x4x32xf32, #tpu.memory_space<vmem>>, vector<1x4x32xf32>
    %362 = vector.shape_cast %361 : vector<1x4x32xf32> to vector<4x32xf32>
    %cst_236 = arith.constant dense<0.000000e+00> : vector<4x256xf32>
    %363 = tpu.matmul %362, %317, %cst_236 {dimension_numbers = #tpu.dot_dimension_numbers<[1], [0], [0], [1], [0, 0, 1, 1], [], []>} : vector<4x32xf32>, vector<32x256xf32>, vector<4x256xf32> -> vector<4x256xf32>
    %364 = arith.addf %360, %363 : vector<4x256xf32>
    %365 = vector.extract_strided_slice %317 {offsets = [0, 1], sizes = [32, 255], strides = [1, 1]} : vector<32x256xf32> to vector<32x255xf32>
    %366 = vector.extract_strided_slice %317 {offsets = [0, 0], sizes = [32, 1], strides = [1, 1]} : vector<32x256xf32> to vector<32x1xf32>
    %367 = tpu.concatenate %365, %366 in 1 : vector<32x255xf32>, vector<32x1xf32> -> vector<32x256xf32>
    %c5_237 = arith.constant 5 : index
    %c0_238 = arith.constant 0 : index
    %c0_239 = arith.constant 0 : index
    %368 = vector.load %arg2[%c5_237, %c0_238, %c0_239] : memref<9x1x256xf32, #tpu.memory_space<vmem>>, vector<1x1x256xf32>
    %369 = vector.shape_cast %368 : vector<1x1x256xf32> to vector<1x256xf32>
    %370 = vector.broadcast %369 : vector<1x256xf32> to vector<32x256xf32>
    %371 = arith.mulf %367, %370 : vector<32x256xf32>
    %c5_240 = arith.constant 5 : index
    %c0_241 = arith.constant 0 : index
    %c0_242 = arith.constant 0 : index
    %372 = vector.load %arg17[%c5_240, %c0_241, %c0_242] : memref<9x4x32xf32, #tpu.memory_space<vmem>>, vector<1x4x32xf32>
    %373 = vector.shape_cast %372 : vector<1x4x32xf32> to vector<4x32xf32>
    %cst_243 = arith.constant dense<0.000000e+00> : vector<4x256xf32>
    %374 = tpu.matmul %373, %371, %cst_243 {dimension_numbers = #tpu.dot_dimension_numbers<[1], [0], [0], [1], [0, 0, 1, 1], [], []>} : vector<4x32xf32>, vector<32x256xf32>, vector<4x256xf32> -> vector<4x256xf32>
    %375 = arith.addf %364, %374 : vector<4x256xf32>
    %376 = vector.extract_strided_slice %317 {offsets = [0, 15], sizes = [32, 241], strides = [1, 1]} : vector<32x256xf32> to vector<32x241xf32>
    %377 = vector.extract_strided_slice %317 {offsets = [0, 0], sizes = [32, 15], strides = [1, 1]} : vector<32x256xf32> to vector<32x15xf32>
    %378 = tpu.concatenate %376, %377 in 1 : vector<32x241xf32>, vector<32x15xf32> -> vector<32x256xf32>
    %c6_244 = arith.constant 6 : index
    %c0_245 = arith.constant 0 : index
    %c0_246 = arith.constant 0 : index
    %379 = vector.load %arg2[%c6_244, %c0_245, %c0_246] : memref<9x1x256xf32, #tpu.memory_space<vmem>>, vector<1x1x256xf32>
    %380 = vector.shape_cast %379 : vector<1x1x256xf32> to vector<1x256xf32>
    %381 = vector.broadcast %380 : vector<1x256xf32> to vector<32x256xf32>
    %382 = arith.mulf %378, %381 : vector<32x256xf32>
    %c6_247 = arith.constant 6 : index
    %c0_248 = arith.constant 0 : index
    %c0_249 = arith.constant 0 : index
    %383 = vector.load %arg17[%c6_247, %c0_248, %c0_249] : memref<9x4x32xf32, #tpu.memory_space<vmem>>, vector<1x4x32xf32>
    %384 = vector.shape_cast %383 : vector<1x4x32xf32> to vector<4x32xf32>
    %cst_250 = arith.constant dense<0.000000e+00> : vector<4x256xf32>
    %385 = tpu.matmul %384, %382, %cst_250 {dimension_numbers = #tpu.dot_dimension_numbers<[1], [0], [0], [1], [0, 0, 1, 1], [], []>} : vector<4x32xf32>, vector<32x256xf32>, vector<4x256xf32> -> vector<4x256xf32>
    %386 = arith.addf %375, %385 : vector<4x256xf32>
    %387 = vector.extract_strided_slice %317 {offsets = [0, 16], sizes = [32, 240], strides = [1, 1]} : vector<32x256xf32> to vector<32x240xf32>
    %388 = vector.extract_strided_slice %317 {offsets = [0, 0], sizes = [32, 16], strides = [1, 1]} : vector<32x256xf32> to vector<32x16xf32>
    %389 = tpu.concatenate %387, %388 in 1 : vector<32x240xf32>, vector<32x16xf32> -> vector<32x256xf32>
    %c7_251 = arith.constant 7 : index
    %c0_252 = arith.constant 0 : index
    %c0_253 = arith.constant 0 : index
    %390 = vector.load %arg2[%c7_251, %c0_252, %c0_253] : memref<9x1x256xf32, #tpu.memory_space<vmem>>, vector<1x1x256xf32>
    %391 = vector.shape_cast %390 : vector<1x1x256xf32> to vector<1x256xf32>
    %392 = vector.broadcast %391 : vector<1x256xf32> to vector<32x256xf32>
    %393 = arith.mulf %389, %392 : vector<32x256xf32>
    %c7_254 = arith.constant 7 : index
    %c0_255 = arith.constant 0 : index
    %c0_256 = arith.constant 0 : index
    %394 = vector.load %arg17[%c7_254, %c0_255, %c0_256] : memref<9x4x32xf32, #tpu.memory_space<vmem>>, vector<1x4x32xf32>
    %395 = vector.shape_cast %394 : vector<1x4x32xf32> to vector<4x32xf32>
    %cst_257 = arith.constant dense<0.000000e+00> : vector<4x256xf32>
    %396 = tpu.matmul %395, %393, %cst_257 {dimension_numbers = #tpu.dot_dimension_numbers<[1], [0], [0], [1], [0, 0, 1, 1], [], []>} : vector<4x32xf32>, vector<32x256xf32>, vector<4x256xf32> -> vector<4x256xf32>
    %397 = arith.addf %386, %396 : vector<4x256xf32>
    %398 = vector.extract_strided_slice %317 {offsets = [0, 17], sizes = [32, 239], strides = [1, 1]} : vector<32x256xf32> to vector<32x239xf32>
    %399 = vector.extract_strided_slice %317 {offsets = [0, 0], sizes = [32, 17], strides = [1, 1]} : vector<32x256xf32> to vector<32x17xf32>
    %400 = tpu.concatenate %398, %399 in 1 : vector<32x239xf32>, vector<32x17xf32> -> vector<32x256xf32>
    %c8_258 = arith.constant 8 : index
    %c0_259 = arith.constant 0 : index
    %c0_260 = arith.constant 0 : index
    %401 = vector.load %arg2[%c8_258, %c0_259, %c0_260] : memref<9x1x256xf32, #tpu.memory_space<vmem>>, vector<1x1x256xf32>
    %402 = vector.shape_cast %401 : vector<1x1x256xf32> to vector<1x256xf32>
    %403 = vector.broadcast %402 : vector<1x256xf32> to vector<32x256xf32>
    %404 = arith.mulf %400, %403 : vector<32x256xf32>
    %c8_261 = arith.constant 8 : index
    %c0_262 = arith.constant 0 : index
    %c0_263 = arith.constant 0 : index
    %405 = vector.load %arg17[%c8_261, %c0_262, %c0_263] : memref<9x4x32xf32, #tpu.memory_space<vmem>>, vector<1x4x32xf32>
    %406 = vector.shape_cast %405 : vector<1x4x32xf32> to vector<4x32xf32>
    %cst_264 = arith.constant dense<0.000000e+00> : vector<4x256xf32>
    %407 = tpu.matmul %406, %404, %cst_264 {dimension_numbers = #tpu.dot_dimension_numbers<[1], [0], [0], [1], [0, 0, 1, 1], [], []>} : vector<4x32xf32>, vector<32x256xf32>, vector<4x256xf32> -> vector<4x256xf32>
    %408 = arith.addf %397, %407 : vector<4x256xf32>
    %c0_265 = arith.constant 0 : index
    %c0_266 = arith.constant 0 : index
    %409 = vector.load %arg18[%c0_265, %c0_266] : memref<4x1xf32, #tpu.memory_space<vmem>>, vector<4x1xf32>
    %410 = vector.broadcast %409 : vector<4x1xf32> to vector<4x256xf32>
    %411 = arith.addf %408, %410 : vector<4x256xf32>
    %c0_267 = arith.constant 0 : index
    %c0_268 = arith.constant 0 : index
    %c0_269 = arith.constant 0 : index
    %412 = vector.load %arg19[%c0_267, %c0_268, %c0_269] : memref<1x4x256xf32, #tpu.memory_space<vmem>>, vector<1x4x256xf32>
    %413 = vector.shape_cast %412 : vector<1x4x256xf32> to vector<4x256xf32>
    %414 = vector.shape_cast %411 : vector<4x256xf32> to vector<1x4x256xf32>
    tpu.vector_store %arg19[%c0_267, %c0_268, %c0_269], %414 {strides = array<i32>} : memref<1x4x256xf32, #tpu.memory_space<vmem>>, vector<1x4x256xf32>,
    return
  }
  func.func @transform_0(%arg0: i32) -> (i32, i32, i32) {
    %c0_i32 = arith.constant 0 : i32
    %c0_i32_0 = arith.constant 0 : i32
    %c0_i32_1 = arith.constant 0 : i32
    return %arg0, %c0_i32, %c0_i32_0 : i32, i32, i32
  }
  func.func @transform_1(%arg0: i32) -> (i32, i32, i32) {
    %c0_i32 = arith.constant 0 : i32
    %c0_i32_0 = arith.constant 0 : i32
    %c0_i32_1 = arith.constant 0 : i32
    %c0_i32_2 = arith.constant 0 : i32
    return %c0_i32, %c0_i32_0, %c0_i32_1 : i32, i32, i32
  }
  func.func @transform_2(%arg0: i32) -> (i32, i32, i32) {
    %c0_i32 = arith.constant 0 : i32
    %c0_i32_0 = arith.constant 0 : i32
    %c0_i32_1 = arith.constant 0 : i32
    %c0_i32_2 = arith.constant 0 : i32
    return %c0_i32, %c0_i32_0, %c0_i32_1 : i32, i32, i32
  }
  func.func @transform_3(%arg0: i32) -> (i32, i32) {
    %c0_i32 = arith.constant 0 : i32
    %c0_i32_0 = arith.constant 0 : i32
    %c0_i32_1 = arith.constant 0 : i32
    return %c0_i32, %c0_i32_0 : i32, i32
  }
  func.func @transform_4(%arg0: i32) -> (i32, i32) {
    %c0_i32 = arith.constant 0 : i32
    %c0_i32_0 = arith.constant 0 : i32
    %c0_i32_1 = arith.constant 0 : i32
    return %c0_i32, %c0_i32_0 : i32, i32
  }
  func.func @transform_5(%arg0: i32) -> (i32, i32) {
    %c0_i32 = arith.constant 0 : i32
    %c0_i32_0 = arith.constant 0 : i32
    %c0_i32_1 = arith.constant 0 : i32
    return %c0_i32, %c0_i32_0 : i32, i32
  }
  func.func @transform_6(%arg0: i32) -> (i32, i32, i32) {
    %c0_i32 = arith.constant 0 : i32
    %c0_i32_0 = arith.constant 0 : i32
    %c0_i32_1 = arith.constant 0 : i32
    %c0_i32_2 = arith.constant 0 : i32
    return %c0_i32, %c0_i32_0, %c0_i32_1 : i32, i32, i32
  }
  func.func @transform_7(%arg0: i32) -> (i32, i32) {
    %c0_i32 = arith.constant 0 : i32
    %c0_i32_0 = arith.constant 0 : i32
    %c0_i32_1 = arith.constant 0 : i32
    return %c0_i32, %c0_i32_0 : i32, i32
  }
  func.func @transform_8(%arg0: i32) -> (i32, i32) {
    %c0_i32 = arith.constant 0 : i32
    %c0_i32_0 = arith.constant 0 : i32
    %c0_i32_1 = arith.constant 0 : i32
    return %c0_i32, %c0_i32_0 : i32, i32
  }
  func.func @transform_9(%arg0: i32) -> (i32, i32) {
    %c0_i32 = arith.constant 0 : i32
    %c0_i32_0 = arith.constant 0 : i32
    %c0_i32_1 = arith.constant 0 : i32
    return %c0_i32, %c0_i32_0 : i32, i32
  }
  func.func @transform_10(%arg0: i32) -> (i32, i32) {
    %c0_i32 = arith.constant 0 : i32
    %c0_i32_0 = arith.constant 0 : i32
    %c0_i32_1 = arith.constant 0 : i32
    return %c0_i32, %c0_i32_0 : i32, i32
  }
  func.func @transform_11(%arg0: i32) -> (i32, i32) {
    %c0_i32 = arith.constant 0 : i32
    %c0_i32_0 = arith.constant 0 : i32
    %c0_i32_1 = arith.constant 0 : i32
    return %c0_i32, %c0_i32_0 : i32, i32
  }
  func.func @transform_12(%arg0: i32) -> (i32, i32, i32) {
    %c0_i32 = arith.constant 0 : i32
    %c0_i32_0 = arith.constant 0 : i32
    %c0_i32_1 = arith.constant 0 : i32
    %c0_i32_2 = arith.constant 0 : i32
    return %c0_i32, %c0_i32_0, %c0_i32_1 : i32, i32, i32
  }
  func.func @transform_13(%arg0: i32) -> (i32, i32) {
    %c0_i32 = arith.constant 0 : i32
    %c0_i32_0 = arith.constant 0 : i32
    %c0_i32_1 = arith.constant 0 : i32
    return %c0_i32, %c0_i32_0 : i32, i32
  }
  func.func @transform_14(%arg0: i32) -> (i32, i32) {
    %c0_i32 = arith.constant 0 : i32
    %c0_i32_0 = arith.constant 0 : i32
    %c0_i32_1 = arith.constant 0 : i32
    return %c0_i32, %c0_i32_0 : i32, i32
  }
  func.func @transform_15(%arg0: i32) -> (i32, i32) {
    %c0_i32 = arith.constant 0 : i32
    %c0_i32_0 = arith.constant 0 : i32
    %c0_i32_1 = arith.constant 0 : i32
    return %c0_i32, %c0_i32_0 : i32, i32
  }
  func.func @transform_16(%arg0: i32) -> (i32, i32, i32) {
    %c0_i32 = arith.constant 0 : i32
    %c0_i32_0 = arith.constant 0 : i32
    %c0_i32_1 = arith.constant 0 : i32
    %c0_i32_2 = arith.constant 0 : i32
    return %c0_i32, %c0_i32_0, %c0_i32_1 : i32, i32, i32
  }
  func.func @transform_17(%arg0: i32) -> (i32, i32) {
    %c0_i32 = arith.constant 0 : i32
    %c0_i32_0 = arith.constant 0 : i32
    %c0_i32_1 = arith.constant 0 : i32
    return %c0_i32, %c0_i32_0 : i32, i32
  }
  func.func @transform_18(%arg0: i32) -> (i32, i32, i32) {
    %c0_i32 = arith.constant 0 : i32
    %c0_i32_0 = arith.constant 0 : i32
    %c0_i32_1 = arith.constant 0 : i32
    return %arg0, %c0_i32, %c0_i32_0 : i32, i32, i32
  }
}

</mosaic_0001>

<llo_original>
// kernel: tpu_custom_call.1
$region0: #{tpu_custom_call.1}
  #allocation0 [shape = 'u32[]', space=smem, size = 0x4, offset = 0x4, fixed_abs, tag = 'smem constant byte address 0x4 - core index']
  #allocation1 [shape = 'u32[144,128]{1,0:T(1,128)}', space=vmem, size = 0x12000, scoped, tag = 'internal scratch']
  %s0 = inlined_call_operand.hbm [shape: f32[8,256], index: 0, kind: input, shape index: {}]
  %s1 = inlined_call_operand.hbm [shape: f32[8,256], index: 1, kind: output, shape index: {}]
  %s2 = sld [smem:[#allocation0]]
  $region18: #{tpu_custom_call.1} parent=0
    _
  %s4 = ssub.s32 1, %s2
  %s5 = scalar_select 0, %s4, %s2
  $region1: #{tpu_custom_call.1} parent=0
    #allocation2 [shape = 'u8[8192]{0}', space=vmem, size = 0x2000, scoped, tag = 'input window, operand 0, single buffered']
    #allocation3 [shape = 's32[1]{0}', space=sflag, size = 0x4, scoped, tag = 'scoped memory for tpu_custom_call.1']
    #allocation4 [shape = 's32[1]{0}', space=sflag, size = 0x4, scoped, tag = 'scoped memory for tpu_custom_call.1']
    #allocation5 [shape = 'u8[8192]{0}', space=vmem, size = 0x2000, scoped, tag = 'output window, operand 0, single buffered']
    %6 = vsyncpa [#allocation3], 0
    %7 = vsyncpa [#allocation4], 0
    // Predicated region
    $region2: #{tpu_custom_call.1} parent=1 // pred_check
      _
    $region3: #{tpu_custom_call.1} parent=1 // pred_check_branch
      %9 = sbr.rel (0) target = $region5
    $region4: #{tpu_custom_call.1} parent=1 // pred_region
      %s11 = ssub.s32 256, 256
      %12 = vsyncadd [#allocation3], %s11
      %s14 = sshll.u32 [#allocation2], 4
      %s15 = int_to_ptr.vmem [resolvable:$true] %s14
      %17 = dma.hbm_to_vmem [thread:$0]  %s0, 256, %s15, [#allocation3]
    $region5: #{tpu_custom_call.1} parent=1 // pred_fallthru
      _
    // Predicated region
    $region6: #{tpu_custom_call.1} parent=1 // pred_check
      _
    $region7: #{tpu_custom_call.1} parent=1 // pred_check_branch
      %19 = sbr.rel (0) target = $region9
    $region8: #{tpu_custom_call.1} parent=1 // pred_region
      %20 = dma.done [#allocation3], 256
    $region9: #{tpu_custom_call.1} parent=1 // pred_fallthru
      _
    %v21 = vld [vmem:[#allocation2] sm:$0xff]
    %v22 = vld [vmem:[#allocation2 + $0x8] sm:$0xff]
    %23 = vrot.lane.b32.xlu0 %v21, 1
    %v24 = vpop.permute.xlu0 %23
    %25 = vrot.lane.b32.xlu0 %v22, 1
    %v26 = vpop.permute.xlu0 %25
    %v27 = vlaneseq
    %v28 = vand.u32 %v27, 127
    %vm29 = vcmp.lt.s32.totalorder %v28, 1
    %v30 = vsel %vm29, %v24, %v26
    %v31 = vsel %vm29, %v26, %v24
    %32 = vst [vmem:[#allocation5] sm:$0xff] %v31
    %33 = vst [vmem:[#allocation5 + $0x8] sm:$0xff] %v30
    // Predicated region
    $region10: #{tpu_custom_call.1} parent=1 // pred_check
      _
    $region11: #{tpu_custom_call.1} parent=1 // pred_check_branch
      %35 = sbr.rel (0) target = $region13
    $region12: #{tpu_custom_call.1} parent=1 // pred_region
      %s37 = ssub.s32 256, 256
      %38 = vsyncadd [#allocation4], %s37
      %s40 = sshll.u32 [#allocation5], 4
      %s41 = int_to_ptr.vmem [resolvable:$true] %s40
      %43 = dma.vmem_to_hbm [thread:$0]  %s41, 256, %s1, [#allocation4]
    $region13: #{tpu_custom_call.1} parent=1 // pred_fallthru
      _
    // Predicated region
    $region14: #{tpu_custom_call.1} parent=1 // pred_check
      _
    $region15: #{tpu_custom_call.1} parent=1 // pred_check_branch
      %45 = sbr.rel (0) target = $region17
    $region16: #{tpu_custom_call.1} parent=1 // pred_region
      %46 = dma.done [#allocation4], 256
    $region17: #{tpu_custom_call.1} parent=1 // pred_fallthru
      _
    %47 = vsyncpa [#allocation3], 1
    %48 = vsyncpa [#allocation4], 1

// kernel: resnet_apply.1
$region0: #{resnet_apply.1}
  #allocation0 [shape = 'u32[]', space=smem, size = 0x4, offset = 0x4, fixed_abs, tag = 'smem constant byte address 0x4 - core index']
  #allocation1 [shape = 'u32[144,128]{1,0:T(1,128)}', space=vmem, size = 0x12000, scoped, tag = 'internal scratch']
  %s0 = inlined_call_operand.vmem [shape: f32[2,4,256], index: 0, kind: input, shape index: {}]
  %s1 = inlined_call_operand.vmem [shape: f32[9,1,256], index: 1, kind: input, shape index: {}]
  %s2 = inlined_call_operand.vmem [shape: f32[9,32,4], index: 2, kind: input, shape index: {}]
  %s3 = inlined_call_operand.vmem [shape: f32[32,1], index: 3, kind: input, shape index: {}]
  %s4 = inlined_call_operand.vmem [shape: f32[16,32], index: 4, kind: input, shape index: {}]
  %s5 = inlined_call_operand.vmem [shape: f32[16,1], index: 5, kind: input, shape index: {}]
  %s6 = inlined_call_operand.vmem [shape: f32[9,16,16], index: 6, kind: input, shape index: {}]
  %s7 = inlined_call_operand.vmem [shape: f32[16,1], index: 7, kind: input, shape index: {}]
  %s8 = inlined_call_operand.vmem [shape: f32[32,16], index: 8, kind: input, shape index: {}]
  %s9 = inlined_call_operand.vmem [shape: f32[32,1], index: 9, kind: input, shape index: {}]
  %s10 = inlined_call_operand.vmem [shape: f32[16,32], index: 10, kind: input, shape index: {}]
  %s11 = inlined_call_operand.vmem [shape: f32[16,1], index: 11, kind: input, shape index: {}]
  %s12 = inlined_call_operand.vmem [shape: f32[9,16,16], index: 12, kind: input, shape index: {}]
  %s13 = inlined_call_operand.vmem [shape: f32[16,1], index: 13, kind: input, shape index: {}]
  %s14 = inlined_call_operand.vmem [shape: f32[32,16], index: 14, kind: input, shape index: {}]
  %s15 = inlined_call_operand.vmem [shape: f32[32,1], index: 15, kind: input, shape index: {}]
  %s16 = inlined_call_operand.vmem [shape: f32[9,4,32], index: 16, kind: input, shape index: {}]
  %s17 = inlined_call_operand.vmem [shape: f32[4,1], index: 17, kind: input, shape index: {}]
  %s18 = inlined_call_operand.vmem [shape: f32[2,4,256], index: 18, kind: output, shape index: {}]
  %s19 = sld [smem:[#allocation0]]
  $region105: #{resnet_apply.1} parent=0
    _
  %s21 = ssub.s32 1, %s19
  %s22 = scalar_select 0, %s21, %s19
  loop: start=0, step=1, limit=4
  $region2: #{resnet_apply.1} parent=0 // loop_pre_header
    _
  $region3: #{resnet_apply.1} parent=0 // loop_header
    %s24 = sphi 0, %s28
    %p25 = scmp.ge.s32.totalorder %s24, 4
    %s34 = sphi 0, %s36
    %s37 = sphi 0, %s34
    %s38 = sphi 0, %s37
    %s54 = sphi 0, %s38
    %s58 = sphi 0, %s58
    %s60 = sphi 0, %s58
    %s61 = sphi 0, %s60
    %s75 = sphi 0, %s61
    %s79 = sphi 0, %s79
    %s81 = sphi 0, %s79
    %s82 = sphi 0, %s81
    %s96 = sphi 0, %s82
    %s100 = sphi 0, %s100
    %s102 = sphi 0, %s100
    %s103 = sphi 0, %s102
    %s117 = sphi 0, %s103
    %s121 = sphi 0, %s121
    %s123 = sphi 0, %s121
    %s124 = sphi 0, %s123
    %s138 = sphi 0, %s124
    %s142 = sphi 0, %s142
    %s144 = sphi 0, %s142
    %s145 = sphi 0, %s144
    %s159 = sphi 0, %s145
    %s163 = sphi 0, %s163
    %s165 = sphi 0, %s163
    %s166 = sphi 0, %s165
    %s180 = sphi 0, %s166
    %s184 = sphi 0, %s184
    %s186 = sphi 0, %s184
    %s187 = sphi 0, %s186
    %s201 = sphi 0, %s187
    %s205 = sphi 0, %s205
    %s207 = sphi 0, %s205
    %s208 = sphi 0, %s207
    %s222 = sphi 0, %s208
    %s226 = sphi 0, %s226
    %s228 = sphi 0, %s226
    %s229 = sphi 0, %s228
    %s243 = sphi 0, %s229
    %s247 = sphi 0, %s247
    %s249 = sphi 0, %s247
    %s250 = sphi 0, %s249
    %s264 = sphi 0, %s250
    %s268 = sphi 0, %s268
    %s270 = sphi 0, %s268
    %s271 = sphi 0, %s270
    %s285 = sphi 0, %s271
    %s289 = sphi 0, %s289
    %s291 = sphi 0, %s289
    %s292 = sphi 0, %s291
    %s306 = sphi 0, %s292
    %s310 = sphi 0, %s310
    %s312 = sphi 0, %s310
    %s313 = sphi 0, %s312
    %s327 = sphi 0, %s313
    %s331 = sphi 0, %s331
    %s333 = sphi 0, %s331
    %s334 = sphi 0, %s333
    %s348 = sphi 0, %s334
    %s352 = sphi 0, %s352
    %s354 = sphi 0, %s352
    %s355 = sphi 0, %s354
    %s369 = sphi 0, %s355
    %s373 = sphi 0, %s373
    %s375 = sphi 0, %s373
    %s376 = sphi 0, %s375
    %s390 = sphi 0, %s376
    %s394 = sphi 0, %s394
    %s396 = sphi 0, %s394
    %s397 = sphi 0, %s396
    %s411 = sphi 0, %s397
    %s417 = sphi 0, %s419
    %s420 = sphi 0, %s417
    %s421 = sphi 0, %s420
    %s437 = sphi 0, %s421
  $region4: #{resnet_apply.1} parent=0 // loop_header_branch
    %27 = sbr.rel (%p25) target = $region8
  $region5: #{resnet_apply.1} parent=0 // loop_body
    %s29 = ssub.s32 %s24, 1
    %s30 = ssub.s32 %s24, 2
    %s31 = sadd.s32 %s24, 1
    %s32 = ssub.s32 %s24, %s31
    %p33 = scmp.eq.s32.totalorder %s32, 0
    %s35 = sadd.s32 %s34, 1
    %s36 = scalar_select %p33, %s34, %s35
    %p39 = pneg %p33
    %p40 = scmp.eq.s32.totalorder %s24, 1
    %p41 = por %p39, %p40
    %p42 = scmp.ne.s32.totalorder %s34, %s37
    %p43 = scmp.eq.s32.totalorder %s24, 0
    %p44 = por %p42, %p43
    %p45 = scmp.ne.s32.totalorder %s34, %s37
    %p46 = scmp.eq.s32.totalorder %s29, 1
    %p47 = por %p45, %p46
    %p48 = scmp.ne.s32.totalorder %s37, %s38
    %p49 = scmp.eq.s32.totalorder %s29, 0
    %p50 = por %p48, %p49
    %p51 = scmp.ne.s32.totalorder %s37, %s38
    %p52 = scmp.eq.s32.totalorder %s30, 1
    %p53 = por %p51, %p52
    %p55 = scmp.ne.s32.totalorder %s38, %s54
    %p56 = scmp.eq.s32.totalorder %s30, 0
    %p57 = por %p55, %p56
    %s59 = sadd.s32 %s58, 1
    %p62 = scmp.eq.s32.totalorder %s24, 1
    %p63 = scmp.ne.s32.totalorder %s58, %s60
    %p64 = scmp.eq.s32.totalorder %s24, 0
    %p65 = por %p63, %p64
    %p66 = scmp.ne.s32.totalorder %s58, %s60
    %p67 = scmp.eq.s32.totalorder %s29, 1
    %p68 = por %p66, %p67
    %p69 = scmp.ne.s32.totalorder %s60, %s61
    %p70 = scmp.eq.s32.totalorder %s29, 0
    %p71 = por %p69, %p70
    %p72 = scmp.ne.s32.totalorder %s60, %s61
    %p73 = scmp.eq.s32.totalorder %s30, 1
    %p74 = por %p72, %p73
    %p76 = scmp.ne.s32.totalorder %s61, %s75
    %p77 = scmp.eq.s32.totalorder %s30, 0
    %p78 = por %p76, %p77
    %s80 = sadd.s32 %s79, 1
    %p83 = scmp.eq.s32.totalorder %s24, 1
    %p84 = scmp.ne.s32.totalorder %s79, %s81
    %p85 = scmp.eq.s32.totalorder %s24, 0
    %p86 = por %p84, %p85
    %p87 = scmp.ne.s32.totalorder %s79, %s81
    %p88 = scmp.eq.s32.totalorder %s29, 1
    %p89 = por %p87, %p88
    %p90 = scmp.ne.s32.totalorder %s81, %s82
    %p91 = scmp.eq.s32.totalorder %s29, 0
    %p92 = por %p90, %p91
    %p93 = scmp.ne.s32.totalorder %s81, %s82
    %p94 = scmp.eq.s32.totalorder %s30, 1
    %p95 = por %p93, %p94
    %p97 = scmp.ne.s32.totalorder %s82, %s96
    %p98 = scmp.eq.s32.totalorder %s30, 0
    %p99 = por %p97, %p98
    %s101 = sadd.s32 %s100, 1
    %p104 = scmp.eq.s32.totalorder %s24, 1
    %p105 = scmp.ne.s32.totalorder %s100, %s102
    %p106 = scmp.eq.s32.totalorder %s24, 0
    %p107 = por %p105, %p106
    %p108 = scmp.ne.s32.totalorder %s100, %s102
    %p109 = scmp.eq.s32.totalorder %s29, 1
    %p110 = por %p108, %p109
    %p111 = scmp.ne.s32.totalorder %s102, %s103
    %p112 = scmp.eq.s32.totalorder %s29, 0
    %p113 = por %p111, %p112
    %p114 = scmp.ne.s32.totalorder %s102, %s103
    %p115 = scmp.eq.s32.totalorder %s30, 1
    %p116 = por %p114, %p115
    %p118 = scmp.ne.s32.totalorder %s103, %s117
    %p119 = scmp.eq.s32.totalorder %s30, 0
    %p120 = por %p118, %p119
    %s122 = sadd.s32 %s121, 1
    %p125 = scmp.eq.s32.totalorder %s24, 1
    %p126 = scmp.ne.s32.totalorder %s121, %s123
    %p127 = scmp.eq.s32.totalorder %s24, 0
    %p128 = por %p126, %p127
    %p129 = scmp.ne.s32.totalorder %s121, %s123
    %p130 = scmp.eq.s32.totalorder %s29, 1
    %p131 = por %p129, %p130
    %p132 = scmp.ne.s32.totalorder %s123, %s124
    %p133 = scmp.eq.s32.totalorder %s29, 0
    %p134 = por %p132, %p133
    %p135 = scmp.ne.s32.totalorder %s123, %s124
    %p136 = scmp.eq.s32.totalorder %s30, 1
    %p137 = por %p135, %p136
    %p139 = scmp.ne.s32.totalorder %s124, %s138
    %p140 = scmp.eq.s32.totalorder %s30, 0
    %p141 = por %p139, %p140
    %s143 = sadd.s32 %s142, 1
    %p146 = scmp.eq.s32.totalorder %s24, 1
    %p147 = scmp.ne.s32.totalorder %s142, %s144
    %p148 = scmp.eq.s32.totalorder %s24, 0
    %p149 = por %p147, %p148
    %p150 = scmp.ne.s32.totalorder %s142, %s144
    %p151 = scmp.eq.s32.totalorder %s29, 1
    %p152 = por %p150, %p151
    %p153 = scmp.ne.s32.totalorder %s144, %s145
    %p154 = scmp.eq.s32.totalorder %s29, 0
    %p155 = por %p153, %p154
    %p156 = scmp.ne.s32.totalorder %s144, %s145
    %p157 = scmp.eq.s32.totalorder %s30, 1
    %p158 = por %p156, %p157
    %p160 = scmp.ne.s32.totalorder %s145, %s159
    %p161 = scmp.eq.s32.totalorder %s30, 0
    %p162 = por %p160, %p161
    %s164 = sadd.s32 %s163, 1
    %p167 = scmp.eq.s32.totalorder %s24, 1
    %p168 = scmp.ne.s32.totalorder %s163, %s165
    %p169 = scmp.eq.s32.totalorder %s24, 0
    %p170 = por %p168, %p169
    %p171 = scmp.ne.s32.totalorder %s163, %s165
    %p172 = scmp.eq.s32.totalorder %s29, 1
    %p173 = por %p171, %p172
    %p174 = scmp.ne.s32.totalorder %s165, %s166
    %p175 = scmp.eq.s32.totalorder %s29, 0
    %p176 = por %p174, %p175
    %p177 = scmp.ne.s32.totalorder %s165, %s166
    %p178 = scmp.eq.s32.totalorder %s30, 1
    %p179 = por %p177, %p178
    %p181 = scmp.ne.s32.totalorder %s166, %s180
    %p182 = scmp.eq.s32.totalorder %s30, 0
    %p183 = por %p181, %p182
    %s185 = sadd.s32 %s184, 1
    %p188 = scmp.eq.s32.totalorder %s24, 1
    %p189 = scmp.ne.s32.totalorder %s184, %s186
    %p190 = scmp.eq.s32.totalorder %s24, 0
    %p191 = por %p189, %p190
    %p192 = scmp.ne.s32.totalorder %s184, %s186
    %p193 = scmp.eq.s32.totalorder %s29, 1
    %p194 = por %p192, %p193
    %p195 = scmp.ne.s32.totalorder %s186, %s187
    %p196 = scmp.eq.s32.totalorder %s29, 0
    %p197 = por %p195, %p196
    %p198 = scmp.ne.s32.totalorder %s186, %s187
    %p199 = scmp.eq.s32.totalorder %s30, 1
    %p200 = por %p198, %p199
    %p202 = scmp.ne.s32.totalorder %s187, %s201
    %p203 = scmp.eq.s32.totalorder %s30, 0
    %p204 = por %p202, %p203
    %s206 = sadd.s32 %s205, 1
    %p209 = scmp.eq.s32.totalorder %s24, 1
    %p210 = scmp.ne.s32.totalorder %s205, %s207
    %p211 = scmp.eq.s32.totalorder %s24, 0
    %p212 = por %p210, %p211
    %p213 = scmp.ne.s32.totalorder %s205, %s207
    %p214 = scmp.eq.s32.totalorder %s29, 1
    %p215 = por %p213, %p214
    %p216 = scmp.ne.s32.totalorder %s207, %s208
    %p217 = scmp.eq.s32.totalorder %s29, 0
    %p218 = por %p216, %p217
    %p219 = scmp.ne.s32.totalorder %s207, %s208
    %p220 = scmp.eq.s32.totalorder %s30, 1
    %p221 = por %p219, %p220
    %p223 = scmp.ne.s32.totalorder %s208, %s222
    %p224 = scmp.eq.s32.totalorder %s30, 0
    %p225 = por %p223, %p224
    %s227 = sadd.s32 %s226, 1
    %p230 = scmp.eq.s32.totalorder %s24, 1
    %p231 = scmp.ne.s32.totalorder %s226, %s228
    %p232 = scmp.eq.s32.totalorder %s24, 0
    %p233 = por %p231, %p232
    %p234 = scmp.ne.s32.totalorder %s226, %s228
    %p235 = scmp.eq.s32.totalorder %s29, 1
    %p236 = por %p234, %p235
    %p237 = scmp.ne.s32.totalorder %s228, %s229
    %p238 = scmp.eq.s32.totalorder %s29, 0
    %p239 = por %p237, %p238
    %p240 = scmp.ne.s32.totalorder %s228, %s229
    %p241 = scmp.eq.s32.totalorder %s30, 1
    %p242 = por %p240, %p241
    %p244 = scmp.ne.s32.totalorder %s229, %s243
    %p245 = scmp.eq.s32.totalorder %s30, 0
    %p246 = por %p244, %p245
    %s248 = sadd.s32 %s247, 1
    %p251 = scmp.eq.s32.totalorder %s24, 1
    %p252 = scmp.ne.s32.totalorder %s247, %s249
    %p253 = scmp.eq.s32.totalorder %s24, 0
    %p254 = por %p252, %p253
    %p255 = scmp.ne.s32.totalorder %s247, %s249
    %p256 = scmp.eq.s32.totalorder %s29, 1
    %p257 = por %p255, %p256
    %p258 = scmp.ne.s32.totalorder %s249, %s250
    %p259 = scmp.eq.s32.totalorder %s29, 0
    %p260 = por %p258, %p259
    %p261 = scmp.ne.s32.totalorder %s249, %s250
    %p262 = scmp.eq.s32.totalorder %s30, 1
    %p263 = por %p261, %p262
    %p265 = scmp.ne.s32.totalorder %s250, %s264
    %p266 = scmp.eq.s32.totalorder %s30, 0
    %p267 = por %p265, %p266
    %s269 = sadd.s32 %s268, 1
    %p272 = scmp.eq.s32.totalorder %s24, 1
    %p273 = scmp.ne.s32.totalorder %s268, %s270
    %p274 = scmp.eq.s32.totalorder %s24, 0
    %p275 = por %p273, %p274
    %p276 = scmp.ne.s32.totalorder %s268, %s270
    %p277 = scmp.eq.s32.totalorder %s29, 1
    %p278 = por %p276, %p277
    %p279 = scmp.ne.s32.totalorder %s270, %s271
    %p280 = scmp.eq.s32.totalorder %s29, 0
    %p281 = por %p279, %p280
    %p282 = scmp.ne.s32.totalorder %s270, %s271
    %p283 = scmp.eq.s32.totalorder %s30, 1
    %p284 = por %p282, %p283
    %p286 = scmp.ne.s32.totalorder %s271, %s285
    %p287 = scmp.eq.s32.totalorder %s30, 0
    %p288 = por %p286, %p287
    %s290 = sadd.s32 %s289, 1
    %p293 = scmp.eq.s32.totalorder %s24, 1
    %p294 = scmp.ne.s32.totalorder %s289, %s291
    %p295 = scmp.eq.s32.totalorder %s24, 0
    %p296 = por %p294, %p295
    %p297 = scmp.ne.s32.totalorder %s289, %s291
    %p298 = scmp.eq.s32.totalorder %s29, 1
    %p299 = por %p297, %p298
    %p300 = scmp.ne.s32.totalorder %s291, %s292
    %p301 = scmp.eq.s32.totalorder %s29, 0
    %p302 = por %p300, %p301
    %p303 = scmp.ne.s32.totalorder %s291, %s292
    %p304 = scmp.eq.s32.totalorder %s30, 1
    %p305 = por %p303, %p304
    %p307 = scmp.ne.s32.totalorder %s292, %s306
    %p308 = scmp.eq.s32.totalorder %s30, 0
    %p309 = por %p307, %p308
    %s311 = sadd.s32 %s310, 1
    %p314 = scmp.eq.s32.totalorder %s24, 1
    %p315 = scmp.ne.s32.totalorder %s310, %s312
    %p316 = scmp.eq.s32.totalorder %s24, 0
    %p317 = por %p315, %p316
    %p318 = scmp.ne.s32.totalorder %s310, %s312
    %p319 = scmp.eq.s32.totalorder %s29, 1
    %p320 = por %p318, %p319
    %p321 = scmp.ne.s32.totalorder %s312, %s313
    %p322 = scmp.eq.s32.totalorder %s29, 0
    %p323 = por %p321, %p322
    %p324 = scmp.ne.s32.totalorder %s312, %s313
    %p325 = scmp.eq.s32.totalorder %s30, 1
    %p326 = por %p324, %p325
    %p328 = scmp.ne.s32.totalorder %s313, %s327
    %p329 = scmp.eq.s32.totalorder %s30, 0
    %p330 = por %p328, %p329
    %s332 = sadd.s32 %s331, 1
    %p335 = scmp.eq.s32.totalorder %s24, 1
    %p336 = scmp.ne.s32.totalorder %s331, %s333
    %p337 = scmp.eq.s32.totalorder %s24, 0
    %p338 = por %p336, %p337
    %p339 = scmp.ne.s32.totalorder %s331, %s333
    %p340 = scmp.eq.s32.totalorder %s29, 1
    %p341 = por %p339, %p340
    %p342 = scmp.ne.s32.totalorder %s333, %s334
    %p343 = scmp.eq.s32.totalorder %s29, 0
    %p344 = por %p342, %p343
    %p345 = scmp.ne.s32.totalorder %s333, %s334
    %p346 = scmp.eq.s32.totalorder %s30, 1
    %p347 = por %p345, %p346
    %p349 = scmp.ne.s32.totalorder %s334, %s348
    %p350 = scmp.eq.s32.totalorder %s30, 0
    %p351 = por %p349, %p350
    %s353 = sadd.s32 %s352, 1
    %p356 = scmp.eq.s32.totalorder %s24, 1
    %p357 = scmp.ne.s32.totalorder %s352, %s354
    %p358 = scmp.eq.s32.totalorder %s24, 0
    %p359 = por %p357, %p358
    %p360 = scmp.ne.s32.totalorder %s352, %s354
    %p361 = scmp.eq.s32.totalorder %s29, 1
    %p362 = por %p360, %p361
    %p363 = scmp.ne.s32.totalorder %s354, %s355
    %p364 = scmp.eq.s32.totalorder %s29, 0
    %p365 = por %p363, %p364
    %p366 = scmp.ne.s32.totalorder %s354, %s355
    %p367 = scmp.eq.s32.totalorder %s30, 1
    %p368 = por %p366, %p367
    %p370 = scmp.ne.s32.totalorder %s355, %s369
    %p371 = scmp.eq.s32.totalorder %s30, 0
    %p372 = por %p370, %p371
    %s374 = sadd.s32 %s373, 1
    %p377 = scmp.eq.s32.totalorder %s24, 1
    %p378 = scmp.ne.s32.totalorder %s373, %s375
    %p379 = scmp.eq.s32.totalorder %s24, 0
    %p380 = por %p378, %p379
    %p381 = scmp.ne.s32.totalorder %s373, %s375
    %p382 = scmp.eq.s32.totalorder %s29, 1
    %p383 = por %p381, %p382
    %p384 = scmp.ne.s32.totalorder %s375, %s376
    %p385 = scmp.eq.s32.totalorder %s29, 0
    %p386 = por %p384, %p385
    %p387 = scmp.ne.s32.totalorder %s375, %s376
    %p388 = scmp.eq.s32.totalorder %s30, 1
    %p389 = por %p387, %p388
    %p391 = scmp.ne.s32.totalorder %s376, %s390
    %p392 = scmp.eq.s32.totalorder %s30, 0
    %p393 = por %p391, %p392
    %s395 = sadd.s32 %s394, 1
    %p398 = scmp.eq.s32.totalorder %s24, 1
    %p399 = scmp.ne.s32.totalorder %s394, %s396
    %p400 = scmp.eq.s32.totalorder %s24, 0
    %p401 = por %p399, %p400
    %p402 = scmp.ne.s32.totalorder %s394, %s396
    %p403 = scmp.eq.s32.totalorder %s29, 1
    %p404 = por %p402, %p403
    %p405 = scmp.ne.s32.totalorder %s396, %s397
    %p406 = scmp.eq.s32.totalorder %s29, 0
    %p407 = por %p405, %p406
    %p408 = scmp.ne.s32.totalorder %s396, %s397
    %p409 = scmp.eq.s32.totalorder %s30, 1
    %p410 = por %p408, %p409
    %p412 = scmp.ne.s32.totalorder %s397, %s411
    %p413 = scmp.eq.s32.totalorder %s30, 0
    %p414 = por %p412, %p413
    %s415 = ssub.s32 %s24, %s31
    %p416 = scmp.eq.s32.totalorder %s415, 0
    %s418 = sadd.s32 %s417, 1
    %s419 = scalar_select %p416, %s417, %s418
    %p422 = pneg %p416
    %p423 = scmp.eq.s32.totalorder %s24, 1
    %p424 = por %p422, %p423
    %p425 = scmp.ne.s32.totalorder %s417, %s420
    %p426 = scmp.eq.s32.totalorder %s24, 0
    %p427 = por %p425, %p426
    %p428 = scmp.ne.s32.totalorder %s417, %s420
    %p429 = scmp.eq.s32.totalorder %s29, 1
    %p430 = por %p428, %p429
    %p431 = scmp.ne.s32.totalorder %s420, %s421
    %p432 = scmp.eq.s32.totalorder %s29, 0
    %p433 = por %p431, %p432
    %p434 = scmp.ne.s32.totalorder %s420, %s421
    %p435 = scmp.eq.s32.totalorder %s30, 1
    %p436 = por %p434, %p435
    %p438 = scmp.ne.s32.totalorder %s421, %s437
    %p439 = scmp.eq.s32.totalorder %s30, 0
    %p440 = por %p438, %p439
    %p441 = scmp.le.s32.totalorder 1, %s24
    %p442 = scmp.lt.s32.totalorder %s24, 3
    %p443 = pnand %p441, %p442
    %p444 = pneg %p443
    // Predicated region
    $region9: #{resnet_apply.1} parent=5 // pred_check
      _
    $region10: #{resnet_apply.1} parent=5 // pred_check_branch
      %446 = sbr.rel (%p443) target = $region12
    $region11: #{resnet_apply.1} parent=5 // pred_region
      %s447 = ssub.s32 %s24, 1
      // Predicated region
      $region13: #{resnet_apply.1} parent=11 // pred_check
        %p448 = pneg %p71
      $region14: #{resnet_apply.1} parent=11 // pred_check_branch
        %450 = sbr.rel (%p448) target = $region16
      $region15: #{resnet_apply.1} parent=11 // pred_region
        _
      $region16: #{resnet_apply.1} parent=11 // pred_fallthru
        _
      // Predicated region
      $region17: #{resnet_apply.1} parent=11 // pred_check
        %p451 = pneg %p92
      $region18: #{resnet_apply.1} parent=11 // pred_check_branch
        %453 = sbr.rel (%p451) target = $region20
      $region19: #{resnet_apply.1} parent=11 // pred_region
        _
      $region20: #{resnet_apply.1} parent=11 // pred_fallthru
        _
      // Predicated region
      $region21: #{resnet_apply.1} parent=11 // pred_check
        %p454 = pneg %p113
      $region22: #{resnet_apply.1} parent=11 // pred_check_branch
        %456 = sbr.rel (%p454) target = $region24
      $region23: #{resnet_apply.1} parent=11 // pred_region
        _
      $region24: #{resnet_apply.1} parent=11 // pred_fallthru
        _
      // Predicated region
      $region25: #{resnet_apply.1} parent=11 // pred_check
        %p457 = pneg %p134
      $region26: #{resnet_apply.1} parent=11 // pred_check_branch
        %459 = sbr.rel (%p457) target = $region28
      $region27: #{resnet_apply.1} parent=11 // pred_region
        _
      $region28: #{resnet_apply.1} parent=11 // pred_fallthru
        _
      // Predicated region
      $region29: #{resnet_apply.1} parent=11 // pred_check
        %p460 = pneg %p155
      $region30: #{resnet_apply.1} parent=11 // pred_check_branch
        %462 = sbr.rel (%p460) target = $region32
      $region31: #{resnet_apply.1} parent=11 // pred_region
        _
      $region32: #{resnet_apply.1} parent=11 // pred_fallthru
        _
      // Predicated region
      $region33: #{resnet_apply.1} parent=11 // pred_check
        %p463 = pneg %p176
      $region34: #{resnet_apply.1} parent=11 // pred_check_branch
        %465 = sbr.rel (%p463) target = $region36
      $region35: #{resnet_apply.1} parent=11 // pred_region
        _
      $region36: #{resnet_apply.1} parent=11 // pred_fallthru
        _
      // Predicated region
      $region37: #{resnet_apply.1} parent=11 // pred_check
        %p466 = pneg %p197
      $region38: #{resnet_apply.1} parent=11 // pred_check_branch
        %468 = sbr.rel (%p466) target = $region40
      $region39: #{resnet_apply.1} parent=11 // pred_region
        _
      $region40: #{resnet_apply.1} parent=11 // pred_fallthru
        _
      // Predicated region
      $region41: #{resnet_apply.1} parent=11 // pred_check
        %p469 = pneg %p218
      $region42: #{resnet_apply.1} parent=11 // pred_check_branch
        %471 = sbr.rel (%p469) target = $region44
      $region43: #{resnet_apply.1} parent=11 // pred_region
        _
      $region44: #{resnet_apply.1} parent=11 // pred_fallthru
        _
      // Predicated region
      $region45: #{resnet_apply.1} parent=11 // pred_check
        %p472 = pneg %p239
      $region46: #{resnet_apply.1} parent=11 // pred_check_branch
        %474 = sbr.rel (%p472) target = $region48
      $region47: #{resnet_apply.1} parent=11 // pred_region
        _
      $region48: #{resnet_apply.1} parent=11 // pred_fallthru
        _
      // Predicated region
      $region49: #{resnet_apply.1} parent=11 // pred_check
        %p475 = pneg %p260
      $region50: #{resnet_apply.1} parent=11 // pred_check_branch
        %477 = sbr.rel (%p475) target = $region52
      $region51: #{resnet_apply.1} parent=11 // pred_region
        _
      $region52: #{resnet_apply.1} parent=11 // pred_fallthru
        _
      // Predicated region
      $region53: #{resnet_apply.1} parent=11 // pred_check
        %p478 = pneg %p281
      $region54: #{resnet_apply.1} parent=11 // pred_check_branch
        %480 = sbr.rel (%p478) target = $region56
      $region55: #{resnet_apply.1} parent=11 // pred_region
        _
      $region56: #{resnet_apply.1} parent=11 // pred_fallthru
        _
      // Predicated region
      $region57: #{resnet_apply.1} parent=11 // pred_check
        %p481 = pneg %p302
      $region58: #{resnet_apply.1} parent=11 // pred_check_branch
        %483 = sbr.rel (%p481) target = $region60
      $region59: #{resnet_apply.1} parent=11 // pred_region
        _
      $region60: #{resnet_apply.1} parent=11 // pred_fallthru
        _
      // Predicated region
      $region61: #{resnet_apply.1} parent=11 // pred_check
        %p484 = pneg %p323
      $region62: #{resnet_apply.1} parent=11 // pred_check_branch
        %486 = sbr.rel (%p484) target = $region64
      $region63: #{resnet_apply.1} parent=11 // pred_region
        _
      $region64: #{resnet_apply.1} parent=11 // pred_fallthru
        _
      // Predicated region
      $region65: #{resnet_apply.1} parent=11 // pred_check
        %p487 = pneg %p344
      $region66: #{resnet_apply.1} parent=11 // pred_check_branch
        %489 = sbr.rel (%p487) target = $region68
      $region67: #{resnet_apply.1} parent=11 // pred_region
        _
      $region68: #{resnet_apply.1} parent=11 // pred_fallthru
        _
      // Predicated region
      $region69: #{resnet_apply.1} parent=11 // pred_check
        %p490 = pneg %p365
      $region70: #{resnet_apply.1} parent=11 // pred_check_branch
        %492 = sbr.rel (%p490) target = $region72
      $region71: #{resnet_apply.1} parent=11 // pred_region
        _
      $region72: #{resnet_apply.1} parent=11 // pred_fallthru
        _
      // Predicated region
      $region73: #{resnet_apply.1} parent=11 // pred_check
        %p493 = pneg %p386
      $region74: #{resnet_apply.1} parent=11 // pred_check_branch
        %495 = sbr.rel (%p493) target = $region76
      $region75: #{resnet_apply.1} parent=11 // pred_region
        _
      $region76: #{resnet_apply.1} parent=11 // pred_fallthru
        _
      // Predicated region
      $region77: #{resnet_apply.1} parent=11 // pred_check
        %p496 = pneg %p407
      $region78: #{resnet_apply.1} parent=11 // pred_check_branch
        %498 = sbr.rel (%p496) target = $region80
      $region79: #{resnet_apply.1} parent=11 // pred_region
        _
      $region80: #{resnet_apply.1} parent=11 // pred_fallthru
        _
    $region12: #{resnet_apply.1} parent=5 // pred_fallthru
      _
    %p499 = scmp.lt.s32.totalorder %s24, 2
    // Predicated region
    $region81: #{resnet_apply.1} parent=5 // pred_check
      %p500 = pneg %p499
    $region82: #{resnet_apply.1} parent=5 // pred_check_branch
      %502 = sbr.rel (%p500) target = $region84
    $region83: #{resnet_apply.1} parent=5 // pred_region
      // Predicated region
      $region85: #{resnet_apply.1} parent=83 // pred_check
        %p503 = pneg %p44
      $region86: #{resnet_apply.1} parent=83 // pred_check_branch
        %505 = sbr.rel (%p503) target = $region88
      $region87: #{resnet_apply.1} parent=83 // pred_region
        %p506 = scmp.lt.s32.totalorder %s24, 1
        %s507 = scalar_select %p506, %s24, 1
        %s508 = smul.addr %s507, 2
        %s509 = smul.addr %s508, 4
        %s510 = scalar_lea.vmem %s0, %s509
      $region88: #{resnet_apply.1} parent=83 // pred_fallthru
        _
    $region84: #{resnet_apply.1} parent=5 // pred_fallthru
      _
    %p511 = scmp.le.s32.totalorder 1, %s24
    %p512 = scmp.lt.s32.totalorder %s24, 3
    %p513 = pnand %p511, %p512
    %p514 = pneg %p513
    // Predicated region
    $region89: #{resnet_apply.1} parent=5 // pred_check
      _
    $region90: #{resnet_apply.1} parent=5 // pred_check_branch
      %516 = sbr.rel (%p513) target = $region92
    $region91: #{resnet_apply.1} parent=5 // pred_region
      %s517 = ssub.s32 %s24, 1
      %p518 = scmp.lt.s32.totalorder %s29, 1
      %s519 = scalar_select %p518, %s29, 1
      %s520 = smul.addr %s519, 2
      %s521 = smul.addr %s520, 4
      %s522 = scalar_lea.vmem %s0, %s521
      %p523 = pneg %p50
      %p524 = pneg %p47
      %p525 = pneg %p71
      %p526 = pneg %p68
      %p527 = pneg %p92
      %p528 = pneg %p89
      %p529 = pneg %p113
      %p530 = pneg %p110
      %p531 = pneg %p134
      %p532 = pneg %p131
      %p533 = pneg %p155
      %p534 = pneg %p152
      %p535 = pneg %p176
      %p536 = pneg %p173
      %p537 = pneg %p197
      %p538 = pneg %p194
      %p539 = pneg %p218
      %p540 = pneg %p215
      %p541 = pneg %p239
      %p542 = pneg %p236
      %p543 = pneg %p260
      %p544 = pneg %p257
      %p545 = pneg %p281
      %p546 = pneg %p278
      %p547 = pneg %p302
      %p548 = pneg %p299
      %p549 = pneg %p323
      %p550 = pneg %p320
      %p551 = pneg %p344
      %p552 = pneg %p341
      %p553 = pneg %p365
      %p554 = pneg %p362
      %p555 = pneg %p386
      %p556 = pneg %p383
      %p557 = pneg %p407
      %p558 = pneg %p404
      %p559 = pneg %p433
      %p560 = pneg %p430
      %p561 = scmp.lt.s32.totalorder %s29, 1
      %s562 = scalar_select %p561, %s29, 1
      %s563 = smul.addr %s562, 2
      %s564 = smul.addr %s563, 4
      %s565 = scalar_lea.vmem %s18, %s564
      %p566 = scmp.lt.s32.totalorder %s29, 1
      %s567 = scalar_select %p566, %s29, 1
      %s568 = smul.addr %s567, 2
      %s569 = smul.addr %s568, 4
      %s570 = scalar_lea.vmem %s0, %s569
      %p571 = scmp.lt.s32.totalorder %s29, 1
      %s572 = scalar_select %p571, %s29, 1
      %s573 = smul.addr %s572, 2
      %s574 = smul.addr %s573, 4
      %s575 = scalar_lea.vmem %s18, %s574
      %v576 = vld [vmem:[%s570] sm:$0xff]
      %v578 = vcombine.high %v576, %v576
      %579 = vrot.lane.b32.xlu0 %v578, 17
      %v580 = vpop.permute.xlu0 %579
      %582 = vrot.lane.b32.xlu0 %v576, 17
      %v583 = vpop.permute.xlu0 %582
      %vm584 = vcmask 138240
      %v585 = vsel %vm584, %v583, %v580
      %v588 = vsel %vm584, %v580, %v583
      %v589 = vld [vmem:[%s1] sm:$0x3]
      %v591 = vlaneseq
      %v592 = vshrl.u32 %v591, 7
      %v593 = vsub.s32 0, %v592
      %v594 = vrot.slane %v589, %v593
      %v595 = vlaneseq
      %v596 = vshrl.u32 %v595, 7
      %v597 = vsub.s32 1, %v596
      %v598 = vrot.slane %v589, %v597
      %v601 = vmul.f32 %v588, %v594
      %v602 = vmul.f32 %v585, %v598
      %v603 = vld [vmem:[%s2] sm:$0xff]
      %v604 = vld [vmem:[%s2 + $0x8] sm:$0xff]
      %v605 = vld [vmem:[%s2 + $0x10] sm:$0xff]
      %v606 = vld [vmem:[%s2 + $0x18] sm:$0xff]
      %607 = vrot.lane.b32.xlu0 %v578, 16
      %v608 = vpop.permute.xlu0 %607
      %610 = vrot.lane.b32.xlu0 %v576, 16
      %v611 = vpop.permute.xlu0 %610
      %vm612 = vcmask 130048
      %v613 = vsel %vm612, %v611, %v608
      %v616 = vsel %vm612, %v608, %v611
      %s617 = scalar_lea.vmem %s1, 2
      %v618 = vld [vmem:[%s617] sm:$0x3]
      %v620 = vlaneseq
      %v621 = vshrl.u32 %v620, 7
      %v622 = vsub.s32 0, %v621
      %v623 = vrot.slane %v618, %v622
      %v624 = vlaneseq
      %v625 = vshrl.u32 %v624, 7
      %v626 = vsub.s32 1, %v625
      %v627 = vrot.slane %v618, %v626
      %v630 = vmul.f32 %v616, %v623
      %v631 = vmul.f32 %v613, %v627
      %s632 = scalar_lea.vmem %s2, 32
      %v633 = vld [vmem:[%s632] sm:$0xff]
      %v634 = vld [vmem:[%s632 + $0x8] sm:$0xff]
      %v635 = vld [vmem:[%s632 + $0x10] sm:$0xff]
      %v636 = vld [vmem:[%s632 + $0x18] sm:$0xff]
      %vm637 = vcmask 31744
      %v639 = vsel %vm637, %v633, 0
      %v642 = vsel %vm637, %v634, 0
      %v645 = vsel %vm637, %v635, 0
      %v648 = vsel %vm637, %v636, 0
      %vm650 = vcmask 1043456
      %v652 = vsel %vm650, %v630, 0
      %v655 = vsel %vm650, %v631, 0
      %657 = vmatprep.subr.mxu0 %v655
      %658 = vmatpush1.msra.mxu0 %v652
      %659 = vmatprep.subr.mxu0 0.0
      %660 = vmatpush1.msra.mxu0 0.0
      %661 = vmatprep.subr.mxu0 0.0
      %662 = vmatpush1.msra.mxu0 0.0
      %663 = vmatprep.subr.mxu0 0.0
      %664 = vmatpush1.msra.mxu0 0.0
      %665 = vmatprep.subr.mxu0 0.0
      %666 = vmatpush1.msra.mxu0 0.0
      %667 = vmatprep.subr.mxu0 0.0
      %668 = vmatpush1.msra.mxu0 0.0
      %669 = vmatprep.subr.mxu0 0.0
      %670 = vmatpush1.msra.mxu0 0.0
      %671 = vmatprep.subr.mxu0 0.0
      %672 = vmatpush1.msra.mxu0 0.0
      %673 = vmatprep.subr.mxu0 0.0
      %674 = vmatpush1.msra.mxu0 0.0
      %675 = vmatprep.subr.mxu0 0.0
      %676 = vmatpush1.msra.mxu0 0.0
      %677 = vmatprep.subr.mxu0 0.0
      %678 = vmatpush1.msra.mxu0 0.0
      %679 = vmatprep.subr.mxu0 0.0
      %680 = vmatpush1.msra.mxu0 0.0
      %681 = vmatprep.subr.mxu0 0.0
      %682 = vmatpush1.msra.mxu0 0.0
      %683 = vmatprep.subr.mxu0 0.0
      %684 = vmatpush1.msra.mxu0 0.0
      %685 = vmatprep.subr.mxu0 0.0
      %686 = vmatpush1.msra.mxu0 0.0
      %687 = vmatprep.subr.mxu0 0.0
      %688 = vmatpush1.msra.mxu0 0.0
      %689 = vmatprep.subr.mxu0 0.0
      %690 = vmatpush1.msra.mxu0 0.0
      %691 = vmatprep.subr.mxu0 0.0
      %692 = vmatpush1.msra.mxu0 0.0
      %693 = vmatprep.subr.mxu0 0.0
      %694 = vmatpush1.msra.mxu0 0.0
      %695 = vmatprep.subr.mxu0 0.0
      %696 = vmatpush1.msra.mxu0 0.0
      %697 = vmatprep.subr.mxu0 0.0
      %698 = vmatpush1.msra.mxu0 0.0
      %699 = vmatprep.subr.mxu0 0.0
      %700 = vmatpush1.msra.mxu0 0.0
      %701 = vmatprep.subr.mxu0 0.0
      %702 = vmatpush1.msra.mxu0 0.0
      %703 = vmatprep.subr.mxu0 0.0
      %704 = vmatpush1.msra.mxu0 0.0
      %705 = vmatprep.subr.mxu0 0.0
      %706 = vmatpush1.msra.mxu0 0.0
      %707 = vmatprep.subr.mxu0 0.0
      %708 = vmatpush1.msra.mxu0 0.0
      %709 = vmatprep.subr.mxu0 0.0
      %710 = vmatpush1.msra.mxu0 0.0
      %711 = vmatprep.subr.mxu0 0.0
      %712 = vmatpush1.msra.mxu0 0.0
      %713 = vmatprep.subr.mxu0 0.0
      %714 = vmatpush1.msra.mxu0 0.0
      %715 = vmatprep.subr.mxu0 0.0
      %716 = vmatpush1.msra.mxu0 0.0
      %717 = vmatprep.subr.mxu0 0.0
      %718 = vmatpush1.msra.mxu0 0.0
      %719 = vmatprep.subr.mxu0 0.0
      %720 = vmatpush1.msra.mxu0 0.0
      %721 = vmatprep.mubr.f32.mxu0 0.0
      %722 = vmatmul.mubr.f32.gmra.mrb[0].mxu0 %v639
      %v723 = vpop.f32.mrb[0].mxu0
      %v724 = vadd.f32 0.0, %v723
      %v725 = vpop.f32.mrb[0].mxu0
      %v726 = vadd.f32 0.0, %v725
      %727 = vmatprep.mubr.f32.mxu0 0.0
      %728 = vmatmul.mubr.f32.gmra.mrb[0].mxu0 %v642
      %v729 = vpop.f32.mrb[0].mxu0
      %v730 = vadd.f32 0.0, %v729
      %v731 = vpop.f32.mrb[0].mxu0
      %v732 = vadd.f32 0.0, %v731
      %733 = vmatprep.mubr.f32.mxu0 0.0
      %734 = vmatmul.mubr.f32.gmra.mrb[0].mxu0 %v645
      %v735 = vpop.f32.mrb[0].mxu0
      %v736 = vadd.f32 0.0, %v735
      %v737 = vpop.f32.mrb[0].mxu0
      %v738 = vadd.f32 0.0, %v737
      %739 = vmatprep.mubr.f32.mxu0 0.0
      %740 = vmatmul.mubr.f32.gmra.mrb[0].mxu0 %v648
      %v741 = vpop.f32.mrb[0].mxu0
      %v742 = vadd.f32 0.0, %v741
      %v743 = vpop.f32.mrb[0].mxu0
      %v744 = vadd.f32 0.0, %v743
      %745 = vdwg.mxu0
      %v747 = vsel %vm637, %v603, 0
      %v750 = vsel %vm637, %v604, 0
      %v753 = vsel %vm637, %v605, 0
      %v756 = vsel %vm637, %v606, 0
      %v759 = vsel %vm650, %v601, 0
      %v762 = vsel %vm650, %v602, 0
      %764 = vmatprep.subr.mxu0 %v762
      %765 = vmatpush1.msra.mxu0 %v759
      %766 = vmatprep.subr.mxu0 0.0
      %767 = vmatpush1.msra.mxu0 0.0
      %768 = vmatprep.subr.mxu0 0.0
      %769 = vmatpush1.msra.mxu0 0.0
      %770 = vmatprep.subr.mxu0 0.0
      %771 = vmatpush1.msra.mxu0 0.0
      %772 = vmatprep.subr.mxu0 0.0
      %773 = vmatpush1.msra.mxu0 0.0
      %774 = vmatprep.subr.mxu0 0.0
      %775 = vmatpush1.msra.mxu0 0.0
      %776 = vmatprep.subr.mxu0 0.0
      %777 = vmatpush1.msra.mxu0 0.0
      %778 = vmatprep.subr.mxu0 0.0
      %779 = vmatpush1.msra.mxu0 0.0
      %780 = vmatprep.subr.mxu0 0.0
      %781 = vmatpush1.msra.mxu0 0.0
      %782 = vmatprep.subr.mxu0 0.0
      %783 = vmatpush1.msra.mxu0 0.0
      %784 = vmatprep.subr.mxu0 0.0
      %785 = vmatpush1.msra.mxu0 0.0
      %786 = vmatprep.subr.mxu0 0.0
      %787 = vmatpush1.msra.mxu0 0.0
      %788 = vmatprep.subr.mxu0 0.0
      %789 = vmatpush1.msra.mxu0 0.0
      %790 = vmatprep.subr.mxu0 0.0
      %791 = vmatpush1.msra.mxu0 0.0
      %792 = vmatprep.subr.mxu0 0.0
      %793 = vmatpush1.msra.mxu0 0.0
      %794 = vmatprep.subr.mxu0 0.0
      %795 = vmatpush1.msra.mxu0 0.0
      %796 = vmatprep.subr.mxu0 0.0
      %797 = vmatpush1.msra.mxu0 0.0
      %798 = vmatprep.subr.mxu0 0.0
      %799 = vmatpush1.msra.mxu0 0.0
      %800 = vmatprep.subr.mxu0 0.0
      %801 = vmatpush1.msra.mxu0 0.0
      %802 = vmatprep.subr.mxu0 0.0
      %803 = vmatpush1.msra.mxu0 0.0
      %804 = vmatprep.subr.mxu0 0.0
      %805 = vmatpush1.msra.mxu0 0.0
      %806 = vmatprep.subr.mxu0 0.0
      %807 = vmatpush1.msra.mxu0 0.0
      %808 = vmatprep.subr.mxu0 0.0
      %809 = vmatpush1.msra.mxu0 0.0
      %810 = vmatprep.subr.mxu0 0.0
      %811 = vmatpush1.msra.mxu0 0.0
      %812 = vmatprep.subr.mxu0 0.0
      %813 = vmatpush1.msra.mxu0 0.0
      %814 = vmatprep.subr.mxu0 0.0
      %815 = vmatpush1.msra.mxu0 0.0
      %816 = vmatprep.subr.mxu0 0.0
      %817 = vmatpush1.msra.mxu0 0.0
      %818 = vmatprep.subr.mxu0 0.0
      %819 = vmatpush1.msra.mxu0 0.0
      %820 = vmatprep.subr.mxu0 0.0
      %821 = vmatpush1.msra.mxu0 0.0
      %822 = vmatprep.subr.mxu0 0.0
      %823 = vmatpush1.msra.mxu0 0.0
      %824 = vmatprep.subr.mxu0 0.0
      %825 = vmatpush1.msra.mxu0 0.0
      %826 = vmatprep.subr.mxu0 0.0
      %827 = vmatpush1.msra.mxu0 0.0
      %828 = vmatprep.mubr.f32.mxu0 0.0
      %829 = vmatmul.mubr.f32.gmra.mrb[0].mxu0 %v747
      %v830 = vpop.f32.mrb[0].mxu0
      %v831 = vadd.f32 %v724, %v830
      %v832 = vpop.f32.mrb[0].mxu0
      %v833 = vadd.f32 %v726, %v832
      %834 = vmatprep.mubr.f32.mxu0 0.0
      %835 = vmatmul.mubr.f32.gmra.mrb[0].mxu0 %v750
      %v836 = vpop.f32.mrb[0].mxu0
      %v837 = vadd.f32 %v730, %v836
      %v838 = vpop.f32.mrb[0].mxu0
      %v839 = vadd.f32 %v732, %v838
      %840 = vmatprep.mubr.f32.mxu0 0.0
      %841 = vmatmul.mubr.f32.gmra.mrb[0].mxu0 %v753
      %v842 = vpop.f32.mrb[0].mxu0
      %v843 = vadd.f32 %v736, %v842
      %v844 = vpop.f32.mrb[0].mxu0
      %v845 = vadd.f32 %v738, %v844
      %846 = vmatprep.mubr.f32.mxu0 0.0
      %847 = vmatmul.mubr.f32.gmra.mrb[0].mxu0 %v756
      %v848 = vpop.f32.mrb[0].mxu0
      %v849 = vadd.f32 %v742, %v848
      %v850 = vpop.f32.mrb[0].mxu0
      %v851 = vadd.f32 %v744, %v850
      %852 = vdwg.mxu0
      %853 = vrot.lane.b32.xlu0 %v578, 15
      %v854 = vpop.permute.xlu0 %853
      %856 = vrot.lane.b32.xlu0 %v576, 15
      %v857 = vpop.permute.xlu0 %856
      %vm858 = vcmask 121856
      %v859 = vsel %vm858, %v857, %v854
      %v862 = vsel %vm858, %v854, %v857
      %s863 = scalar_lea.vmem %s1, 4
      %v864 = vld [vmem:[%s863] sm:$0x3]
      %v866 = vlaneseq
      %v867 = vshrl.u32 %v866, 7
      %v868 = vsub.s32 0, %v867
      %v869 = vrot.slane %v864, %v868
      %v870 = vlaneseq
      %v871 = vshrl.u32 %v870, 7
      %v872 = vsub.s32 1, %v871
      %v873 = vrot.slane %v864, %v872
      %v876 = vmul.f32 %v862, %v869
      %v877 = vmul.f32 %v859, %v873
      %s878 = scalar_lea.vmem %s2, 64
      %v879 = vld [vmem:[%s878] sm:$0xff]
      %v880 = vld [vmem:[%s878 + $0x8] sm:$0xff]
      %v881 = vld [vmem:[%s878 + $0x10] sm:$0xff]
      %v882 = vld [vmem:[%s878 + $0x18] sm:$0xff]
      %v884 = vsel %vm637, %v879, 0
      %v887 = vsel %vm637, %v880, 0
      %v890 = vsel %vm637, %v881, 0
      %v893 = vsel %vm637, %v882, 0
      %v896 = vsel %vm650, %v876, 0
      %v899 = vsel %vm650, %v877, 0
      %901 = vmatprep.subr.mxu0 %v899
      %902 = vmatpush1.msra.mxu0 %v896
      %903 = vmatprep.subr.mxu0 0.0
      %904 = vmatpush1.msra.mxu0 0.0
      %905 = vmatprep.subr.mxu0 0.0
      %906 = vmatpush1.msra.mxu0 0.0
      %907 = vmatprep.subr.mxu0 0.0
      %908 = vmatpush1.msra.mxu0 0.0
      %909 = vmatprep.subr.mxu0 0.0
      %910 = vmatpush1.msra.mxu0 0.0
      %911 = vmatprep.subr.mxu0 0.0
      %912 = vmatpush1.msra.mxu0 0.0
      %913 = vmatprep.subr.mxu0 0.0
      %914 = vmatpush1.msra.mxu0 0.0
      %915 = vmatprep.subr.mxu0 0.0
      %916 = vmatpush1.msra.mxu0 0.0
      %917 = vmatprep.subr.mxu0 0.0
      %918 = vmatpush1.msra.mxu0 0.0
      %919 = vmatprep.subr.mxu0 0.0
      %920 = vmatpush1.msra.mxu0 0.0
      %921 = vmatprep.subr.mxu0 0.0
      %922 = vmatpush1.msra.mxu0 0.0
      %923 = vmatprep.subr.mxu0 0.0
      %924 = vmatpush1.msra.mxu0 0.0
      %925 = vmatprep.subr.mxu0 0.0
      %926 = vmatpush1.msra.mxu0 0.0
      %927 = vmatprep.subr.mxu0 0.0
      %928 = vmatpush1.msra.mxu0 0.0
      %929 = vmatprep.subr.mxu0 0.0
      %930 = vmatpush1.msra.mxu0 0.0
      %931 = vmatprep.subr.mxu0 0.0
      %932 = vmatpush1.msra.mxu0 0.0
      %933 = vmatprep.subr.mxu0 0.0
      %934 = vmatpush1.msra.mxu0 0.0
      %935 = vmatprep.subr.mxu0 0.0
      %936 = vmatpush1.msra.mxu0 0.0
      %937 = vmatprep.subr.mxu0 0.0
      %938 = vmatpush1.msra.mxu0 0.0
      %939 = vmatprep.subr.mxu0 0.0
      %940 = vmatpush1.msra.mxu0 0.0
      %941 = vmatprep.subr.mxu0 0.0
      %942 = vmatpush1.msra.mxu0 0.0
      %943 = vmatprep.subr.mxu0 0.0
      %944 = vmatpush1.msra.mxu0 0.0
      %945 = vmatprep.subr.mxu0 0.0
      %946 = vmatpush1.msra.mxu0 0.0
      %947 = vmatprep.subr.mxu0 0.0
      %948 = vmatpush1.msra.mxu0 0.0
      %949 = vmatprep.subr.mxu0 0.0
      %950 = vmatpush1.msra.mxu0 0.0
      %951 = vmatprep.subr.mxu0 0.0
      %952 = vmatpush1.msra.mxu0 0.0
      %953 = vmatprep.subr.mxu0 0.0
      %954 = vmatpush1.msra.mxu0 0.0
      %955 = vmatprep.subr.mxu0 0.0
      %956 = vmatpush1.msra.mxu0 0.0
      %957 = vmatprep.subr.mxu0 0.0
      %958 = vmatpush1.msra.mxu0 0.0
      %959 = vmatprep.subr.mxu0 0.0
      %960 = vmatpush1.msra.mxu0 0.0
      %961 = vmatprep.subr.mxu0 0.0
      %962 = vmatpush1.msra.mxu0 0.0
      %963 = vmatprep.subr.mxu0 0.0
      %964 = vmatpush1.msra.mxu0 0.0
      %965 = vmatprep.mubr.f32.mxu0 0.0
      %966 = vmatmul.mubr.f32.gmra.mrb[0].mxu0 %v884
      %v967 = vpop.f32.mrb[0].mxu0
      %v968 = vadd.f32 0.0, %v967
      %v969 = vpop.f32.mrb[0].mxu0
      %v970 = vadd.f32 0.0, %v969
      %971 = vmatprep.mubr.f32.mxu0 0.0
      %972 = vmatmul.mubr.f32.gmra.mrb[0].mxu0 %v887
      %v973 = vpop.f32.mrb[0].mxu0
      %v974 = vadd.f32 0.0, %v973
      %v975 = vpop.f32.mrb[0].mxu0
      %v976 = vadd.f32 0.0, %v975
      %977 = vmatprep.mubr.f32.mxu0 0.0
      %978 = vmatmul.mubr.f32.gmra.mrb[0].mxu0 %v890
      %v979 = vpop.f32.mrb[0].mxu0
      %v980 = vadd.f32 0.0, %v979
      %v981 = vpop.f32.mrb[0].mxu0
      %v982 = vadd.f32 0.0, %v981
      %983 = vmatprep.mubr.f32.mxu0 0.0
      %984 = vmatmul.mubr.f32.gmra.mrb[0].mxu0 %v893
      %v985 = vpop.f32.mrb[0].mxu0
      %v986 = vadd.f32 0.0, %v985
      %v987 = vpop.f32.mrb[0].mxu0
      %v988 = vadd.f32 0.0, %v987
      %989 = vdwg.mxu0
      %v990 = vadd.f32 %v831, %v968
      %v991 = vadd.f32 %v833, %v970
      %v992 = vadd.f32 %v837, %v974
      %v993 = vadd.f32 %v839, %v976
      %v994 = vadd.f32 %v843, %v980
      %v995 = vadd.f32 %v845, %v982
      %v996 = vadd.f32 %v849, %v986
      %v997 = vadd.f32 %v851, %v988
      %998 = vrot.lane.b32.xlu0 %v578, 1
      %v999 = vpop.permute.xlu0 %998
      %1001 = vrot.lane.b32.xlu0 %v576, 1
      %v1002 = vpop.permute.xlu0 %1001
      %vm1003 = vcmask 7168
      %v1004 = vsel %vm1003, %v1002, %v999
      %v1007 = vsel %vm1003, %v999, %v1002
      %s1008 = scalar_lea.vmem %s1, 6
      %v1009 = vld [vmem:[%s1008] sm:$0x3]
      %v1011 = vlaneseq
      %v1012 = vshrl.u32 %v1011, 7
      %v1013 = vsub.s32 0, %v1012
      %v1014 = vrot.slane %v1009, %v1013
      %v1015 = vlaneseq
      %v1016 = vshrl.u32 %v1015, 7
      %v1017 = vsub.s32 1, %v1016
      %v1018 = vrot.slane %v1009, %v1017
      %v1021 = vmul.f32 %v1007, %v1014
      %v1022 = vmul.f32 %v1004, %v1018
      %s1023 = scalar_lea.vmem %s2, 96
      %v1024 = vld [vmem:[%s1023] sm:$0xff]
      %v1025 = vld [vmem:[%s1023 + $0x8] sm:$0xff]
      %v1026 = vld [vmem:[%s1023 + $0x10] sm:$0xff]
      %v1027 = vld [vmem:[%s1023 + $0x18] sm:$0xff]
      %v1029 = vsel %vm637, %v1024, 0
      %v1032 = vsel %vm637, %v1025, 0
      %v1035 = vsel %vm637, %v1026, 0
      %v1038 = vsel %vm637, %v1027, 0
      %v1041 = vsel %vm650, %v1021, 0
      %v1044 = vsel %vm650, %v1022, 0
      %1046 = vmatprep.subr.mxu0 %v1044
      %1047 = vmatpush1.msra.mxu0 %v1041
      %1048 = vmatprep.subr.mxu0 0.0
      %1049 = vmatpush1.msra.mxu0 0.0
      %1050 = vmatprep.subr.mxu0 0.0
      %1051 = vmatpush1.msra.mxu0 0.0
      %1052 = vmatprep.subr.mxu0 0.0
      %1053 = vmatpush1.msra.mxu0 0.0
      %1054 = vmatprep.subr.mxu0 0.0
      %1055 = vmatpush1.msra.mxu0 0.0
      %1056 = vmatprep.subr.mxu0 0.0
      %1057 = vmatpush1.msra.mxu0 0.0
      %1058 = vmatprep.subr.mxu0 0.0
      %1059 = vmatpush1.msra.mxu0 0.0
      %1060 = vmatprep.subr.mxu0 0.0
      %1061 = vmatpush1.msra.mxu0 0.0
      %1062 = vmatprep.subr.mxu0 0.0
      %1063 = vmatpush1.msra.mxu0 0.0
      %1064 = vmatprep.subr.mxu0 0.0
      %1065 = vmatpush1.msra.mxu0 0.0
      %1066 = vmatprep.subr.mxu0 0.0
      %1067 = vmatpush1.msra.mxu0 0.0
      %1068 = vmatprep.subr.mxu0 0.0
      %1069 = vmatpush1.msra.mxu0 0.0
      %1070 = vmatprep.subr.mxu0 0.0
      %1071 = vmatpush1.msra.mxu0 0.0
      %1072 = vmatprep.subr.mxu0 0.0
      %1073 = vmatpush1.msra.mxu0 0.0
      %1074 = vmatprep.subr.mxu0 0.0
      %1075 = vmatpush1.msra.mxu0 0.0
      %1076 = vmatprep.subr.mxu0 0.0
      %1077 = vmatpush1.msra.mxu0 0.0
      %1078 = vmatprep.subr.mxu0 0.0
      %1079 = vmatpush1.msra.mxu0 0.0
      %1080 = vmatprep.subr.mxu0 0.0
      %1081 = vmatpush1.msra.mxu0 0.0
      %1082 = vmatprep.subr.mxu0 0.0
      %1083 = vmatpush1.msra.mxu0 0.0
      %1084 = vmatprep.subr.mxu0 0.0
      %1085 = vmatpush1.msra.mxu0 0.0
      %1086 = vmatprep.subr.mxu0 0.0
      %1087 = vmatpush1.msra.mxu0 0.0
      %1088 = vmatprep.subr.mxu0 0.0
      %1089 = vmatpush1.msra.mxu0 0.0
      %1090 = vmatprep.subr.mxu0 0.0
      %1091 = vmatpush1.msra.mxu0 0.0
      %1092 = vmatprep.subr.mxu0 0.0
      %1093 = vmatpush1.msra.mxu0 0.0
      %1094 = vmatprep.subr.mxu0 0.0
      %1095 = vmatpush1.msra.mxu0 0.0
      %1096 = vmatprep.subr.mxu0 0.0
      %1097 = vmatpush1.msra.mxu0 0.0
      %1098 = vmatprep.subr.mxu0 0.0
      %1099 = vmatpush1.msra.mxu0 0.0
      %1100 = vmatprep.subr.mxu0 0.0
      %1101 = vmatpush1.msra.mxu0 0.0
      %1102 = vmatprep.subr.mxu0 0.0
      %1103 = vmatpush1.msra.mxu0 0.0
      %1104 = vmatprep.subr.mxu0 0.0
      %1105 = vmatpush1.msra.mxu0 0.0
      %1106 = vmatprep.subr.mxu0 0.0
      %1107 = vmatpush1.msra.mxu0 0.0
      %1108 = vmatprep.subr.mxu0 0.0
      %1109 = vmatpush1.msra.mxu0 0.0
      %1110 = vmatprep.mubr.f32.mxu0 0.0
      %1111 = vmatmul.mubr.f32.gmra.mrb[0].mxu0 %v1029
      %v1112 = vpop.f32.mrb[0].mxu0
      %v1113 = vadd.f32 0.0, %v1112
      %v1114 = vpop.f32.mrb[0].mxu0
      %v1115 = vadd.f32 0.0, %v1114
      %1116 = vmatprep.mubr.f32.mxu0 0.0
      %1117 = vmatmul.mubr.f32.gmra.mrb[0].mxu0 %v1032
      %v1118 = vpop.f32.mrb[0].mxu0
      %v1119 = vadd.f32 0.0, %v1118
      %v1120 = vpop.f32.mrb[0].mxu0
      %v1121 = vadd.f32 0.0, %v1120
      %1122 = vmatprep.mubr.f32.mxu0 0.0
      %1123 = vmatmul.mubr.f32.gmra.mrb[0].mxu0 %v1035
      %v1124 = vpop.f32.mrb[0].mxu0
      %v1125 = vadd.f32 0.0, %v1124
      %v1126 = vpop.f32.mrb[0].mxu0
      %v1127 = vadd.f32 0.0, %v1126
      %1128 = vmatprep.mubr.f32.mxu0 0.0
      %1129 = vmatmul.mubr.f32.gmra.mrb[0].mxu0 %v1038
      %v1130 = vpop.f32.mrb[0].mxu0
      %v1131 = vadd.f32 0.0, %v1130
      %v1132 = vpop.f32.mrb[0].mxu0
      %v1133 = vadd.f32 0.0, %v1132
      %1134 = vdwg.mxu0
      %v1135 = vadd.f32 %v990, %v1113
      %v1136 = vadd.f32 %v991, %v1115
      %v1137 = vadd.f32 %v992, %v1119
      %v1138 = vadd.f32 %v993, %v1121
      %v1139 = vadd.f32 %v994, %v1125
      %v1140 = vadd.f32 %v995, %v1127
      %v1141 = vadd.f32 %v996, %v1131
      %v1142 = vadd.f32 %v997, %v1133
      %s1143 = scalar_lea.vmem %s2, 128
      %v1144 = vld [vmem:[%s1143] sm:$0xff]
      %v1145 = vld [vmem:[%s1143 + $0x8] sm:$0xff]
      %v1146 = vld [vmem:[%s1143 + $0x10] sm:$0xff]
      %v1147 = vld [vmem:[%s1143 + $0x18] sm:$0xff]
      %v1149 = vsel %vm637, %v1144, 0
      %v1152 = vsel %vm637, %v1145, 0
      %v1155 = vsel %vm637, %v1146, 0
      %v1158 = vsel %vm637, %v1147, 0
      %v1160 = vsel %vm650, %v576, 0
      %v1162 = vsel %vm650, %v578, 0
      %1164 = vmatprep.subr.mxu0 %v1162
      %1165 = vmatpush1.msra.mxu0 %v1160
      %1166 = vmatprep.subr.mxu0 0.0
      %1167 = vmatpush1.msra.mxu0 0.0
      %1168 = vmatprep.subr.mxu0 0.0
      %1169 = vmatpush1.msra.mxu0 0.0
      %1170 = vmatprep.subr.mxu0 0.0
      %1171 = vmatpush1.msra.mxu0 0.0
      %1172 = vmatprep.subr.mxu0 0.0
      %1173 = vmatpush1.msra.mxu0 0.0
      %1174 = vmatprep.subr.mxu0 0.0
      %1175 = vmatpush1.msra.mxu0 0.0
      %1176 = vmatprep.subr.mxu0 0.0
      %1177 = vmatpush1.msra.mxu0 0.0
      %1178 = vmatprep.subr.mxu0 0.0
      %1179 = vmatpush1.msra.mxu0 0.0
      %1180 = vmatprep.subr.mxu0 0.0
      %1181 = vmatpush1.msra.mxu0 0.0
      %1182 = vmatprep.subr.mxu0 0.0
      %1183 = vmatpush1.msra.mxu0 0.0
      %1184 = vmatprep.subr.mxu0 0.0
      %1185 = vmatpush1.msra.mxu0 0.0
      %1186 = vmatprep.subr.mxu0 0.0
      %1187 = vmatpush1.msra.mxu0 0.0
      %1188 = vmatprep.subr.mxu0 0.0
      %1189 = vmatpush1.msra.mxu0 0.0
      %1190 = vmatprep.subr.mxu0 0.0
      %1191 = vmatpush1.msra.mxu0 0.0
      %1192 = vmatprep.subr.mxu0 0.0
      %1193 = vmatpush1.msra.mxu0 0.0
      %1194 = vmatprep.subr.mxu0 0.0
      %1195 = vmatpush1.msra.mxu0 0.0
      %1196 = vmatprep.subr.mxu0 0.0
      %1197 = vmatpush1.msra.mxu0 0.0
      %1198 = vmatprep.subr.mxu0 0.0
      %1199 = vmatpush1.msra.mxu0 0.0
      %1200 = vmatprep.subr.mxu0 0.0
      %1201 = vmatpush1.msra.mxu0 0.0
      %1202 = vmatprep.subr.mxu0 0.0
      %1203 = vmatpush1.msra.mxu0 0.0
      %1204 = vmatprep.subr.mxu0 0.0
      %1205 = vmatpush1.msra.mxu0 0.0
      %1206 = vmatprep.subr.mxu0 0.0
      %1207 = vmatpush1.msra.mxu0 0.0
      %1208 = vmatprep.subr.mxu0 0.0
      %1209 = vmatpush1.msra.mxu0 0.0
      %1210 = vmatprep.subr.mxu0 0.0
      %1211 = vmatpush1.msra.mxu0 0.0
      %1212 = vmatprep.subr.mxu0 0.0
      %1213 = vmatpush1.msra.mxu0 0.0
      %1214 = vmatprep.subr.mxu0 0.0
      %1215 = vmatpush1.msra.mxu0 0.0
      %1216 = vmatprep.subr.mxu0 0.0
      %1217 = vmatpush1.msra.mxu0 0.0
      %1218 = vmatprep.subr.mxu0 0.0
      %1219 = vmatpush1.msra.mxu0 0.0
      %1220 = vmatprep.subr.mxu0 0.0
      %1221 = vmatpush1.msra.mxu0 0.0
      %1222 = vmatprep.subr.mxu0 0.0
      %1223 = vmatpush1.msra.mxu0 0.0
      %1224 = vmatprep.subr.mxu0 0.0
      %1225 = vmatpush1.msra.mxu0 0.0
      %1226 = vmatprep.subr.mxu0 0.0
      %1227 = vmatpush1.msra.mxu0 0.0
      %1228 = vmatprep.mubr.f32.mxu0 0.0
      %1229 = vmatmul.mubr.f32.gmra.mrb[0].mxu0 %v1149
      %v1230 = vpop.f32.mrb[0].mxu0
      %v1231 = vadd.f32 0.0, %v1230
      %v1232 = vpop.f32.mrb[0].mxu0
      %v1233 = vadd.f32 0.0, %v1232
      %1234 = vmatprep.mubr.f32.mxu0 0.0
      %1235 = vmatmul.mubr.f32.gmra.mrb[0].mxu0 %v1152
      %v1236 = vpop.f32.mrb[0].mxu0
      %v1237 = vadd.f32 0.0, %v1236
      %v1238 = vpop.f32.mrb[0].mxu0
      %v1239 = vadd.f32 0.0, %v1238
      %1240 = vmatprep.mubr.f32.mxu0 0.0
      %1241 = vmatmul.mubr.f32.gmra.mrb[0].mxu0 %v1155
      %v1242 = vpop.f32.mrb[0].mxu0
      %v1243 = vadd.f32 0.0, %v1242
      %v1244 = vpop.f32.mrb[0].mxu0
      %v1245 = vadd.f32 0.0, %v1244
      %1246 = vmatprep.mubr.f32.mxu0 0.0
      %1247 = vmatmul.mubr.f32.gmra.mrb[0].mxu0 %v1158
      %v1248 = vpop.f32.mrb[0].mxu0
      %v1249 = vadd.f32 0.0, %v1248
      %v1250 = vpop.f32.mrb[0].mxu0
      %v1251 = vadd.f32 0.0, %v1250
      %1252 = vdwg.mxu0
      %v1253 = vadd.f32 %v1135, %v1231
      %v1254 = vadd.f32 %v1136, %v1233
      %v1255 = vadd.f32 %v1137, %v1237
      %v1256 = vadd.f32 %v1138, %v1239
      %v1257 = vadd.f32 %v1139, %v1243
      %v1258 = vadd.f32 %v1140, %v1245
      %v1259 = vadd.f32 %v1141, %v1249
      %v1260 = vadd.f32 %v1142, %v1251
      %1261 = vrot.lane.b32.xlu0 %v576, 127
      %v1262 = vpop.permute.xlu0 %1261
      %1263 = vrot.lane.b32.xlu0 %v578, 127
      %v1264 = vpop.permute.xlu0 %1263
      %vm1265 = vcmask 1039360
      %v1266 = vsel %vm1265, %v1262, %v1264
      %v1270 = vsel %vm1265, %v1264, %v1262
      %s1271 = scalar_lea.vmem %s1, 10
      %v1272 = vld [vmem:[%s1271] sm:$0x3]
      %v1274 = vlaneseq
      %v1275 = vshrl.u32 %v1274, 7
      %v1276 = vsub.s32 0, %v1275
      %v1277 = vrot.slane %v1272, %v1276
      %v1278 = vlaneseq
      %v1279 = vshrl.u32 %v1278, 7
      %v1280 = vsub.s32 1, %v1279
      %v1281 = vrot.slane %v1272, %v1280
      %v1284 = vmul.f32 %v1266, %v1277
      %v1285 = vmul.f32 %v1270, %v1281
      %s1286 = scalar_lea.vmem %s2, 160
      %v1287 = vld [vmem:[%s1286] sm:$0xff]
      %v1288 = vld [vmem:[%s1286 + $0x8] sm:$0xff]
      %v1289 = vld [vmem:[%s1286 + $0x10] sm:$0xff]
      %v1290 = vld [vmem:[%s1286 + $0x18] sm:$0xff]
      %v1292 = vsel %vm637, %v1287, 0
      %v1295 = vsel %vm637, %v1288, 0
      %v1298 = vsel %vm637, %v1289, 0
      %v1301 = vsel %vm637, %v1290, 0
      %v1304 = vsel %vm650, %v1284, 0
      %v1307 = vsel %vm650, %v1285, 0
      %1309 = vmatprep.subr.mxu0 %v1307
      %1310 = vmatpush1.msra.mxu0 %v1304
      %1311 = vmatprep.subr.mxu0 0.0
      %1312 = vmatpush1.msra.mxu0 0.0
      %1313 = vmatprep.subr.mxu0 0.0
      %1314 = vmatpush1.msra.mxu0 0.0
      %1315 = vmatprep.subr.mxu0 0.0
      %1316 = vmatpush1.msra.mxu0 0.0
      %1317 = vmatprep.subr.mxu0 0.0
      %1318 = vmatpush1.msra.mxu0 0.0
      %1319 = vmatprep.subr.mxu0 0.0
      %1320 = vmatpush1.msra.mxu0 0.0
      %1321 = vmatprep.subr.mxu0 0.0
      %1322 = vmatpush1.msra.mxu0 0.0
      %1323 = vmatprep.subr.mxu0 0.0
      %1324 = vmatpush1.msra.mxu0 0.0
      %1325 = vmatprep.subr.mxu0 0.0
      %1326 = vmatpush1.msra.mxu0 0.0
      %1327 = vmatprep.subr.mxu0 0.0
      %1328 = vmatpush1.msra.mxu0 0.0
      %1329 = vmatprep.subr.mxu0 0.0
      %1330 = vmatpush1.msra.mxu0 0.0
      %1331 = vmatprep.subr.mxu0 0.0
      %1332 = vmatpush1.msra.mxu0 0.0
      %1333 = vmatprep.subr.mxu0 0.0
      %1334 = vmatpush1.msra.mxu0 0.0
      %1335 = vmatprep.subr.mxu0 0.0
      %1336 = vmatpush1.msra.mxu0 0.0
      %1337 = vmatprep.subr.mxu0 0.0
      %1338 = vmatpush1.msra.mxu0 0.0
      %1339 = vmatprep.subr.mxu0 0.0
      %1340 = vmatpush1.msra.mxu0 0.0
      %1341 = vmatprep.subr.mxu0 0.0
      %1342 = vmatpush1.msra.mxu0 0.0
      %1343 = vmatprep.subr.mxu0 0.0
      %1344 = vmatpush1.msra.mxu0 0.0
      %1345 = vmatprep.subr.mxu0 0.0
      %1346 = vmatpush1.msra.mxu0 0.0
      %1347 = vmatprep.subr.mxu0 0.0
      %1348 = vmatpush1.msra.mxu0 0.0
      %1349 = vmatprep.subr.mxu0 0.0
      %1350 = vmatpush1.msra.mxu0 0.0
      %1351 = vmatprep.subr.mxu0 0.0
      %1352 = vmatpush1.msra.mxu0 0.0
      %1353 = vmatprep.subr.mxu0 0.0
      %1354 = vmatpush1.msra.mxu0 0.0
      %1355 = vmatprep.subr.mxu0 0.0
      %1356 = vmatpush1.msra.mxu0 0.0
      %1357 = vmatprep.subr.mxu0 0.0
      %1358 = vmatpush1.msra.mxu0 0.0
      %1359 = vmatprep.subr.mxu0 0.0
      %1360 = vmatpush1.msra.mxu0 0.0
      %1361 = vmatprep.subr.mxu0 0.0
      %1362 = vmatpush1.msra.mxu0 0.0
      %1363 = vmatprep.subr.mxu0 0.0
      %1364 = vmatpush1.msra.mxu0 0.0
      %1365 = vmatprep.subr.mxu0 0.0
      %1366 = vmatpush1.msra.mxu0 0.0
      %1367 = vmatprep.subr.mxu0 0.0
      %1368 = vmatpush1.msra.mxu0 0.0
      %1369 = vmatprep.subr.mxu0 0.0
      %1370 = vmatpush1.msra.mxu0 0.0
      %1371 = vmatprep.subr.mxu0 0.0
      %1372 = vmatpush1.msra.mxu0 0.0
      %1373 = vmatprep.mubr.f32.mxu0 0.0
      %1374 = vmatmul.mubr.f32.gmra.mrb[0].mxu0 %v1292
      %v1375 = vpop.f32.mrb[0].mxu0
      %v1376 = vadd.f32 0.0, %v1375
      %v1377 = vpop.f32.mrb[0].mxu0
      %v1378 = vadd.f32 0.0, %v1377
      %1379 = vmatprep.mubr.f32.mxu0 0.0
      %1380 = vmatmul.mubr.f32.gmra.mrb[0].mxu0 %v1295
      %v1381 = vpop.f32.mrb[0].mxu0
      %v1382 = vadd.f32 0.0, %v1381
      %v1383 = vpop.f32.mrb[0].mxu0
      %v1384 = vadd.f32 0.0, %v1383
      %1385 = vmatprep.mubr.f32.mxu0 0.0
      %1386 = vmatmul.mubr.f32.gmra.mrb[0].mxu0 %v1298
      %v1387 = vpop.f32.mrb[0].mxu0
      %v1388 = vadd.f32 0.0, %v1387
      %v1389 = vpop.f32.mrb[0].mxu0
      %v1390 = vadd.f32 0.0, %v1389
      %1391 = vmatprep.mubr.f32.mxu0 0.0
      %1392 = vmatmul.mubr.f32.gmra.mrb[0].mxu0 %v1301
      %v1393 = vpop.f32.mrb[0].mxu0
      %v1394 = vadd.f32 0.0, %v1393
      %v1395 = vpop.f32.mrb[0].mxu0
      %v1396 = vadd.f32 0.0, %v1395
      %1397 = vdwg.mxu0
      %v1398 = vadd.f32 %v1253, %v1376
      %v1399 = vadd.f32 %v1254, %v1378
      %v1400 = vadd.f32 %v1255, %v1382
      %v1401 = vadd.f32 %v1256, %v1384
      %v1402 = vadd.f32 %v1257, %v1388
      %v1403 = vadd.f32 %v1258, %v1390
      %v1404 = vadd.f32 %v1259, %v1394
      %v1405 = vadd.f32 %v1260, %v1396
      %1406 = vrot.lane.b32.xlu0 %v576, 113
      %v1407 = vpop.permute.xlu0 %1406
      %1408 = vrot.lane.b32.xlu0 %v578, 113
      %v1409 = vpop.permute.xlu0 %1408
      %vm1410 = vcmask 924672
      %v1411 = vsel %vm1410, %v1407, %v1409
      %v1415 = vsel %vm1410, %v1409, %v1407
      %s1416 = scalar_lea.vmem %s1, 12
      %v1417 = vld [vmem:[%s1416] sm:$0x3]
      %v1419 = vlaneseq
      %v1420 = vshrl.u32 %v1419, 7
      %v1421 = vsub.s32 0, %v1420
      %v1422 = vrot.slane %v1417, %v1421
      %v1423 = vlaneseq
      %v1424 = vshrl.u32 %v1423, 7
      %v1425 = vsub.s32 1, %v1424
      %v1426 = vrot.slane %v1417, %v1425
      %v1429 = vmul.f32 %v1411, %v1422
      %v1430 = vmul.f32 %v1415, %v1426
      %s1431 = scalar_lea.vmem %s2, 192
      %v1432 = vld [vmem:[%s1431] sm:$0xff]
      %v1433 = vld [vmem:[%s1431 + $0x8] sm:$0xff]
      %v1434 = vld [vmem:[%s1431 + $0x10] sm:$0xff]
      %v1435 = vld [vmem:[%s1431 + $0x18] sm:$0xff]
      %v1437 = vsel %vm637, %v1432, 0
      %v1440 = vsel %vm637, %v1433, 0
      %v1443 = vsel %vm637, %v1434, 0
      %v1446 = vsel %vm637, %v1435, 0
      %v1449 = vsel %vm650, %v1429, 0
      %v1452 = vsel %vm650, %v1430, 0
      %1454 = vmatprep.subr.mxu0 %v1452
      %1455 = vmatpush1.msra.mxu0 %v1449
      %1456 = vmatprep.subr.mxu0 0.0
      %1457 = vmatpush1.msra.mxu0 0.0
      %1458 = vmatprep.subr.mxu0 0.0
      %1459 = vmatpush1.msra.mxu0 0.0
      %1460 = vmatprep.subr.mxu0 0.0
      %1461 = vmatpush1.msra.mxu0 0.0
      %1462 = vmatprep.subr.mxu0 0.0
      %1463 = vmatpush1.msra.mxu0 0.0
      %1464 = vmatprep.subr.mxu0 0.0
      %1465 = vmatpush1.msra.mxu0 0.0
      %1466 = vmatprep.subr.mxu0 0.0
      %1467 = vmatpush1.msra.mxu0 0.0
      %1468 = vmatprep.subr.mxu0 0.0
      %1469 = vmatpush1.msra.mxu0 0.0
      %1470 = vmatprep.subr.mxu0 0.0
      %1471 = vmatpush1.msra.mxu0 0.0
      %1472 = vmatprep.subr.mxu0 0.0
      %1473 = vmatpush1.msra.mxu0 0.0
      %1474 = vmatprep.subr.mxu0 0.0
      %1475 = vmatpush1.msra.mxu0 0.0
      %1476 = vmatprep.subr.mxu0 0.0
      %1477 = vmatpush1.msra.mxu0 0.0
      %1478 = vmatprep.subr.mxu0 0.0
      %1479 = vmatpush1.msra.mxu0 0.0
      %1480 = vmatprep.subr.mxu0 0.0
      %1481 = vmatpush1.msra.mxu0 0.0
      %1482 = vmatprep.subr.mxu0 0.0
      %1483 = vmatpush1.msra.mxu0 0.0
      %1484 = vmatprep.subr.mxu0 0.0
      %1485 = vmatpush1.msra.mxu0 0.0
      %1486 = vmatprep.subr.mxu0 0.0
      %1487 = vmatpush1.msra.mxu0 0.0
      %1488 = vmatprep.subr.mxu0 0.0
      %1489 = vmatpush1.msra.mxu0 0.0
      %1490 = vmatprep.subr.mxu0 0.0
      %1491 = vmatpush1.msra.mxu0 0.0
      %1492 = vmatprep.subr.mxu0 0.0
      %1493 = vmatpush1.msra.mxu0 0.0
      %1494 = vmatprep.subr.mxu0 0.0
      %1495 = vmatpush1.msra.mxu0 0.0
      %1496 = vmatprep.subr.mxu0 0.0
      %1497 = vmatpush1.msra.mxu0 0.0
      %1498 = vmatprep.subr.mxu0 0.0
      %1499 = vmatpush1.msra.mxu0 0.0
      %1500 = vmatprep.subr.mxu0 0.0
      %1501 = vmatpush1.msra.mxu0 0.0
      %1502 = vmatprep.subr.mxu0 0.0
      %1503 = vmatpush1.msra.mxu0 0.0
      %1504 = vmatprep.subr.mxu0 0.0
      %1505 = vmatpush1.msra.mxu0 0.0
      %1506 = vmatprep.subr.mxu0 0.0
      %1507 = vmatpush1.msra.mxu0 0.0
      %1508 = vmatprep.subr.mxu0 0.0
      %1509 = vmatpush1.msra.mxu0 0.0
      %1510 = vmatprep.subr.mxu0 0.0
      %1511 = vmatpush1.msra.mxu0 0.0
      %1512 = vmatprep.subr.mxu0 0.0
      %1513 = vmatpush1.msra.mxu0 0.0
      %1514 = vmatprep.subr.mxu0 0.0
      %1515 = vmatpush1.msra.mxu0 0.0
      %1516 = vmatprep.subr.mxu0 0.0
      %1517 = vmatpush1.msra.mxu0 0.0
      %1518 = vmatprep.mubr.f32.mxu0 0.0
      %1519 = vmatmul.mubr.f32.gmra.mrb[0].mxu0 %v1437
      %v1520 = vpop.f32.mrb[0].mxu0
      %v1521 = vadd.f32 0.0, %v1520
      %v1522 = vpop.f32.mrb[0].mxu0
      %v1523 = vadd.f32 0.0, %v1522
      %1524 = vmatprep.mubr.f32.mxu0 0.0
      %1525 = vmatmul.mubr.f32.gmra.mrb[0].mxu0 %v1440
      %v1526 = vpop.f32.mrb[0].mxu0
      %v1527 = vadd.f32 0.0, %v1526
      %v1528 = vpop.f32.mrb[0].mxu0
      %v1529 = vadd.f32 0.0, %v1528
      %1530 = vmatprep.mubr.f32.mxu0 0.0
      %1531 = vmatmul.mubr.f32.gmra.mrb[0].mxu0 %v1443
      %v1532 = vpop.f32.mrb[0].mxu0
      %v1533 = vadd.f32 0.0, %v1532
      %v1534 = vpop.f32.mrb[0].mxu0
      %v1535 = vadd.f32 0.0, %v1534
      %1536 = vmatprep.mubr.f32.mxu0 0.0
      %1537 = vmatmul.mubr.f32.gmra.mrb[0].mxu0 %v1446
      %v1538 = vpop.f32.mrb[0].mxu0
      %v1539 = vadd.f32 0.0, %v1538
      %v1540 = vpop.f32.mrb[0].mxu0
      %v1541 = vadd.f32 0.0, %v1540
      %1542 = vdwg.mxu0
      %v1543 = vadd.f32 %v1398, %v1521
      %v1544 = vadd.f32 %v1399, %v1523
      %v1545 = vadd.f32 %v1400, %v1527
      %v1546 = vadd.f32 %v1401, %v1529
      %v1547 = vadd.f32 %v1402, %v1533
      %v1548 = vadd.f32 %v1403, %v1535
      %v1549 = vadd.f32 %v1404, %v1539
      %v1550 = vadd.f32 %v1405, %v1541
      %1551 = vrot.lane.b32.xlu0 %v576, 112
      %v1552 = vpop.permute.xlu0 %1551
      %1553 = vrot.lane.b32.xlu0 %v578, 112
      %v1554 = vpop.permute.xlu0 %1553
      %vm1555 = vcmask 916480
      %v1556 = vsel %vm1555, %v1552, %v1554
      %v1560 = vsel %vm1555, %v1554, %v1552
      %s1561 = scalar_lea.vmem %s1, 14
      %v1562 = vld [vmem:[%s1561] sm:$0x3]
      %v1564 = vlaneseq
      %v1565 = vshrl.u32 %v1564, 7
      %v1566 = vsub.s32 0, %v1565
      %v1567 = vrot.slane %v1562, %v1566
      %v1568 = vlaneseq
      %v1569 = vshrl.u32 %v1568, 7
      %v1570 = vsub.s32 1, %v1569
      %v1571 = vrot.slane %v1562, %v1570
      %v1574 = vmul.f32 %v1556, %v1567
      %v1575 = vmul.f32 %v1560, %v1571
      %s1576 = scalar_lea.vmem %s2, 224
      %v1577 = vld [vmem:[%s1576] sm:$0xff]
      %v1578 = vld [vmem:[%s1576 + $0x8] sm:$0xff]
      %v1579 = vld [vmem:[%s1576 + $0x10] sm:$0xff]
      %v1580 = vld [vmem:[%s1576 + $0x18] sm:$0xff]
      %v1582 = vsel %vm637, %v1577, 0
      %v1585 = vsel %vm637, %v1578, 0
      %v1588 = vsel %vm637, %v1579, 0
      %v1591 = vsel %vm637, %v1580, 0
      %v1594 = vsel %vm650, %v1574, 0
      %v1597 = vsel %vm650, %v1575, 0
      %1599 = vmatprep.subr.mxu0 %v1597
      %1600 = vmatpush1.msra.mxu0 %v1594
      %1601 = vmatprep.subr.mxu0 0.0
      %1602 = vmatpush1.msra.mxu0 0.0
      %1603 = vmatprep.subr.mxu0 0.0
      %1604 = vmatpush1.msra.mxu0 0.0
      %1605 = vmatprep.subr.mxu0 0.0
      %1606 = vmatpush1.msra.mxu0 0.0
      %1607 = vmatprep.subr.mxu0 0.0
      %1608 = vmatpush1.msra.mxu0 0.0
      %1609 = vmatprep.subr.mxu0 0.0
      %1610 = vmatpush1.msra.mxu0 0.0
      %1611 = vmatprep.subr.mxu0 0.0
      %1612 = vmatpush1.msra.mxu0 0.0
      %1613 = vmatprep.subr.mxu0 0.0
      %1614 = vmatpush1.msra.mxu0 0.0
      %1615 = vmatprep.subr.mxu0 0.0
      %1616 = vmatpush1.msra.mxu0 0.0
      %1617 = vmatprep.subr.mxu0 0.0
      %1618 = vmatpush1.msra.mxu0 0.0
      %1619 = vmatprep.subr.mxu0 0.0
      %1620 = vmatpush1.msra.mxu0 0.0
      %1621 = vmatprep.subr.mxu0 0.0
      %1622 = vmatpush1.msra.mxu0 0.0
      %1623 = vmatprep.subr.mxu0 0.0
      %1624 = vmatpush1.msra.mxu0 0.0
      %1625 = vmatprep.subr.mxu0 0.0
      %1626 = vmatpush1.msra.mxu0 0.0
      %1627 = vmatprep.subr.mxu0 0.0
      %1628 = vmatpush1.msra.mxu0 0.0
      %1629 = vmatprep.subr.mxu0 0.0
      %1630 = vmatpush1.msra.mxu0 0.0
      %1631 = vmatprep.subr.mxu0 0.0
      %1632 = vmatpush1.msra.mxu0 0.0
      %1633 = vmatprep.subr.mxu0 0.0
      %1634 = vmatpush1.msra.mxu0 0.0
      %1635 = vmatprep.subr.mxu0 0.0
      %1636 = vmatpush1.msra.mxu0 0.0
      %1637 = vmatprep.subr.mxu0 0.0
      %1638 = vmatpush1.msra.mxu0 0.0
      %1639 = vmatprep.subr.mxu0 0.0
      %1640 = vmatpush1.msra.mxu0 0.0
      %1641 = vmatprep.subr.mxu0 0.0
      %1642 = vmatpush1.msra.mxu0 0.0
      %1643 = vmatprep.subr.mxu0 0.0
      %1644 = vmatpush1.msra.mxu0 0.0
      %1645 = vmatprep.subr.mxu0 0.0
      %1646 = vmatpush1.msra.mxu0 0.0
      %1647 = vmatprep.subr.mxu0 0.0
      %1648 = vmatpush1.msra.mxu0 0.0
      %1649 = vmatprep.subr.mxu0 0.0
      %1650 = vmatpush1.msra.mxu0 0.0
      %1651 = vmatprep.subr.mxu0 0.0
      %1652 = vmatpush1.msra.mxu0 0.0
      %1653 = vmatprep.subr.mxu0 0.0
      %1654 = vmatpush1.msra.mxu0 0.0
      %1655 = vmatprep.subr.mxu0 0.0
      %1656 = vmatpush1.msra.mxu0 0.0
      %1657 = vmatprep.subr.mxu0 0.0
      %1658 = vmatpush1.msra.mxu0 0.0
      %1659 = vmatprep.subr.mxu0 0.0
      %1660 = vmatpush1.msra.mxu0 0.0
      %1661 = vmatprep.subr.mxu0 0.0
      %1662 = vmatpush1.msra.mxu0 0.0
      %1663 = vmatprep.mubr.f32.mxu0 0.0
      %1664 = vmatmul.mubr.f32.gmra.mrb[0].mxu0 %v1582
      %v1665 = vpop.f32.mrb[0].mxu0
      %v1666 = vadd.f32 0.0, %v1665
      %v1667 = vpop.f32.mrb[0].mxu0
      %v1668 = vadd.f32 0.0, %v1667
      %1669 = vmatprep.mubr.f32.mxu0 0.0
      %1670 = vmatmul.mubr.f32.gmra.mrb[0].mxu0 %v1585
      %v1671 = vpop.f32.mrb[0].mxu0
      %v1672 = vadd.f32 0.0, %v1671
      %v1673 = vpop.f32.mrb[0].mxu0
      %v1674 = vadd.f32 0.0, %v1673
      %1675 = vmatprep.mubr.f32.mxu0 0.0
      %1676 = vmatmul.mubr.f32.gmra.mrb[0].mxu0 %v1588
      %v1677 = vpop.f32.mrb[0].mxu0
      %v1678 = vadd.f32 0.0, %v1677
      %v1679 = vpop.f32.mrb[0].mxu0
      %v1680 = vadd.f32 0.0, %v1679
      %1681 = vmatprep.mubr.f32.mxu0 0.0
      %1682 = vmatmul.mubr.f32.gmra.mrb[0].mxu0 %v1591
      %v1683 = vpop.f32.mrb[0].mxu0
      %v1684 = vadd.f32 0.0, %v1683
      %v1685 = vpop.f32.mrb[0].mxu0
      %v1686 = vadd.f32 0.0, %v1685
      %1687 = vdwg.mxu0
      %v1688 = vadd.f32 %v1543, %v1666
      %v1689 = vadd.f32 %v1544, %v1668
      %v1690 = vadd.f32 %v1545, %v1672
      %v1691 = vadd.f32 %v1546, %v1674
      %v1692 = vadd.f32 %v1547, %v1678
      %v1693 = vadd.f32 %v1548, %v1680
      %v1694 = vadd.f32 %v1549, %v1684
      %v1695 = vadd.f32 %v1550, %v1686
      %1696 = vrot.lane.b32.xlu0 %v576, 111
      %v1697 = vpop.permute.xlu0 %1696
      %1698 = vrot.lane.b32.xlu0 %v578, 111
      %v1699 = vpop.permute.xlu0 %1698
      %vm1700 = vcmask 908288
      %v1701 = vsel %vm1700, %v1697, %v1699
      %v1705 = vsel %vm1700, %v1699, %v1697
      %s1706 = scalar_lea.vmem %s1, 16
      %v1707 = vld [vmem:[%s1706] sm:$0x3]
      %v1709 = vlaneseq
      %v1710 = vshrl.u32 %v1709, 7
      %v1711 = vsub.s32 0, %v1710
      %v1712 = vrot.slane %v1707, %v1711
      %v1713 = vlaneseq
      %v1714 = vshrl.u32 %v1713, 7
      %v1715 = vsub.s32 1, %v1714
      %v1716 = vrot.slane %v1707, %v1715
      %v1719 = vmul.f32 %v1701, %v1712
      %v1720 = vmul.f32 %v1705, %v1716
      %s1721 = scalar_lea.vmem %s2, 256
      %v1722 = vld [vmem:[%s1721] sm:$0xff]
      %v1723 = vld [vmem:[%s1721 + $0x8] sm:$0xff]
      %v1724 = vld [vmem:[%s1721 + $0x10] sm:$0xff]
      %v1725 = vld [vmem:[%s1721 + $0x18] sm:$0xff]
      %v1727 = vsel %vm637, %v1722, 0
      %v1730 = vsel %vm637, %v1723, 0
      %v1733 = vsel %vm637, %v1724, 0
      %v1736 = vsel %vm637, %v1725, 0
      %v1739 = vsel %vm650, %v1719, 0
      %v1742 = vsel %vm650, %v1720, 0
      %1744 = vmatprep.subr.mxu0 %v1742
      %1745 = vmatpush1.msra.mxu0 %v1739
      %1746 = vmatprep.subr.mxu0 0.0
      %1747 = vmatpush1.msra.mxu0 0.0
      %1748 = vmatprep.subr.mxu0 0.0
      %1749 = vmatpush1.msra.mxu0 0.0
      %1750 = vmatprep.subr.mxu0 0.0
      %1751 = vmatpush1.msra.mxu0 0.0
      %1752 = vmatprep.subr.mxu0 0.0
      %1753 = vmatpush1.msra.mxu0 0.0
      %1754 = vmatprep.subr.mxu0 0.0
      %1755 = vmatpush1.msra.mxu0 0.0
      %1756 = vmatprep.subr.mxu0 0.0
      %1757 = vmatpush1.msra.mxu0 0.0
      %1758 = vmatprep.subr.mxu0 0.0
      %1759 = vmatpush1.msra.mxu0 0.0
      %1760 = vmatprep.subr.mxu0 0.0
      %1761 = vmatpush1.msra.mxu0 0.0
      %1762 = vmatprep.subr.mxu0 0.0
      %1763 = vmatpush1.msra.mxu0 0.0
      %1764 = vmatprep.subr.mxu0 0.0
      %1765 = vmatpush1.msra.mxu0 0.0
      %1766 = vmatprep.subr.mxu0 0.0
      %1767 = vmatpush1.msra.mxu0 0.0
      %1768 = vmatprep.subr.mxu0 0.0
      %1769 = vmatpush1.msra.mxu0 0.0
      %1770 = vmatprep.subr.mxu0 0.0
      %1771 = vmatpush1.msra.mxu0 0.0
      %1772 = vmatprep.subr.mxu0 0.0
      %1773 = vmatpush1.msra.mxu0 0.0
      %1774 = vmatprep.subr.mxu0 0.0
      %1775 = vmatpush1.msra.mxu0 0.0
      %1776 = vmatprep.subr.mxu0 0.0
      %1777 = vmatpush1.msra.mxu0 0.0
      %1778 = vmatprep.subr.mxu0 0.0
      %1779 = vmatpush1.msra.mxu0 0.0
      %1780 = vmatprep.subr.mxu0 0.0
      %1781 = vmatpush1.msra.mxu0 0.0
      %1782 = vmatprep.subr.mxu0 0.0
      %1783 = vmatpush1.msra.mxu0 0.0
      %1784 = vmatprep.subr.mxu0 0.0
      %1785 = vmatpush1.msra.mxu0 0.0
      %1786 = vmatprep.subr.mxu0 0.0
      %1787 = vmatpush1.msra.mxu0 0.0
      %1788 = vmatprep.subr.mxu0 0.0
      %1789 = vmatpush1.msra.mxu0 0.0
      %1790 = vmatprep.subr.mxu0 0.0
      %1791 = vmatpush1.msra.mxu0 0.0
      %1792 = vmatprep.subr.mxu0 0.0
      %1793 = vmatpush1.msra.mxu0 0.0
      %1794 = vmatprep.subr.mxu0 0.0
      %1795 = vmatpush1.msra.mxu0 0.0
      %1796 = vmatprep.subr.mxu0 0.0
      %1797 = vmatpush1.msra.mxu0 0.0
      %1798 = vmatprep.subr.mxu0 0.0
      %1799 = vmatpush1.msra.mxu0 0.0
      %1800 = vmatprep.subr.mxu0 0.0
      %1801 = vmatpush1.msra.mxu0 0.0
      %1802 = vmatprep.subr.mxu0 0.0
      %1803 = vmatpush1.msra.mxu0 0.0
      %1804 = vmatprep.subr.mxu0 0.0
      %1805 = vmatpush1.msra.mxu0 0.0
      %1806 = vmatprep.subr.mxu0 0.0
      %1807 = vmatpush1.msra.mxu0 0.0
      %1808 = vmatprep.mubr.f32.mxu0 0.0
      %1809 = vmatmul.mubr.f32.gmra.mrb[0].mxu0 %v1727
      %v1810 = vpop.f32.mrb[0].mxu0
      %v1811 = vadd.f32 0.0, %v1810
      %v1812 = vpop.f32.mrb[0].mxu0
      %v1813 = vadd.f32 0.0, %v1812
      %1814 = vmatprep.mubr.f32.mxu0 0.0
      %1815 = vmatmul.mubr.f32.gmra.mrb[0].mxu0 %v1730
      %v1816 = vpop.f32.mrb[0].mxu0
      %v1817 = vadd.f32 0.0, %v1816
      %v1818 = vpop.f32.mrb[0].mxu0
      %v1819 = vadd.f32 0.0, %v1818
      %1820 = vmatprep.mubr.f32.mxu0 0.0
      %1821 = vmatmul.mubr.f32.gmra.mrb[0].mxu0 %v1733
      %v1822 = vpop.f32.mrb[0].mxu0
      %v1823 = vadd.f32 0.0, %v1822
      %v1824 = vpop.f32.mrb[0].mxu0
      %v1825 = vadd.f32 0.0, %v1824
      %1826 = vmatprep.mubr.f32.mxu0 0.0
      %1827 = vmatmul.mubr.f32.gmra.mrb[0].mxu0 %v1736
      %v1828 = vpop.f32.mrb[0].mxu0
      %v1829 = vadd.f32 0.0, %v1828
      %v1830 = vpop.f32.mrb[0].mxu0
      %v1831 = vadd.f32 0.0, %v1830
      %1832 = vdwg.mxu0
      %v1833 = vadd.f32 %v1688, %v1811
      %v1834 = vadd.f32 %v1689, %v1813
      %v1835 = vadd.f32 %v1690, %v1817
      %v1836 = vadd.f32 %v1691, %v1819
      %v1837 = vadd.f32 %v1692, %v1823
      %v1838 = vadd.f32 %v1693, %v1825
      %v1839 = vadd.f32 %v1694, %v1829
      %v1840 = vadd.f32 %v1695, %v1831
      %v1841 = vld [vmem:[%s3] sm:$0xff]
      %v1842 = vld [vmem:[%s3 + $0x8] sm:$0xff]
      %v1843 = vld [vmem:[%s3 + $0x10] sm:$0xff]
      %v1844 = vld [vmem:[%s3 + $0x18] sm:$0xff]
      %1846 = vset.pattern.permute.xlu0 0
      %1847 = vperm.xlu0 %1846, %v1841
      %v1848 = vpop.permute.xlu0 %1847
      %1851 = vset.pattern.permute.xlu0 0
      %1852 = vperm.xlu0 %1851, %v1842
      %v1853 = vpop.permute.xlu0 %1852
      %1856 = vset.pattern.permute.xlu0 0
      %1857 = vperm.xlu0 %1856, %v1843
      %v1858 = vpop.permute.xlu0 %1857
      %1861 = vset.pattern.permute.xlu0 0
      %1862 = vperm.xlu0 %1861, %v1844
      %v1863 = vpop.permute.xlu0 %1862
      %v1865 = vadd.f32 %v1833, %v1848
      %v1866 = vadd.f32 %v1834, %v1848
      %v1867 = vadd.f32 %v1835, %v1853
      %v1868 = vadd.f32 %v1836, %v1853
      %v1869 = vadd.f32 %v1837, %v1858
      %v1870 = vadd.f32 %v1838, %v1858
      %v1871 = vadd.f32 %v1839, %v1863
      %v1872 = vadd.f32 %v1840, %v1863
      %v1873 = vmax.f32 %v1865, 0.0
      %v1874 = vmax.f32 %v1866, 0.0
      %v1875 = vmax.f32 %v1867, 0.0
      %v1876 = vmax.f32 %v1868, 0.0
      %v1877 = vmax.f32 %v1869, 0.0
      %v1878 = vmax.f32 %v1870, 0.0
      %v1879 = vmax.f32 %v1871, 0.0
      %v1880 = vmax.f32 %v1872, 0.0
      %v1881 = vld [vmem:[%s4] sm:$0xff]
      %v1882 = vld [vmem:[%s4 + $0x8] sm:$0xff]
      %v1883 = vld [vmem:[%s5] sm:$0xff]
      %v1884 = vld [vmem:[%s5 + $0x8] sm:$0xff]
      %1886 = vset.pattern.permute.xlu0 0
      %1887 = vperm.xlu0 %1886, %v1883
      %v1888 = vpop.permute.xlu0 %1887
      %1891 = vset.pattern.permute.xlu0 0
      %1892 = vperm.xlu0 %1891, %v1884
      %v1893 = vpop.permute.xlu0 %1892
      %vm1895 = vcmask 261120
      %v1897 = vsel %vm1895, %v1881, 0
      %v1900 = vsel %vm1895, %v1882, 0
      %1902 = vmatprep.subr.mxu0 %v1874
      %1903 = vmatpush1.msra.mxu0 %v1873
      %1904 = vmatprep.subr.mxu0 %v1876
      %1905 = vmatpush1.msra.mxu0 %v1875
      %1906 = vmatprep.subr.mxu0 %v1878
      %1907 = vmatpush1.msra.mxu0 %v1877
      %1908 = vmatprep.subr.mxu0 %v1880
      %1909 = vmatpush1.msra.mxu0 %v1879
      %1910 = vmatprep.subr.mxu0 0.0
      %1911 = vmatpush1.msra.mxu0 0.0
      %1912 = vmatprep.subr.mxu0 0.0
      %1913 = vmatpush1.msra.mxu0 0.0
      %1914 = vmatprep.subr.mxu0 0.0
      %1915 = vmatpush1.msra.mxu0 0.0
      %1916 = vmatprep.subr.mxu0 0.0
      %1917 = vmatpush1.msra.mxu0 0.0
      %1918 = vmatprep.subr.mxu0 0.0
      %1919 = vmatpush1.msra.mxu0 0.0
      %1920 = vmatprep.subr.mxu0 0.0
      %1921 = vmatpush1.msra.mxu0 0.0
      %1922 = vmatprep.subr.mxu0 0.0
      %1923 = vmatpush1.msra.mxu0 0.0
      %1924 = vmatprep.subr.mxu0 0.0
      %1925 = vmatpush1.msra.mxu0 0.0
      %1926 = vmatprep.subr.mxu0 0.0
      %1927 = vmatpush1.msra.mxu0 0.0
      %1928 = vmatprep.subr.mxu0 0.0
      %1929 = vmatpush1.msra.mxu0 0.0
      %1930 = vmatprep.subr.mxu0 0.0
      %1931 = vmatpush1.msra.mxu0 0.0
      %1932 = vmatprep.subr.mxu0 0.0
      %1933 = vmatpush1.msra.mxu0 0.0
      %1934 = vmatprep.subr.mxu0 0.0
      %1935 = vmatpush1.msra.mxu0 0.0
      %1936 = vmatprep.subr.mxu0 0.0
      %1937 = vmatpush1.msra.mxu0 0.0
      %1938 = vmatprep.subr.mxu0 0.0
      %1939 = vmatpush1.msra.mxu0 0.0
      %1940 = vmatprep.subr.mxu0 0.0
      %1941 = vmatpush1.msra.mxu0 0.0
      %1942 = vmatprep.subr.mxu0 0.0
      %1943 = vmatpush1.msra.mxu0 0.0
      %1944 = vmatprep.subr.mxu0 0.0
      %1945 = vmatpush1.msra.mxu0 0.0
      %1946 = vmatprep.subr.mxu0 0.0
      %1947 = vmatpush1.msra.mxu0 0.0
      %1948 = vmatprep.subr.mxu0 0.0
      %1949 = vmatpush1.msra.mxu0 0.0
      %1950 = vmatprep.subr.mxu0 0.0
      %1951 = vmatpush1.msra.mxu0 0.0
      %1952 = vmatprep.subr.mxu0 0.0
      %1953 = vmatpush1.msra.mxu0 0.0
      %1954 = vmatprep.subr.mxu0 0.0
      %1955 = vmatpush1.msra.mxu0 0.0
      %1956 = vmatprep.subr.mxu0 0.0
      %1957 = vmatpush1.msra.mxu0 0.0
      %1958 = vmatprep.subr.mxu0 0.0
      %1959 = vmatpush1.msra.mxu0 0.0
      %1960 = vmatprep.subr.mxu0 0.0
      %1961 = vmatpush1.msra.mxu0 0.0
      %1962 = vmatprep.subr.mxu0 0.0
      %1963 = vmatpush1.msra.mxu0 0.0
      %1964 = vmatprep.subr.mxu0 0.0
      %1965 = vmatpush1.msra.mxu0 0.0
      %1966 = vmatprep.mubr.f32.mxu0 0.0
      %1967 = vmatmul.mubr.f32.gmra.mrb[0].mxu0 %v1897
      %v1968 = vpop.f32.mrb[0].mxu0
      %v1969 = vadd.f32 %v1888, %v1968
      %v1970 = vpop.f32.mrb[0].mxu0
      %v1971 = vadd.f32 %v1888, %v1970
      %1972 = vmatprep.mubr.f32.mxu0 0.0
      %1973 = vmatmul.mubr.f32.gmra.mrb[0].mxu0 %v1900
      %v1974 = vpop.f32.mrb[0].mxu0
      %v1975 = vadd.f32 %v1893, %v1974
      %v1976 = vpop.f32.mrb[0].mxu0
      %v1977 = vadd.f32 %v1893, %v1976
      %1978 = vdwg.mxu0
      %v1979 = vmax.f32 %v1969, 0.0
      %v1980 = vmax.f32 %v1971, 0.0
      %v1981 = vmax.f32 %v1975, 0.0
      %v1982 = vmax.f32 %v1977, 0.0
      %1985 = vrot.lane.b32.xlu0 %v1980, 17
      %v1986 = vpop.permute.xlu0 %1985
      %1987 = vrot.lane.b32.xlu0 %v1982, 17
      %v1988 = vpop.permute.xlu0 %1987
      %1993 = vrot.lane.b32.xlu0 %v1979, 17
      %v1994 = vpop.permute.xlu0 %1993
      %1995 = vrot.lane.b32.xlu0 %v1981, 17
      %v1996 = vpop.permute.xlu0 %1995
      %v1997 = vsel %vm584, %v1994, %v1986
      %v1998 = vsel %vm584, %v1996, %v1988
      %v2003 = vsel %vm584, %v1986, %v1994
      %v2004 = vsel %vm584, %v1988, %v1996
      %v2005 = vmul.f32 %v2003, %v594
      %v2006 = vmul.f32 %v1997, %v598
      %v2007 = vmul.f32 %v2004, %v594
      %v2008 = vmul.f32 %v1998, %v598
      %v2009 = vld [vmem:[%s6] sm:$0xff]
      %v2010 = vld [vmem:[%s6 + $0x8] sm:$0xff]
      %2011 = vrot.lane.b32.xlu0 %v1980, 16
      %v2012 = vpop.permute.xlu0 %2011
      %2013 = vrot.lane.b32.xlu0 %v1982, 16
      %v2014 = vpop.permute.xlu0 %2013
      %2017 = vrot.lane.b32.xlu0 %v1979, 16
      %v2018 = vpop.permute.xlu0 %2017
      %2019 = vrot.lane.b32.xlu0 %v1981, 16
      %v2020 = vpop.permute.xlu0 %2019
      %v2021 = vsel %vm612, %v2018, %v2012
      %v2022 = vsel %vm612, %v2020, %v2014
      %v2027 = vsel %vm612, %v2012, %v2018
      %v2028 = vsel %vm612, %v2014, %v2020
      %v2029 = vmul.f32 %v2027, %v623
      %v2030 = vmul.f32 %v2021, %v627
      %v2031 = vmul.f32 %v2028, %v623
      %v2032 = vmul.f32 %v2022, %v627
      %s2033 = scalar_lea.vmem %s6, 16
      %v2034 = vld [vmem:[%s2033] sm:$0xff]
      %v2035 = vld [vmem:[%s2033 + $0x8] sm:$0xff]
      %v2037 = vsel %vm612, %v2034, 0
      %v2040 = vsel %vm612, %v2035, 0
      %2042 = vmatprep.subr.mxu0 %v2030
      %2043 = vmatpush1.msra.mxu0 %v2029
      %2044 = vmatprep.subr.mxu0 %v2032
      %2045 = vmatpush1.msra.mxu0 %v2031
      %2046 = vmatprep.subr.mxu0 0.0
      %2047 = vmatpush1.msra.mxu0 0.0
      %2048 = vmatprep.subr.mxu0 0.0
      %2049 = vmatpush1.msra.mxu0 0.0
      %2050 = vmatprep.subr.mxu0 0.0
      %2051 = vmatpush1.msra.mxu0 0.0
      %2052 = vmatprep.subr.mxu0 0.0
      %2053 = vmatpush1.msra.mxu0 0.0
      %2054 = vmatprep.subr.mxu0 0.0
      %2055 = vmatpush1.msra.mxu0 0.0
      %2056 = vmatprep.subr.mxu0 0.0
      %2057 = vmatpush1.msra.mxu0 0.0
      %2058 = vmatprep.subr.mxu0 0.0
      %2059 = vmatpush1.msra.mxu0 0.0
      %2060 = vmatprep.subr.mxu0 0.0
      %2061 = vmatpush1.msra.mxu0 0.0
      %2062 = vmatprep.subr.mxu0 0.0
      %2063 = vmatpush1.msra.mxu0 0.0
      %2064 = vmatprep.subr.mxu0 0.0
      %2065 = vmatpush1.msra.mxu0 0.0
      %2066 = vmatprep.subr.mxu0 0.0
      %2067 = vmatpush1.msra.mxu0 0.0
      %2068 = vmatprep.subr.mxu0 0.0
      %2069 = vmatpush1.msra.mxu0 0.0
      %2070 = vmatprep.subr.mxu0 0.0
      %2071 = vmatpush1.msra.mxu0 0.0
      %2072 = vmatprep.subr.mxu0 0.0
      %2073 = vmatpush1.msra.mxu0 0.0
      %2074 = vmatprep.subr.mxu0 0.0
      %2075 = vmatpush1.msra.mxu0 0.0
      %2076 = vmatprep.subr.mxu0 0.0
      %2077 = vmatpush1.msra.mxu0 0.0
      %2078 = vmatprep.subr.mxu0 0.0
      %2079 = vmatpush1.msra.mxu0 0.0
      %2080 = vmatprep.subr.mxu0 0.0
      %2081 = vmatpush1.msra.mxu0 0.0
      %2082 = vmatprep.subr.mxu0 0.0
      %2083 = vmatpush1.msra.mxu0 0.0
      %2084 = vmatprep.subr.mxu0 0.0
      %2085 = vmatpush1.msra.mxu0 0.0
      %2086 = vmatprep.subr.mxu0 0.0
      %2087 = vmatpush1.msra.mxu0 0.0
      %2088 = vmatprep.subr.mxu0 0.0
      %2089 = vmatpush1.msra.mxu0 0.0
      %2090 = vmatprep.subr.mxu0 0.0
      %2091 = vmatpush1.msra.mxu0 0.0
      %2092 = vmatprep.subr.mxu0 0.0
      %2093 = vmatpush1.msra.mxu0 0.0
      %2094 = vmatprep.subr.mxu0 0.0
      %2095 = vmatpush1.msra.mxu0 0.0
      %2096 = vmatprep.subr.mxu0 0.0
      %2097 = vmatpush1.msra.mxu0 0.0
      %2098 = vmatprep.subr.mxu0 0.0
      %2099 = vmatpush1.msra.mxu0 0.0
      %2100 = vmatprep.subr.mxu0 0.0
      %2101 = vmatpush1.msra.mxu0 0.0
      %2102 = vmatprep.subr.mxu0 0.0
      %2103 = vmatpush1.msra.mxu0 0.0
      %2104 = vmatprep.subr.mxu0 0.0
      %2105 = vmatpush1.msra.mxu0 0.0
      %2106 = vmatprep.mubr.f32.mxu0 0.0
      %2107 = vmatmul.mubr.f32.gmra.mrb[0].mxu0 %v2037
      %v2108 = vpop.f32.mrb[0].mxu0
      %v2109 = vadd.f32 0.0, %v2108
      %v2110 = vpop.f32.mrb[0].mxu0
      %v2111 = vadd.f32 0.0, %v2110
      %2112 = vmatprep.mubr.f32.mxu0 0.0
      %2113 = vmatmul.mubr.f32.gmra.mrb[0].mxu0 %v2040
      %v2114 = vpop.f32.mrb[0].mxu0
      %v2115 = vadd.f32 0.0, %v2114
      %v2116 = vpop.f32.mrb[0].mxu0
      %v2117 = vadd.f32 0.0, %v2116
      %2118 = vdwg.mxu0
      %v2120 = vsel %vm612, %v2009, 0
      %v2123 = vsel %vm612, %v2010, 0
      %2125 = vmatprep.subr.mxu0 %v2006
      %2126 = vmatpush1.msra.mxu0 %v2005
      %2127 = vmatprep.subr.mxu0 %v2008
      %2128 = vmatpush1.msra.mxu0 %v2007
      %2129 = vmatprep.subr.mxu0 0.0
      %2130 = vmatpush1.msra.mxu0 0.0
      %2131 = vmatprep.subr.mxu0 0.0
      %2132 = vmatpush1.msra.mxu0 0.0
      %2133 = vmatprep.subr.mxu0 0.0
      %2134 = vmatpush1.msra.mxu0 0.0
      %2135 = vmatprep.subr.mxu0 0.0
      %2136 = vmatpush1.msra.mxu0 0.0
      %2137 = vmatprep.subr.mxu0 0.0
      %2138 = vmatpush1.msra.mxu0 0.0
      %2139 = vmatprep.subr.mxu0 0.0
      %2140 = vmatpush1.msra.mxu0 0.0
      %2141 = vmatprep.subr.mxu0 0.0
      %2142 = vmatpush1.msra.mxu0 0.0
      %2143 = vmatprep.subr.mxu0 0.0
      %2144 = vmatpush1.msra.mxu0 0.0
      %2145 = vmatprep.subr.mxu0 0.0
      %2146 = vmatpush1.msra.mxu0 0.0
      %2147 = vmatprep.subr.mxu0 0.0
      %2148 = vmatpush1.msra.mxu0 0.0
      %2149 = vmatprep.subr.mxu0 0.0
      %2150 = vmatpush1.msra.mxu0 0.0
      %2151 = vmatprep.subr.mxu0 0.0
      %2152 = vmatpush1.msra.mxu0 0.0
      %2153 = vmatprep.subr.mxu0 0.0
      %2154 = vmatpush1.msra.mxu0 0.0
      %2155 = vmatprep.subr.mxu0 0.0
      %2156 = vmatpush1.msra.mxu0 0.0
      %2157 = vmatprep.subr.mxu0 0.0
      %2158 = vmatpush1.msra.mxu0 0.0
      %2159 = vmatprep.subr.mxu0 0.0
      %2160 = vmatpush1.msra.mxu0 0.0
      %2161 = vmatprep.subr.mxu0 0.0
      %2162 = vmatpush1.msra.mxu0 0.0
      %2163 = vmatprep.subr.mxu0 0.0
      %2164 = vmatpush1.msra.mxu0 0.0
      %2165 = vmatprep.subr.mxu0 0.0
      %2166 = vmatpush1.msra.mxu0 0.0
      %2167 = vmatprep.subr.mxu0 0.0
      %2168 = vmatpush1.msra.mxu0 0.0
      %2169 = vmatprep.subr.mxu0 0.0
      %2170 = vmatpush1.msra.mxu0 0.0
      %2171 = vmatprep.subr.mxu0 0.0
      %2172 = vmatpush1.msra.mxu0 0.0
      %2173 = vmatprep.subr.mxu0 0.0
      %2174 = vmatpush1.msra.mxu0 0.0
      %2175 = vmatprep.subr.mxu0 0.0
      %2176 = vmatpush1.msra.mxu0 0.0
      %2177 = vmatprep.subr.mxu0 0.0
      %2178 = vmatpush1.msra.mxu0 0.0
      %2179 = vmatprep.subr.mxu0 0.0
      %2180 = vmatpush1.msra.mxu0 0.0
      %2181 = vmatprep.subr.mxu0 0.0
      %2182 = vmatpush1.msra.mxu0 0.0
      %2183 = vmatprep.subr.mxu0 0.0
      %2184 = vmatpush1.msra.mxu0 0.0
      %2185 = vmatprep.subr.mxu0 0.0
      %2186 = vmatpush1.msra.mxu0 0.0
      %2187 = vmatprep.subr.mxu0 0.0
      %2188 = vmatpush1.msra.mxu0 0.0
      %2189 = vmatprep.mubr.f32.mxu0 0.0
      %2190 = vmatmul.mubr.f32.gmra.mrb[0].mxu0 %v2120
      %v2191 = vpop.f32.mrb[0].mxu0
      %v2192 = vadd.f32 %v2109, %v2191
      %v2193 = vpop.f32.mrb[0].mxu0
      %v2194 = vadd.f32 %v2111, %v2193
      %2195 = vmatprep.mubr.f32.mxu0 0.0
      %2196 = vmatmul.mubr.f32.gmra.mrb[0].mxu0 %v2123
      %v2197 = vpop.f32.mrb[0].mxu0
      %v2198 = vadd.f32 %v2115, %v2197
      %v2199 = vpop.f32.mrb[0].mxu0
      %v2200 = vadd.f32 %v2117, %v2199
      %2201 = vdwg.mxu0
      %2202 = vrot.lane.b32.xlu0 %v1980, 15
      %v2203 = vpop.permute.xlu0 %2202
      %2204 = vrot.lane.b32.xlu0 %v1982, 15
      %v2205 = vpop.permute.xlu0 %2204
      %2208 = vrot.lane.b32.xlu0 %v1979, 15
      %v2209 = vpop.permute.xlu0 %2208
      %2210 = vrot.lane.b32.xlu0 %v1981, 15
      %v2211 = vpop.permute.xlu0 %2210
      %v2212 = vsel %vm858, %v2209, %v2203
      %v2213 = vsel %vm858, %v2211, %v2205
      %v2218 = vsel %vm858, %v2203, %v2209
      %v2219 = vsel %vm858, %v2205, %v2211
      %v2220 = vmul.f32 %v2218, %v869
      %v2221 = vmul.f32 %v2212, %v873
      %v2222 = vmul.f32 %v2219, %v869
      %v2223 = vmul.f32 %v2213, %v873
      %s2224 = scalar_lea.vmem %s6, 32
      %v2225 = vld [vmem:[%s2224] sm:$0xff]
      %v2226 = vld [vmem:[%s2224 + $0x8] sm:$0xff]
      %v2228 = vsel %vm612, %v2225, 0
      %v2231 = vsel %vm612, %v2226, 0
      %2233 = vmatprep.subr.mxu0 %v2221
      %2234 = vmatpush1.msra.mxu0 %v2220
      %2235 = vmatprep.subr.mxu0 %v2223
      %2236 = vmatpush1.msra.mxu0 %v2222
      %2237 = vmatprep.subr.mxu0 0.0
      %2238 = vmatpush1.msra.mxu0 0.0
      %2239 = vmatprep.subr.mxu0 0.0
      %2240 = vmatpush1.msra.mxu0 0.0
      %2241 = vmatprep.subr.mxu0 0.0
      %2242 = vmatpush1.msra.mxu0 0.0
      %2243 = vmatprep.subr.mxu0 0.0
      %2244 = vmatpush1.msra.mxu0 0.0
      %2245 = vmatprep.subr.mxu0 0.0
      %2246 = vmatpush1.msra.mxu0 0.0
      %2247 = vmatprep.subr.mxu0 0.0
      %2248 = vmatpush1.msra.mxu0 0.0
      %2249 = vmatprep.subr.mxu0 0.0
      %2250 = vmatpush1.msra.mxu0 0.0
      %2251 = vmatprep.subr.mxu0 0.0
      %2252 = vmatpush1.msra.mxu0 0.0
      %2253 = vmatprep.subr.mxu0 0.0
      %2254 = vmatpush1.msra.mxu0 0.0
      %2255 = vmatprep.subr.mxu0 0.0
      %2256 = vmatpush1.msra.mxu0 0.0
      %2257 = vmatprep.subr.mxu0 0.0
      %2258 = vmatpush1.msra.mxu0 0.0
      %2259 = vmatprep.subr.mxu0 0.0
      %2260 = vmatpush1.msra.mxu0 0.0
      %2261 = vmatprep.subr.mxu0 0.0
      %2262 = vmatpush1.msra.mxu0 0.0
      %2263 = vmatprep.subr.mxu0 0.0
      %2264 = vmatpush1.msra.mxu0 0.0
      %2265 = vmatprep.subr.mxu0 0.0
      %2266 = vmatpush1.msra.mxu0 0.0
      %2267 = vmatprep.subr.mxu0 0.0
      %2268 = vmatpush1.msra.mxu0 0.0
      %2269 = vmatprep.subr.mxu0 0.0
      %2270 = vmatpush1.msra.mxu0 0.0
      %2271 = vmatprep.subr.mxu0 0.0
      %2272 = vmatpush1.msra.mxu0 0.0
      %2273 = vmatprep.subr.mxu0 0.0
      %2274 = vmatpush1.msra.mxu0 0.0
      %2275 = vmatprep.subr.mxu0 0.0
      %2276 = vmatpush1.msra.mxu0 0.0
      %2277 = vmatprep.subr.mxu0 0.0
      %2278 = vmatpush1.msra.mxu0 0.0
      %2279 = vmatprep.subr.mxu0 0.0
      %2280 = vmatpush1.msra.mxu0 0.0
      %2281 = vmatprep.subr.mxu0 0.0
      %2282 = vmatpush1.msra.mxu0 0.0
      %2283 = vmatprep.subr.mxu0 0.0
      %2284 = vmatpush1.msra.mxu0 0.0
      %2285 = vmatprep.subr.mxu0 0.0
      %2286 = vmatpush1.msra.mxu0 0.0
      %2287 = vmatprep.subr.mxu0 0.0
      %2288 = vmatpush1.msra.mxu0 0.0
      %2289 = vmatprep.subr.mxu0 0.0
      %2290 = vmatpush1.msra.mxu0 0.0
      %2291 = vmatprep.subr.mxu0 0.0
      %2292 = vmatpush1.msra.mxu0 0.0
      %2293 = vmatprep.subr.mxu0 0.0
      %2294 = vmatpush1.msra.mxu0 0.0
      %2295 = vmatprep.subr.mxu0 0.0
      %2296 = vmatpush1.msra.mxu0 0.0
      %2297 = vmatprep.mubr.f32.mxu0 0.0
      %2298 = vmatmul.mubr.f32.gmra.mrb[0].mxu0 %v2228
      %v2299 = vpop.f32.mrb[0].mxu0
      %v2300 = vadd.f32 0.0, %v2299
      %v2301 = vpop.f32.mrb[0].mxu0
      %v2302 = vadd.f32 0.0, %v2301
      %2303 = vmatprep.mubr.f32.mxu0 0.0
      %2304 = vmatmul.mubr.f32.gmra.mrb[0].mxu0 %v2231
      %v2305 = vpop.f32.mrb[0].mxu0
      %v2306 = vadd.f32 0.0, %v2305
      %v2307 = vpop.f32.mrb[0].mxu0
      %v2308 = vadd.f32 0.0, %v2307
      %2309 = vdwg.mxu0
      %v2310 = vadd.f32 %v2192, %v2300
      %v2311 = vadd.f32 %v2194, %v2302
      %v2312 = vadd.f32 %v2198, %v2306
      %v2313 = vadd.f32 %v2200, %v2308
      %2314 = vrot.lane.b32.xlu0 %v1980, 1
      %v2315 = vpop.permute.xlu0 %2314
      %2316 = vrot.lane.b32.xlu0 %v1982, 1
      %v2317 = vpop.permute.xlu0 %2316
      %2320 = vrot.lane.b32.xlu0 %v1979, 1
      %v2321 = vpop.permute.xlu0 %2320
      %2322 = vrot.lane.b32.xlu0 %v1981, 1
      %v2323 = vpop.permute.xlu0 %2322
      %v2324 = vsel %vm1003, %v2321, %v2315
      %v2325 = vsel %vm1003, %v2323, %v2317
      %v2330 = vsel %vm1003, %v2315, %v2321
      %v2331 = vsel %vm1003, %v2317, %v2323
      %v2332 = vmul.f32 %v2330, %v1014
      %v2333 = vmul.f32 %v2324, %v1018
      %v2334 = vmul.f32 %v2331, %v1014
      %v2335 = vmul.f32 %v2325, %v1018
      %s2336 = scalar_lea.vmem %s6, 48
      %v2337 = vld [vmem:[%s2336] sm:$0xff]
      %v2338 = vld [vmem:[%s2336 + $0x8] sm:$0xff]
      %v2340 = vsel %vm612, %v2337, 0
      %v2343 = vsel %vm612, %v2338, 0
      %2345 = vmatprep.subr.mxu0 %v2333
      %2346 = vmatpush1.msra.mxu0 %v2332
      %2347 = vmatprep.subr.mxu0 %v2335
      %2348 = vmatpush1.msra.mxu0 %v2334
      %2349 = vmatprep.subr.mxu0 0.0
      %2350 = vmatpush1.msra.mxu0 0.0
      %2351 = vmatprep.subr.mxu0 0.0
      %2352 = vmatpush1.msra.mxu0 0.0
      %2353 = vmatprep.subr.mxu0 0.0
      %2354 = vmatpush1.msra.mxu0 0.0
      %2355 = vmatprep.subr.mxu0 0.0
      %2356 = vmatpush1.msra.mxu0 0.0
      %2357 = vmatprep.subr.mxu0 0.0
      %2358 = vmatpush1.msra.mxu0 0.0
      %2359 = vmatprep.subr.mxu0 0.0
      %2360 = vmatpush1.msra.mxu0 0.0
      %2361 = vmatprep.subr.mxu0 0.0
      %2362 = vmatpush1.msra.mxu0 0.0
      %2363 = vmatprep.subr.mxu0 0.0
      %2364 = vmatpush1.msra.mxu0 0.0
      %2365 = vmatprep.subr.mxu0 0.0
      %2366 = vmatpush1.msra.mxu0 0.0
      %2367 = vmatprep.subr.mxu0 0.0
      %2368 = vmatpush1.msra.mxu0 0.0
      %2369 = vmatprep.subr.mxu0 0.0
      %2370 = vmatpush1.msra.mxu0 0.0
      %2371 = vmatprep.subr.mxu0 0.0
      %2372 = vmatpush1.msra.mxu0 0.0
      %2373 = vmatprep.subr.mxu0 0.0
      %2374 = vmatpush1.msra.mxu0 0.0
      %2375 = vmatprep.subr.mxu0 0.0
      %2376 = vmatpush1.msra.mxu0 0.0
      %2377 = vmatprep.subr.mxu0 0.0
      %2378 = vmatpush1.msra.mxu0 0.0
      %2379 = vmatprep.subr.mxu0 0.0
      %2380 = vmatpush1.msra.mxu0 0.0
      %2381 = vmatprep.subr.mxu0 0.0
      %2382 = vmatpush1.msra.mxu0 0.0
      %2383 = vmatprep.subr.mxu0 0.0
      %2384 = vmatpush1.msra.mxu0 0.0
      %2385 = vmatprep.subr.mxu0 0.0
      %2386 = vmatpush1.msra.mxu0 0.0
      %2387 = vmatprep.subr.mxu0 0.0
      %2388 = vmatpush1.msra.mxu0 0.0
      %2389 = vmatprep.subr.mxu0 0.0
      %2390 = vmatpush1.msra.mxu0 0.0
      %2391 = vmatprep.subr.mxu0 0.0
      %2392 = vmatpush1.msra.mxu0 0.0
      %2393 = vmatprep.subr.mxu0 0.0
      %2394 = vmatpush1.msra.mxu0 0.0
      %2395 = vmatprep.subr.mxu0 0.0
      %2396 = vmatpush1.msra.mxu0 0.0
      %2397 = vmatprep.subr.mxu0 0.0
      %2398 = vmatpush1.msra.mxu0 0.0
      %2399 = vmatprep.subr.mxu0 0.0
      %2400 = vmatpush1.msra.mxu0 0.0
      %2401 = vmatprep.subr.mxu0 0.0
      %2402 = vmatpush1.msra.mxu0 0.0
      %2403 = vmatprep.subr.mxu0 0.0
      %2404 = vmatpush1.msra.mxu0 0.0
      %2405 = vmatprep.subr.mxu0 0.0
      %2406 = vmatpush1.msra.mxu0 0.0
      %2407 = vmatprep.subr.mxu0 0.0
      %2408 = vmatpush1.msra.mxu0 0.0
      %2409 = vmatprep.mubr.f32.mxu0 0.0
      %2410 = vmatmul.mubr.f32.gmra.mrb[0].mxu0 %v2340
      %v2411 = vpop.f32.mrb[0].mxu0
      %v2412 = vadd.f32 0.0, %v2411
      %v2413 = vpop.f32.mrb[0].mxu0
      %v2414 = vadd.f32 0.0, %v2413
      %2415 = vmatprep.mubr.f32.mxu0 0.0
      %2416 = vmatmul.mubr.f32.gmra.mrb[0].mxu0 %v2343
      %v2417 = vpop.f32.mrb[0].mxu0
      %v2418 = vadd.f32 0.0, %v2417
      %v2419 = vpop.f32.mrb[0].mxu0
      %v2420 = vadd.f32 0.0, %v2419
      %2421 = vdwg.mxu0
      %v2422 = vadd.f32 %v2310, %v2412
      %v2423 = vadd.f32 %v2311, %v2414
      %v2424 = vadd.f32 %v2312, %v2418
      %v2425 = vadd.f32 %v2313, %v2420
      %s2426 = scalar_lea.vmem %s6, 64
      %v2427 = vld [vmem:[%s2426] sm:$0xff]
      %v2428 = vld [vmem:[%s2426 + $0x8] sm:$0xff]
      %v2430 = vsel %vm612, %v2427, 0
      %v2433 = vsel %vm612, %v2428, 0
      %2435 = vmatprep.subr.mxu0 %v1980
      %2436 = vmatpush1.msra.mxu0 %v1979
      %2437 = vmatprep.subr.mxu0 %v1982
      %2438 = vmatpush1.msra.mxu0 %v1981
      %2439 = vmatprep.subr.mxu0 0.0
      %2440 = vmatpush1.msra.mxu0 0.0
      %2441 = vmatprep.subr.mxu0 0.0
      %2442 = vmatpush1.msra.mxu0 0.0
      %2443 = vmatprep.subr.mxu0 0.0
      %2444 = vmatpush1.msra.mxu0 0.0
      %2445 = vmatprep.subr.mxu0 0.0
      %2446 = vmatpush1.msra.mxu0 0.0
      %2447 = vmatprep.subr.mxu0 0.0
      %2448 = vmatpush1.msra.mxu0 0.0
      %2449 = vmatprep.subr.mxu0 0.0
      %2450 = vmatpush1.msra.mxu0 0.0
      %2451 = vmatprep.subr.mxu0 0.0
      %2452 = vmatpush1.msra.mxu0 0.0
      %2453 = vmatprep.subr.mxu0 0.0
      %2454 = vmatpush1.msra.mxu0 0.0
      %2455 = vmatprep.subr.mxu0 0.0
      %2456 = vmatpush1.msra.mxu0 0.0
      %2457 = vmatprep.subr.mxu0 0.0
      %2458 = vmatpush1.msra.mxu0 0.0
      %2459 = vmatprep.subr.mxu0 0.0
      %2460 = vmatpush1.msra.mxu0 0.0
      %2461 = vmatprep.subr.mxu0 0.0
      %2462 = vmatpush1.msra.mxu0 0.0
      %2463 = vmatprep.subr.mxu0 0.0
      %2464 = vmatpush1.msra.mxu0 0.0
      %2465 = vmatprep.subr.mxu0 0.0
      %2466 = vmatpush1.msra.mxu0 0.0
      %2467 = vmatprep.subr.mxu0 0.0
      %2468 = vmatpush1.msra.mxu0 0.0
      %2469 = vmatprep.subr.mxu0 0.0
      %2470 = vmatpush1.msra.mxu0 0.0
      %2471 = vmatprep.subr.mxu0 0.0
      %2472 = vmatpush1.msra.mxu0 0.0
      %2473 = vmatprep.subr.mxu0 0.0
      %2474 = vmatpush1.msra.mxu0 0.0
      %2475 = vmatprep.subr.mxu0 0.0
      %2476 = vmatpush1.msra.mxu0 0.0
      %2477 = vmatprep.subr.mxu0 0.0
      %2478 = vmatpush1.msra.mxu0 0.0
      %2479 = vmatprep.subr.mxu0 0.0
      %2480 = vmatpush1.msra.mxu0 0.0
      %2481 = vmatprep.subr.mxu0 0.0
      %2482 = vmatpush1.msra.mxu0 0.0
      %2483 = vmatprep.subr.mxu0 0.0
      %2484 = vmatpush1.msra.mxu0 0.0
      %2485 = vmatprep.subr.mxu0 0.0
      %2486 = vmatpush1.msra.mxu0 0.0
      %2487 = vmatprep.subr.mxu0 0.0
      %2488 = vmatpush1.msra.mxu0 0.0
      %2489 = vmatprep.subr.mxu0 0.0
      %2490 = vmatpush1.msra.mxu0 0.0
      %2491 = vmatprep.subr.mxu0 0.0
      %2492 = vmatpush1.msra.mxu0 0.0
      %2493 = vmatprep.subr.mxu0 0.0
      %2494 = vmatpush1.msra.mxu0 0.0
      %2495 = vmatprep.subr.mxu0 0.0
      %2496 = vmatpush1.msra.mxu0 0.0
      %2497 = vmatprep.subr.mxu0 0.0
      %2498 = vmatpush1.msra.mxu0 0.0
      %2499 = vmatprep.mubr.f32.mxu0 0.0
      %2500 = vmatmul.mubr.f32.gmra.mrb[0].mxu0 %v2430
      %v2501 = vpop.f32.mrb[0].mxu0
      %v2502 = vadd.f32 0.0, %v2501
      %v2503 = vpop.f32.mrb[0].mxu0
      %v2504 = vadd.f32 0.0, %v2503
      %2505 = vmatprep.mubr.f32.mxu0 0.0
      %2506 = vmatmul.mubr.f32.gmra.mrb[0].mxu0 %v2433
      %v2507 = vpop.f32.mrb[0].mxu0
      %v2508 = vadd.f32 0.0, %v2507
      %v2509 = vpop.f32.mrb[0].mxu0
      %v2510 = vadd.f32 0.0, %v2509
      %2511 = vdwg.mxu0
      %v2512 = vadd.f32 %v2422, %v2502
      %v2513 = vadd.f32 %v2423, %v2504
      %v2514 = vadd.f32 %v2424, %v2508
      %v2515 = vadd.f32 %v2425, %v2510
      %2516 = vrot.lane.b32.xlu0 %v1979, 127
      %v2517 = vpop.permute.xlu0 %2516
      %2518 = vrot.lane.b32.xlu0 %v1980, 127
      %v2519 = vpop.permute.xlu0 %2518
      %2520 = vrot.lane.b32.xlu0 %v1981, 127
      %v2521 = vpop.permute.xlu0 %2520
      %2522 = vrot.lane.b32.xlu0 %v1982, 127
      %v2523 = vpop.permute.xlu0 %2522
      %v2524 = vsel %vm1265, %v2517, %v2519
      %v2525 = vsel %vm1265, %v2521, %v2523
      %v2532 = vsel %vm1265, %v2519, %v2517
      %v2533 = vsel %vm1265, %v2523, %v2521
      %v2534 = vmul.f32 %v2524, %v1277
      %v2535 = vmul.f32 %v2532, %v1281
      %v2536 = vmul.f32 %v2525, %v1277
      %v2537 = vmul.f32 %v2533, %v1281
      %s2538 = scalar_lea.vmem %s6, 80
      %v2539 = vld [vmem:[%s2538] sm:$0xff]
      %v2540 = vld [vmem:[%s2538 + $0x8] sm:$0xff]
      %v2542 = vsel %vm612, %v2539, 0
      %v2545 = vsel %vm612, %v2540, 0
      %2547 = vmatprep.subr.mxu0 %v2535
      %2548 = vmatpush1.msra.mxu0 %v2534
      %2549 = vmatprep.subr.mxu0 %v2537
      %2550 = vmatpush1.msra.mxu0 %v2536
      %2551 = vmatprep.subr.mxu0 0.0
      %2552 = vmatpush1.msra.mxu0 0.0
      %2553 = vmatprep.subr.mxu0 0.0
      %2554 = vmatpush1.msra.mxu0 0.0
      %2555 = vmatprep.subr.mxu0 0.0
      %2556 = vmatpush1.msra.mxu0 0.0
      %2557 = vmatprep.subr.mxu0 0.0
      %2558 = vmatpush1.msra.mxu0 0.0
      %2559 = vmatprep.subr.mxu0 0.0
      %2560 = vmatpush1.msra.mxu0 0.0
      %2561 = vmatprep.subr.mxu0 0.0
      %2562 = vmatpush1.msra.mxu0 0.0
      %2563 = vmatprep.subr.mxu0 0.0
      %2564 = vmatpush1.msra.mxu0 0.0
      %2565 = vmatprep.subr.mxu0 0.0
      %2566 = vmatpush1.msra.mxu0 0.0
      %2567 = vmatprep.subr.mxu0 0.0
      %2568 = vmatpush1.msra.mxu0 0.0
      %2569 = vmatprep.subr.mxu0 0.0
      %2570 = vmatpush1.msra.mxu0 0.0
      %2571 = vmatprep.subr.mxu0 0.0
      %2572 = vmatpush1.msra.mxu0 0.0
      %2573 = vmatprep.subr.mxu0 0.0
      %2574 = vmatpush1.msra.mxu0 0.0
      %2575 = vmatprep.subr.mxu0 0.0
      %2576 = vmatpush1.msra.mxu0 0.0
      %2577 = vmatprep.subr.mxu0 0.0
      %2578 = vmatpush1.msra.mxu0 0.0
      %2579 = vmatprep.subr.mxu0 0.0
      %2580 = vmatpush1.msra.mxu0 0.0
      %2581 = vmatprep.subr.mxu0 0.0
      %2582 = vmatpush1.msra.mxu0 0.0
      %2583 = vmatprep.subr.mxu0 0.0
      %2584 = vmatpush1.msra.mxu0 0.0
      %2585 = vmatprep.subr.mxu0 0.0
      %2586 = vmatpush1.msra.mxu0 0.0
      %2587 = vmatprep.subr.mxu0 0.0
      %2588 = vmatpush1.msra.mxu0 0.0
      %2589 = vmatprep.subr.mxu0 0.0
      %2590 = vmatpush1.msra.mxu0 0.0
      %2591 = vmatprep.subr.mxu0 0.0
      %2592 = vmatpush1.msra.mxu0 0.0
      %2593 = vmatprep.subr.mxu0 0.0
      %2594 = vmatpush1.msra.mxu0 0.0
      %2595 = vmatprep.subr.mxu0 0.0
      %2596 = vmatpush1.msra.mxu0 0.0
      %2597 = vmatprep.subr.mxu0 0.0
      %2598 = vmatpush1.msra.mxu0 0.0
      %2599 = vmatprep.subr.mxu0 0.0
      %2600 = vmatpush1.msra.mxu0 0.0
      %2601 = vmatprep.subr.mxu0 0.0
      %2602 = vmatpush1.msra.mxu0 0.0
      %2603 = vmatprep.subr.mxu0 0.0
      %2604 = vmatpush1.msra.mxu0 0.0
      %2605 = vmatprep.subr.mxu0 0.0
      %2606 = vmatpush1.msra.mxu0 0.0
      %2607 = vmatprep.subr.mxu0 0.0
      %2608 = vmatpush1.msra.mxu0 0.0
      %2609 = vmatprep.subr.mxu0 0.0
      %2610 = vmatpush1.msra.mxu0 0.0
      %2611 = vmatprep.mubr.f32.mxu0 0.0
      %2612 = vmatmul.mubr.f32.gmra.mrb[0].mxu0 %v2542
      %v2613 = vpop.f32.mrb[0].mxu0
      %v2614 = vadd.f32 0.0, %v2613
      %v2615 = vpop.f32.mrb[0].mxu0
      %v2616 = vadd.f32 0.0, %v2615
      %2617 = vmatprep.mubr.f32.mxu0 0.0
      %2618 = vmatmul.mubr.f32.gmra.mrb[0].mxu0 %v2545
      %v2619 = vpop.f32.mrb[0].mxu0
      %v2620 = vadd.f32 0.0, %v2619
      %v2621 = vpop.f32.mrb[0].mxu0
      %v2622 = vadd.f32 0.0, %v2621
      %2623 = vdwg.mxu0
      %v2624 = vadd.f32 %v2512, %v2614
      %v2625 = vadd.f32 %v2513, %v2616
      %v2626 = vadd.f32 %v2514, %v2620
      %v2627 = vadd.f32 %v2515, %v2622
      %2628 = vrot.lane.b32.xlu0 %v1979, 113
      %v2629 = vpop.permute.xlu0 %2628
      %2630 = vrot.lane.b32.xlu0 %v1980, 113
      %v2631 = vpop.permute.xlu0 %2630
      %2632 = vrot.lane.b32.xlu0 %v1981, 113
      %v2633 = vpop.permute.xlu0 %2632
      %2634 = vrot.lane.b32.xlu0 %v1982, 113
      %v2635 = vpop.permute.xlu0 %2634
      %v2636 = vsel %vm1410, %v2629, %v2631
      %v2637 = vsel %vm1410, %v2633, %v2635
      %v2644 = vsel %vm1410, %v2631, %v2629
      %v2645 = vsel %vm1410, %v2635, %v2633
      %v2646 = vmul.f32 %v2636, %v1422
      %v2647 = vmul.f32 %v2644, %v1426
      %v2648 = vmul.f32 %v2637, %v1422
      %v2649 = vmul.f32 %v2645, %v1426
      %s2650 = scalar_lea.vmem %s6, 96
      %v2651 = vld [vmem:[%s2650] sm:$0xff]
      %v2652 = vld [vmem:[%s2650 + $0x8] sm:$0xff]
      %v2654 = vsel %vm612, %v2651, 0
      %v2657 = vsel %vm612, %v2652, 0
      %2659 = vmatprep.subr.mxu0 %v2647
      %2660 = vmatpush1.msra.mxu0 %v2646
      %2661 = vmatprep.subr.mxu0 %v2649
      %2662 = vmatpush1.msra.mxu0 %v2648
      %2663 = vmatprep.subr.mxu0 0.0
      %2664 = vmatpush1.msra.mxu0 0.0
      %2665 = vmatprep.subr.mxu0 0.0
      %2666 = vmatpush1.msra.mxu0 0.0
      %2667 = vmatprep.subr.mxu0 0.0
      %2668 = vmatpush1.msra.mxu0 0.0
      %2669 = vmatprep.subr.mxu0 0.0
      %2670 = vmatpush1.msra.mxu0 0.0
      %2671 = vmatprep.subr.mxu0 0.0
      %2672 = vmatpush1.msra.mxu0 0.0
      %2673 = vmatprep.subr.mxu0 0.0
      %2674 = vmatpush1.msra.mxu0 0.0
      %2675 = vmatprep.subr.mxu0 0.0
      %2676 = vmatpush1.msra.mxu0 0.0
      %2677 = vmatprep.subr.mxu0 0.0
      %2678 = vmatpush1.msra.mxu0 0.0
      %2679 = vmatprep.subr.mxu0 0.0
      %2680 = vmatpush1.msra.mxu0 0.0
      %2681 = vmatprep.subr.mxu0 0.0
      %2682 = vmatpush1.msra.mxu0 0.0
      %2683 = vmatprep.subr.mxu0 0.0
      %2684 = vmatpush1.msra.mxu0 0.0
      %2685 = vmatprep.subr.mxu0 0.0
      %2686 = vmatpush1.msra.mxu0 0.0
      %2687 = vmatprep.subr.mxu0 0.0
      %2688 = vmatpush1.msra.mxu0 0.0
      %2689 = vmatprep.subr.mxu0 0.0
      %2690 = vmatpush1.msra.mxu0 0.0
      %2691 = vmatprep.subr.mxu0 0.0
      %2692 = vmatpush1.msra.mxu0 0.0
      %2693 = vmatprep.subr.mxu0 0.0
      %2694 = vmatpush1.msra.mxu0 0.0
      %2695 = vmatprep.subr.mxu0 0.0
      %2696 = vmatpush1.msra.mxu0 0.0
      %2697 = vmatprep.subr.mxu0 0.0
      %2698 = vmatpush1.msra.mxu0 0.0
      %2699 = vmatprep.subr.mxu0 0.0
      %2700 = vmatpush1.msra.mxu0 0.0
      %2701 = vmatprep.subr.mxu0 0.0
      %2702 = vmatpush1.msra.mxu0 0.0
      %2703 = vmatprep.subr.mxu0 0.0
      %2704 = vmatpush1.msra.mxu0 0.0
      %2705 = vmatprep.subr.mxu0 0.0
      %2706 = vmatpush1.msra.mxu0 0.0
      %2707 = vmatprep.subr.mxu0 0.0
      %2708 = vmatpush1.msra.mxu0 0.0
      %2709 = vmatprep.subr.mxu0 0.0
      %2710 = vmatpush1.msra.mxu0 0.0
      %2711 = vmatprep.subr.mxu0 0.0
      %2712 = vmatpush1.msra.mxu0 0.0
      %2713 = vmatprep.subr.mxu0 0.0
      %2714 = vmatpush1.msra.mxu0 0.0
      %2715 = vmatprep.subr.mxu0 0.0
      %2716 = vmatpush1.msra.mxu0 0.0
      %2717 = vmatprep.subr.mxu0 0.0
      %2718 = vmatpush1.msra.mxu0 0.0
      %2719 = vmatprep.subr.mxu0 0.0
      %2720 = vmatpush1.msra.mxu0 0.0
      %2721 = vmatprep.subr.mxu0 0.0
      %2722 = vmatpush1.msra.mxu0 0.0
      %2723 = vmatprep.mubr.f32.mxu0 0.0
      %2724 = vmatmul.mubr.f32.gmra.mrb[0].mxu0 %v2654
      %v2725 = vpop.f32.mrb[0].mxu0
      %v2726 = vadd.f32 0.0, %v2725
      %v2727 = vpop.f32.mrb[0].mxu0
      %v2728 = vadd.f32 0.0, %v2727
      %2729 = vmatprep.mubr.f32.mxu0 0.0
      %2730 = vmatmul.mubr.f32.gmra.mrb[0].mxu0 %v2657
      %v2731 = vpop.f32.mrb[0].mxu0
      %v2732 = vadd.f32 0.0, %v2731
      %v2733 = vpop.f32.mrb[0].mxu0
      %v2734 = vadd.f32 0.0, %v2733
      %2735 = vdwg.mxu0
      %v2736 = vadd.f32 %v2624, %v2726
      %v2737 = vadd.f32 %v2625, %v2728
      %v2738 = vadd.f32 %v2626, %v2732
      %v2739 = vadd.f32 %v2627, %v2734
      %2740 = vrot.lane.b32.xlu0 %v1979, 112
      %v2741 = vpop.permute.xlu0 %2740
      %2742 = vrot.lane.b32.xlu0 %v1980, 112
      %v2743 = vpop.permute.xlu0 %2742
      %2744 = vrot.lane.b32.xlu0 %v1981, 112
      %v2745 = vpop.permute.xlu0 %2744
      %2746 = vrot.lane.b32.xlu0 %v1982, 112
      %v2747 = vpop.permute.xlu0 %2746
      %v2748 = vsel %vm1555, %v2741, %v2743
      %v2749 = vsel %vm1555, %v2745, %v2747
      %v2756 = vsel %vm1555, %v2743, %v2741
      %v2757 = vsel %vm1555, %v2747, %v2745
      %v2758 = vmul.f32 %v2748, %v1567
      %v2759 = vmul.f32 %v2756, %v1571
      %v2760 = vmul.f32 %v2749, %v1567
      %v2761 = vmul.f32 %v2757, %v1571
      %s2762 = scalar_lea.vmem %s6, 112
      %v2763 = vld [vmem:[%s2762] sm:$0xff]
      %v2764 = vld [vmem:[%s2762 + $0x8] sm:$0xff]
      %v2766 = vsel %vm612, %v2763, 0
      %v2769 = vsel %vm612, %v2764, 0
      %2771 = vmatprep.subr.mxu0 %v2759
      %2772 = vmatpush1.msra.mxu0 %v2758
      %2773 = vmatprep.subr.mxu0 %v2761
      %2774 = vmatpush1.msra.mxu0 %v2760
      %2775 = vmatprep.subr.mxu0 0.0
      %2776 = vmatpush1.msra.mxu0 0.0
      %2777 = vmatprep.subr.mxu0 0.0
      %2778 = vmatpush1.msra.mxu0 0.0
      %2779 = vmatprep.subr.mxu0 0.0
      %2780 = vmatpush1.msra.mxu0 0.0
      %2781 = vmatprep.subr.mxu0 0.0
      %2782 = vmatpush1.msra.mxu0 0.0
      %2783 = vmatprep.subr.mxu0 0.0
      %2784 = vmatpush1.msra.mxu0 0.0
      %2785 = vmatprep.subr.mxu0 0.0
      %2786 = vmatpush1.msra.mxu0 0.0
      %2787 = vmatprep.subr.mxu0 0.0
      %2788 = vmatpush1.msra.mxu0 0.0
      %2789 = vmatprep.subr.mxu0 0.0
      %2790 = vmatpush1.msra.mxu0 0.0
      %2791 = vmatprep.subr.mxu0 0.0
      %2792 = vmatpush1.msra.mxu0 0.0
      %2793 = vmatprep.subr.mxu0 0.0
      %2794 = vmatpush1.msra.mxu0 0.0
      %2795 = vmatprep.subr.mxu0 0.0
      %2796 = vmatpush1.msra.mxu0 0.0
      %2797 = vmatprep.subr.mxu0 0.0
      %2798 = vmatpush1.msra.mxu0 0.0
      %2799 = vmatprep.subr.mxu0 0.0
      %2800 = vmatpush1.msra.mxu0 0.0
      %2801 = vmatprep.subr.mxu0 0.0
      %2802 = vmatpush1.msra.mxu0 0.0
      %2803 = vmatprep.subr.mxu0 0.0
      %2804 = vmatpush1.msra.mxu0 0.0
      %2805 = vmatprep.subr.mxu0 0.0
      %2806 = vmatpush1.msra.mxu0 0.0
      %2807 = vmatprep.subr.mxu0 0.0
      %2808 = vmatpush1.msra.mxu0 0.0
      %2809 = vmatprep.subr.mxu0 0.0
      %2810 = vmatpush1.msra.mxu0 0.0
      %2811 = vmatprep.subr.mxu0 0.0
      %2812 = vmatpush1.msra.mxu0 0.0
      %2813 = vmatprep.subr.mxu0 0.0
      %2814 = vmatpush1.msra.mxu0 0.0
      %2815 = vmatprep.subr.mxu0 0.0
      %2816 = vmatpush1.msra.mxu0 0.0
      %2817 = vmatprep.subr.mxu0 0.0
      %2818 = vmatpush1.msra.mxu0 0.0
      %2819 = vmatprep.subr.mxu0 0.0
      %2820 = vmatpush1.msra.mxu0 0.0
      %2821 = vmatprep.subr.mxu0 0.0
      %2822 = vmatpush1.msra.mxu0 0.0
      %2823 = vmatprep.subr.mxu0 0.0
      %2824 = vmatpush1.msra.mxu0 0.0
      %2825 = vmatprep.subr.mxu0 0.0
      %2826 = vmatpush1.msra.mxu0 0.0
      %2827 = vmatprep.subr.mxu0 0.0
      %2828 = vmatpush1.msra.mxu0 0.0
      %2829 = vmatprep.subr.mxu0 0.0
      %2830 = vmatpush1.msra.mxu0 0.0
      %2831 = vmatprep.subr.mxu0 0.0
      %2832 = vmatpush1.msra.mxu0 0.0
      %2833 = vmatprep.subr.mxu0 0.0
      %2834 = vmatpush1.msra.mxu0 0.0
      %2835 = vmatprep.mubr.f32.mxu0 0.0
      %2836 = vmatmul.mubr.f32.gmra.mrb[0].mxu0 %v2766
      %v2837 = vpop.f32.mrb[0].mxu0
      %v2838 = vadd.f32 0.0, %v2837
      %v2839 = vpop.f32.mrb[0].mxu0
      %v2840 = vadd.f32 0.0, %v2839
      %2841 = vmatprep.mubr.f32.mxu0 0.0
      %2842 = vmatmul.mubr.f32.gmra.mrb[0].mxu0 %v2769
      %v2843 = vpop.f32.mrb[0].mxu0
      %v2844 = vadd.f32 0.0, %v2843
      %v2845 = vpop.f32.mrb[0].mxu0
      %v2846 = vadd.f32 0.0, %v2845
      %2847 = vdwg.mxu0
      %v2848 = vadd.f32 %v2736, %v2838
      %v2849 = vadd.f32 %v2737, %v2840
      %v2850 = vadd.f32 %v2738, %v2844
      %v2851 = vadd.f32 %v2739, %v2846
      %2852 = vrot.lane.b32.xlu0 %v1979, 111
      %v2853 = vpop.permute.xlu0 %2852
      %2854 = vrot.lane.b32.xlu0 %v1980, 111
      %v2855 = vpop.permute.xlu0 %2854
      %2856 = vrot.lane.b32.xlu0 %v1981, 111
      %v2857 = vpop.permute.xlu0 %2856
      %2858 = vrot.lane.b32.xlu0 %v1982, 111
      %v2859 = vpop.permute.xlu0 %2858
      %v2860 = vsel %vm1700, %v2853, %v2855
      %v2861 = vsel %vm1700, %v2857, %v2859
      %v2868 = vsel %vm1700, %v2855, %v2853
      %v2869 = vsel %vm1700, %v2859, %v2857
      %v2870 = vmul.f32 %v2860, %v1712
      %v2871 = vmul.f32 %v2868, %v1716
      %v2872 = vmul.f32 %v2861, %v1712
      %v2873 = vmul.f32 %v2869, %v1716
      %s2874 = scalar_lea.vmem %s6, 128
      %v2875 = vld [vmem:[%s2874] sm:$0xff]
      %v2876 = vld [vmem:[%s2874 + $0x8] sm:$0xff]
      %v2878 = vsel %vm612, %v2875, 0
      %v2881 = vsel %vm612, %v2876, 0
      %2883 = vmatprep.subr.mxu0 %v2871
      %2884 = vmatpush1.msra.mxu0 %v2870
      %2885 = vmatprep.subr.mxu0 %v2873
      %2886 = vmatpush1.msra.mxu0 %v2872
      %2887 = vmatprep.subr.mxu0 0.0
      %2888 = vmatpush1.msra.mxu0 0.0
      %2889 = vmatprep.subr.mxu0 0.0
      %2890 = vmatpush1.msra.mxu0 0.0
      %2891 = vmatprep.subr.mxu0 0.0
      %2892 = vmatpush1.msra.mxu0 0.0
      %2893 = vmatprep.subr.mxu0 0.0
      %2894 = vmatpush1.msra.mxu0 0.0
      %2895 = vmatprep.subr.mxu0 0.0
      %2896 = vmatpush1.msra.mxu0 0.0
      %2897 = vmatprep.subr.mxu0 0.0
      %2898 = vmatpush1.msra.mxu0 0.0
      %2899 = vmatprep.subr.mxu0 0.0
      %2900 = vmatpush1.msra.mxu0 0.0
      %2901 = vmatprep.subr.mxu0 0.0
      %2902 = vmatpush1.msra.mxu0 0.0
      %2903 = vmatprep.subr.mxu0 0.0
      %2904 = vmatpush1.msra.mxu0 0.0
      %2905 = vmatprep.subr.mxu0 0.0
      %2906 = vmatpush1.msra.mxu0 0.0
      %2907 = vmatprep.subr.mxu0 0.0
      %2908 = vmatpush1.msra.mxu0 0.0
      %2909 = vmatprep.subr.mxu0 0.0
      %2910 = vmatpush1.msra.mxu0 0.0
      %2911 = vmatprep.subr.mxu0 0.0
      %2912 = vmatpush1.msra.mxu0 0.0
      %2913 = vmatprep.subr.mxu0 0.0
      %2914 = vmatpush1.msra.mxu0 0.0
      %2915 = vmatprep.subr.mxu0 0.0
      %2916 = vmatpush1.msra.mxu0 0.0
      %2917 = vmatprep.subr.mxu0 0.0
      %2918 = vmatpush1.msra.mxu0 0.0
      %2919 = vmatprep.subr.mxu0 0.0
      %2920 = vmatpush1.msra.mxu0 0.0
      %2921 = vmatprep.subr.mxu0 0.0
      %2922 = vmatpush1.msra.mxu0 0.0
      %2923 = vmatprep.subr.mxu0 0.0
      %2924 = vmatpush1.msra.mxu0 0.0
      %2925 = vmatprep.subr.mxu0 0.0
      %2926 = vmatpush1.msra.mxu0 0.0
      %2927 = vmatprep.subr.mxu0 0.0
      %2928 = vmatpush1.msra.mxu0 0.0
      %2929 = vmatprep.subr.mxu0 0.0
      %2930 = vmatpush1.msra.mxu0 0.0
      %2931 = vmatprep.subr.mxu0 0.0
      %2932 = vmatpush1.msra.mxu0 0.0
      %2933 = vmatprep.subr.mxu0 0.0
      %2934 = vmatpush1.msra.mxu0 0.0
      %2935 = vmatprep.subr.mxu0 0.0
      %2936 = vmatpush1.msra.mxu0 0.0
      %2937 = vmatprep.subr.mxu0 0.0
      %2938 = vmatpush1.msra.mxu0 0.0
      %2939 = vmatprep.subr.mxu0 0.0
      %2940 = vmatpush1.msra.mxu0 0.0
      %2941 = vmatprep.subr.mxu0 0.0
      %2942 = vmatpush1.msra.mxu0 0.0
      %2943 = vmatprep.subr.mxu0 0.0
      %2944 = vmatpush1.msra.mxu0 0.0
      %2945 = vmatprep.subr.mxu0 0.0
      %2946 = vmatpush1.msra.mxu0 0.0
      %2947 = vmatprep.mubr.f32.mxu0 0.0
      %2948 = vmatmul.mubr.f32.gmra.mrb[0].mxu0 %v2878
      %v2949 = vpop.f32.mrb[0].mxu0
      %v2950 = vadd.f32 0.0, %v2949
      %v2951 = vpop.f32.mrb[0].mxu0
      %v2952 = vadd.f32 0.0, %v2951
      %2953 = vmatprep.mubr.f32.mxu0 0.0
      %2954 = vmatmul.mubr.f32.gmra.mrb[0].mxu0 %v2881
      %v2955 = vpop.f32.mrb[0].mxu0
      %v2956 = vadd.f32 0.0, %v2955
      %v2957 = vpop.f32.mrb[0].mxu0
      %v2958 = vadd.f32 0.0, %v2957
      %2959 = vdwg.mxu0
      %v2960 = vadd.f32 %v2848, %v2950
      %v2961 = vadd.f32 %v2849, %v2952
      %v2962 = vadd.f32 %v2850, %v2956
      %v2963 = vadd.f32 %v2851, %v2958
      %v2964 = vld [vmem:[%s7] sm:$0xff]
      %v2965 = vld [vmem:[%s7 + $0x8] sm:$0xff]
      %2967 = vset.pattern.permute.xlu0 0
      %2968 = vperm.xlu0 %2967, %v2964
      %v2969 = vpop.permute.xlu0 %2968
      %2972 = vset.pattern.permute.xlu0 0
      %2973 = vperm.xlu0 %2972, %v2965
      %v2974 = vpop.permute.xlu0 %2973
      %v2976 = vadd.f32 %v2960, %v2969
      %v2977 = vadd.f32 %v2961, %v2969
      %v2978 = vadd.f32 %v2962, %v2974
      %v2979 = vadd.f32 %v2963, %v2974
      %v2980 = vmax.f32 %v2976, 0.0
      %v2981 = vmax.f32 %v2977, 0.0
      %v2982 = vmax.f32 %v2978, 0.0
      %v2983 = vmax.f32 %v2979, 0.0
      %v2984 = vld [vmem:[%s8] sm:$0xff]
      %v2985 = vld [vmem:[%s8 + $0x8] sm:$0xff]
      %v2986 = vld [vmem:[%s8 + $0x10] sm:$0xff]
      %v2987 = vld [vmem:[%s8 + $0x18] sm:$0xff]
      %v2988 = vld [vmem:[%s9] sm:$0xff]
      %v2989 = vld [vmem:[%s9 + $0x8] sm:$0xff]
      %v2990 = vld [vmem:[%s9 + $0x10] sm:$0xff]
      %v2991 = vld [vmem:[%s9 + $0x18] sm:$0xff]
      %2993 = vset.pattern.permute.xlu0 0
      %2994 = vperm.xlu0 %2993, %v2988
      %v2995 = vpop.permute.xlu0 %2994
      %2998 = vset.pattern.permute.xlu0 0
      %2999 = vperm.xlu0 %2998, %v2989
      %v3000 = vpop.permute.xlu0 %2999
      %3003 = vset.pattern.permute.xlu0 0
      %3004 = vperm.xlu0 %3003, %v2990
      %v3005 = vpop.permute.xlu0 %3004
      %3008 = vset.pattern.permute.xlu0 0
      %3009 = vperm.xlu0 %3008, %v2991
      %v3010 = vpop.permute.xlu0 %3009
      %v3013 = vsel %vm612, %v2984, 0
      %v3016 = vsel %vm612, %v2985, 0
      %v3019 = vsel %vm612, %v2986, 0
      %v3022 = vsel %vm612, %v2987, 0
      %3024 = vmatprep.subr.mxu0 %v2981
      %3025 = vmatpush1.msra.mxu0 %v2980
      %3026 = vmatprep.subr.mxu0 %v2983
      %3027 = vmatpush1.msra.mxu0 %v2982
      %3028 = vmatprep.subr.mxu0 0.0
      %3029 = vmatpush1.msra.mxu0 0.0
      %3030 = vmatprep.subr.mxu0 0.0
      %3031 = vmatpush1.msra.mxu0 0.0
      %3032 = vmatprep.subr.mxu0 0.0
      %3033 = vmatpush1.msra.mxu0 0.0
      %3034 = vmatprep.subr.mxu0 0.0
      %3035 = vmatpush1.msra.mxu0 0.0
      %3036 = vmatprep.subr.mxu0 0.0
      %3037 = vmatpush1.msra.mxu0 0.0
      %3038 = vmatprep.subr.mxu0 0.0
      %3039 = vmatpush1.msra.mxu0 0.0
      %3040 = vmatprep.subr.mxu0 0.0
      %3041 = vmatpush1.msra.mxu0 0.0
      %3042 = vmatprep.subr.mxu0 0.0
      %3043 = vmatpush1.msra.mxu0 0.0
      %3044 = vmatprep.subr.mxu0 0.0
      %3045 = vmatpush1.msra.mxu0 0.0
      %3046 = vmatprep.subr.mxu0 0.0
      %3047 = vmatpush1.msra.mxu0 0.0
      %3048 = vmatprep.subr.mxu0 0.0
      %3049 = vmatpush1.msra.mxu0 0.0
      %3050 = vmatprep.subr.mxu0 0.0
      %3051 = vmatpush1.msra.mxu0 0.0
      %3052 = vmatprep.subr.mxu0 0.0
      %3053 = vmatpush1.msra.mxu0 0.0
      %3054 = vmatprep.subr.mxu0 0.0
      %3055 = vmatpush1.msra.mxu0 0.0
      %3056 = vmatprep.subr.mxu0 0.0
      %3057 = vmatpush1.msra.mxu0 0.0
      %3058 = vmatprep.subr.mxu0 0.0
      %3059 = vmatpush1.msra.mxu0 0.0
      %3060 = vmatprep.subr.mxu0 0.0
      %3061 = vmatpush1.msra.mxu0 0.0
      %3062 = vmatprep.subr.mxu0 0.0
      %3063 = vmatpush1.msra.mxu0 0.0
      %3064 = vmatprep.subr.mxu0 0.0
      %3065 = vmatpush1.msra.mxu0 0.0
      %3066 = vmatprep.subr.mxu0 0.0
      %3067 = vmatpush1.msra.mxu0 0.0
      %3068 = vmatprep.subr.mxu0 0.0
      %3069 = vmatpush1.msra.mxu0 0.0
      %3070 = vmatprep.subr.mxu0 0.0
      %3071 = vmatpush1.msra.mxu0 0.0
      %3072 = vmatprep.subr.mxu0 0.0
      %3073 = vmatpush1.msra.mxu0 0.0
      %3074 = vmatprep.subr.mxu0 0.0
      %3075 = vmatpush1.msra.mxu0 0.0
      %3076 = vmatprep.subr.mxu0 0.0
      %3077 = vmatpush1.msra.mxu0 0.0
      %3078 = vmatprep.subr.mxu0 0.0
      %3079 = vmatpush1.msra.mxu0 0.0
      %3080 = vmatprep.subr.mxu0 0.0
      %3081 = vmatpush1.msra.mxu0 0.0
      %3082 = vmatprep.subr.mxu0 0.0
      %3083 = vmatpush1.msra.mxu0 0.0
      %3084 = vmatprep.subr.mxu0 0.0
      %3085 = vmatpush1.msra.mxu0 0.0
      %3086 = vmatprep.subr.mxu0 0.0
      %3087 = vmatpush1.msra.mxu0 0.0
      %3088 = vmatprep.mubr.f32.mxu0 0.0
      %3089 = vmatmul.mubr.f32.gmra.mrb[0].mxu0 %v3013
      %v3090 = vpop.f32.mrb[0].mxu0
      %v3091 = vadd.f32 %v2995, %v3090
      %v3092 = vpop.f32.mrb[0].mxu0
      %v3093 = vadd.f32 %v2995, %v3092
      %3094 = vmatprep.mubr.f32.mxu0 0.0
      %3095 = vmatmul.mubr.f32.gmra.mrb[0].mxu0 %v3016
      %v3096 = vpop.f32.mrb[0].mxu0
      %v3097 = vadd.f32 %v3000, %v3096
      %v3098 = vpop.f32.mrb[0].mxu0
      %v3099 = vadd.f32 %v3000, %v3098
      %3100 = vmatprep.mubr.f32.mxu0 0.0
      %3101 = vmatmul.mubr.f32.gmra.mrb[0].mxu0 %v3019
      %v3102 = vpop.f32.mrb[0].mxu0
      %v3103 = vadd.f32 %v3005, %v3102
      %v3104 = vpop.f32.mrb[0].mxu0
      %v3105 = vadd.f32 %v3005, %v3104
      %3106 = vmatprep.mubr.f32.mxu0 0.0
      %3107 = vmatmul.mubr.f32.gmra.mrb[0].mxu0 %v3022
      %v3108 = vpop.f32.mrb[0].mxu0
      %v3109 = vadd.f32 %v3010, %v3108
      %v3110 = vpop.f32.mrb[0].mxu0
      %v3111 = vadd.f32 %v3010, %v3110
      %3112 = vdwg.mxu0
      %v3113 = vadd.f32 %v1873, %v3091
      %v3114 = vadd.f32 %v1874, %v3093
      %v3115 = vadd.f32 %v1875, %v3097
      %v3116 = vadd.f32 %v1876, %v3099
      %v3117 = vadd.f32 %v1877, %v3103
      %v3118 = vadd.f32 %v1878, %v3105
      %v3119 = vadd.f32 %v1879, %v3109
      %v3120 = vadd.f32 %v1880, %v3111
      %v3121 = vld [vmem:[%s10] sm:$0xff]
      %v3122 = vld [vmem:[%s10 + $0x8] sm:$0xff]
      %v3123 = vld [vmem:[%s11] sm:$0xff]
      %v3124 = vld [vmem:[%s11 + $0x8] sm:$0xff]
      %3126 = vset.pattern.permute.xlu0 0
      %3127 = vperm.xlu0 %3126, %v3123
      %v3128 = vpop.permute.xlu0 %3127
      %3131 = vset.pattern.permute.xlu0 0
      %3132 = vperm.xlu0 %3131, %v3124
      %v3133 = vpop.permute.xlu0 %3132
      %v3136 = vsel %vm1895, %v3121, 0
      %v3139 = vsel %vm1895, %v3122, 0
      %3141 = vmatprep.subr.mxu0 %v3114
      %3142 = vmatpush1.msra.mxu0 %v3113
      %3143 = vmatprep.subr.mxu0 %v3116
      %3144 = vmatpush1.msra.mxu0 %v3115
      %3145 = vmatprep.subr.mxu0 %v3118
      %3146 = vmatpush1.msra.mxu0 %v3117
      %3147 = vmatprep.subr.mxu0 %v3120
      %3148 = vmatpush1.msra.mxu0 %v3119
      %3149 = vmatprep.subr.mxu0 0.0
      %3150 = vmatpush1.msra.mxu0 0.0
      %3151 = vmatprep.subr.mxu0 0.0
      %3152 = vmatpush1.msra.mxu0 0.0
      %3153 = vmatprep.subr.mxu0 0.0
      %3154 = vmatpush1.msra.mxu0 0.0
      %3155 = vmatprep.subr.mxu0 0.0
      %3156 = vmatpush1.msra.mxu0 0.0
      %3157 = vmatprep.subr.mxu0 0.0
      %3158 = vmatpush1.msra.mxu0 0.0
      %3159 = vmatprep.subr.mxu0 0.0
      %3160 = vmatpush1.msra.mxu0 0.0
      %3161 = vmatprep.subr.mxu0 0.0
      %3162 = vmatpush1.msra.mxu0 0.0
      %3163 = vmatprep.subr.mxu0 0.0
      %3164 = vmatpush1.msra.mxu0 0.0
      %3165 = vmatprep.subr.mxu0 0.0
      %3166 = vmatpush1.msra.mxu0 0.0
      %3167 = vmatprep.subr.mxu0 0.0
      %3168 = vmatpush1.msra.mxu0 0.0
      %3169 = vmatprep.subr.mxu0 0.0
      %3170 = vmatpush1.msra.mxu0 0.0
      %3171 = vmatprep.subr.mxu0 0.0
      %3172 = vmatpush1.msra.mxu0 0.0
      %3173 = vmatprep.subr.mxu0 0.0
      %3174 = vmatpush1.msra.mxu0 0.0
      %3175 = vmatprep.subr.mxu0 0.0
      %3176 = vmatpush1.msra.mxu0 0.0
      %3177 = vmatprep.subr.mxu0 0.0
      %3178 = vmatpush1.msra.mxu0 0.0
      %3179 = vmatprep.subr.mxu0 0.0
      %3180 = vmatpush1.msra.mxu0 0.0
      %3181 = vmatprep.subr.mxu0 0.0
      %3182 = vmatpush1.msra.mxu0 0.0
      %3183 = vmatprep.subr.mxu0 0.0
      %3184 = vmatpush1.msra.mxu0 0.0
      %3185 = vmatprep.subr.mxu0 0.0
      %3186 = vmatpush1.msra.mxu0 0.0
      %3187 = vmatprep.subr.mxu0 0.0
      %3188 = vmatpush1.msra.mxu0 0.0
      %3189 = vmatprep.subr.mxu0 0.0
      %3190 = vmatpush1.msra.mxu0 0.0
      %3191 = vmatprep.subr.mxu0 0.0
      %3192 = vmatpush1.msra.mxu0 0.0
      %3193 = vmatprep.subr.mxu0 0.0
      %3194 = vmatpush1.msra.mxu0 0.0
      %3195 = vmatprep.subr.mxu0 0.0
      %3196 = vmatpush1.msra.mxu0 0.0
      %3197 = vmatprep.subr.mxu0 0.0
      %3198 = vmatpush1.msra.mxu0 0.0
      %3199 = vmatprep.subr.mxu0 0.0
      %3200 = vmatpush1.msra.mxu0 0.0
      %3201 = vmatprep.subr.mxu0 0.0
      %3202 = vmatpush1.msra.mxu0 0.0
      %3203 = vmatprep.subr.mxu0 0.0
      %3204 = vmatpush1.msra.mxu0 0.0
      %3205 = vmatprep.mubr.f32.mxu0 0.0
      %3206 = vmatmul.mubr.f32.gmra.mrb[0].mxu0 %v3136
      %v3207 = vpop.f32.mrb[0].mxu0
      %v3208 = vadd.f32 %v3128, %v3207
      %v3209 = vpop.f32.mrb[0].mxu0
      %v3210 = vadd.f32 %v3128, %v3209
      %3211 = vmatprep.mubr.f32.mxu0 0.0
      %3212 = vmatmul.mubr.f32.gmra.mrb[0].mxu0 %v3139
      %v3213 = vpop.f32.mrb[0].mxu0
      %v3214 = vadd.f32 %v3133, %v3213
      %v3215 = vpop.f32.mrb[0].mxu0
      %v3216 = vadd.f32 %v3133, %v3215
      %3217 = vdwg.mxu0
      %v3218 = vmax.f32 %v3208, 0.0
      %v3219 = vmax.f32 %v3210, 0.0
      %v3220 = vmax.f32 %v3214, 0.0
      %v3221 = vmax.f32 %v3216, 0.0
      %3224 = vrot.lane.b32.xlu0 %v3219, 17
      %v3225 = vpop.permute.xlu0 %3224
      %3226 = vrot.lane.b32.xlu0 %v3221, 17
      %v3227 = vpop.permute.xlu0 %3226
      %3232 = vrot.lane.b32.xlu0 %v3218, 17
      %v3233 = vpop.permute.xlu0 %3232
      %3234 = vrot.lane.b32.xlu0 %v3220, 17
      %v3235 = vpop.permute.xlu0 %3234
      %v3236 = vsel %vm584, %v3233, %v3225
      %v3237 = vsel %vm584, %v3235, %v3227
      %v3242 = vsel %vm584, %v3225, %v3233
      %v3243 = vsel %vm584, %v3227, %v3235
      %v3244 = vmul.f32 %v3242, %v594
      %v3245 = vmul.f32 %v3236, %v598
      %v3246 = vmul.f32 %v3243, %v594
      %v3247 = vmul.f32 %v3237, %v598
      %v3248 = vld [vmem:[%s12] sm:$0xff]
      %v3249 = vld [vmem:[%s12 + $0x8] sm:$0xff]
      %3250 = vrot.lane.b32.xlu0 %v3219, 16
      %v3251 = vpop.permute.xlu0 %3250
      %3252 = vrot.lane.b32.xlu0 %v3221, 16
      %v3253 = vpop.permute.xlu0 %3252
      %3256 = vrot.lane.b32.xlu0 %v3218, 16
      %v3257 = vpop.permute.xlu0 %3256
      %3258 = vrot.lane.b32.xlu0 %v3220, 16
      %v3259 = vpop.permute.xlu0 %3258
      %v3260 = vsel %vm612, %v3257, %v3251
      %v3261 = vsel %vm612, %v3259, %v3253
      %v3266 = vsel %vm612, %v3251, %v3257
      %v3267 = vsel %vm612, %v3253, %v3259
      %v3268 = vmul.f32 %v3266, %v623
      %v3269 = vmul.f32 %v3260, %v627
      %v3270 = vmul.f32 %v3267, %v623
      %v3271 = vmul.f32 %v3261, %v627
      %s3272 = scalar_lea.vmem %s12, 16
      %v3273 = vld [vmem:[%s3272] sm:$0xff]
      %v3274 = vld [vmem:[%s3272 + $0x8] sm:$0xff]
      %v3276 = vsel %vm612, %v3273, 0
      %v3279 = vsel %vm612, %v3274, 0
      %3281 = vmatprep.subr.mxu0 %v3269
      %3282 = vmatpush1.msra.mxu0 %v3268
      %3283 = vmatprep.subr.mxu0 %v3271
      %3284 = vmatpush1.msra.mxu0 %v3270
      %3285 = vmatprep.subr.mxu0 0.0
      %3286 = vmatpush1.msra.mxu0 0.0
      %3287 = vmatprep.subr.mxu0 0.0
      %3288 = vmatpush1.msra.mxu0 0.0
      %3289 = vmatprep.subr.mxu0 0.0
      %3290 = vmatpush1.msra.mxu0 0.0
      %3291 = vmatprep.subr.mxu0 0.0
      %3292 = vmatpush1.msra.mxu0 0.0
      %3293 = vmatprep.subr.mxu0 0.0
      %3294 = vmatpush1.msra.mxu0 0.0
      %3295 = vmatprep.subr.mxu0 0.0
      %3296 = vmatpush1.msra.mxu0 0.0
      %3297 = vmatprep.subr.mxu0 0.0
      %3298 = vmatpush1.msra.mxu0 0.0
      %3299 = vmatprep.subr.mxu0 0.0
      %3300 = vmatpush1.msra.mxu0 0.0
      %3301 = vmatprep.subr.mxu0 0.0
      %3302 = vmatpush1.msra.mxu0 0.0
      %3303 = vmatprep.subr.mxu0 0.0
      %3304 = vmatpush1.msra.mxu0 0.0
      %3305 = vmatprep.subr.mxu0 0.0
      %3306 = vmatpush1.msra.mxu0 0.0
      %3307 = vmatprep.subr.mxu0 0.0
      %3308 = vmatpush1.msra.mxu0 0.0
      %3309 = vmatprep.subr.mxu0 0.0
      %3310 = vmatpush1.msra.mxu0 0.0
      %3311 = vmatprep.subr.mxu0 0.0
      %3312 = vmatpush1.msra.mxu0 0.0
      %3313 = vmatprep.subr.mxu0 0.0
      %3314 = vmatpush1.msra.mxu0 0.0
      %3315 = vmatprep.subr.mxu0 0.0
      %3316 = vmatpush1.msra.mxu0 0.0
      %3317 = vmatprep.subr.mxu0 0.0
      %3318 = vmatpush1.msra.mxu0 0.0
      %3319 = vmatprep.subr.mxu0 0.0
      %3320 = vmatpush1.msra.mxu0 0.0
      %3321 = vmatprep.subr.mxu0 0.0
      %3322 = vmatpush1.msra.mxu0 0.0
      %3323 = vmatprep.subr.mxu0 0.0
      %3324 = vmatpush1.msra.mxu0 0.0
      %3325 = vmatprep.subr.mxu0 0.0
      %3326 = vmatpush1.msra.mxu0 0.0
      %3327 = vmatprep.subr.mxu0 0.0
      %3328 = vmatpush1.msra.mxu0 0.0
      %3329 = vmatprep.subr.mxu0 0.0
      %3330 = vmatpush1.msra.mxu0 0.0
      %3331 = vmatprep.subr.mxu0 0.0
      %3332 = vmatpush1.msra.mxu0 0.0
      %3333 = vmatprep.subr.mxu0 0.0
      %3334 = vmatpush1.msra.mxu0 0.0
      %3335 = vmatprep.subr.mxu0 0.0
      %3336 = vmatpush1.msra.mxu0 0.0
      %3337 = vmatprep.subr.mxu0 0.0
      %3338 = vmatpush1.msra.mxu0 0.0
      %3339 = vmatprep.subr.mxu0 0.0
      %3340 = vmatpush1.msra.mxu0 0.0
      %3341 = vmatprep.subr.mxu0 0.0
      %3342 = vmatpush1.msra.mxu0 0.0
      %3343 = vmatprep.subr.mxu0 0.0
      %3344 = vmatpush1.msra.mxu0 0.0
      %3345 = vmatprep.mubr.f32.mxu0 0.0
      %3346 = vmatmul.mubr.f32.gmra.mrb[0].mxu0 %v3276
      %v3347 = vpop.f32.mrb[0].mxu0
      %v3348 = vadd.f32 0.0, %v3347
      %v3349 = vpop.f32.mrb[0].mxu0
      %v3350 = vadd.f32 0.0, %v3349
      %3351 = vmatprep.mubr.f32.mxu0 0.0
      %3352 = vmatmul.mubr.f32.gmra.mrb[0].mxu0 %v3279
      %v3353 = vpop.f32.mrb[0].mxu0
      %v3354 = vadd.f32 0.0, %v3353
      %v3355 = vpop.f32.mrb[0].mxu0
      %v3356 = vadd.f32 0.0, %v3355
      %3357 = vdwg.mxu0
      %v3359 = vsel %vm612, %v3248, 0
      %v3362 = vsel %vm612, %v3249, 0
      %3364 = vmatprep.subr.mxu0 %v3245
      %3365 = vmatpush1.msra.mxu0 %v3244
      %3366 = vmatprep.subr.mxu0 %v3247
      %3367 = vmatpush1.msra.mxu0 %v3246
      %3368 = vmatprep.subr.mxu0 0.0
      %3369 = vmatpush1.msra.mxu0 0.0
      %3370 = vmatprep.subr.mxu0 0.0
      %3371 = vmatpush1.msra.mxu0 0.0
      %3372 = vmatprep.subr.mxu0 0.0
      %3373 = vmatpush1.msra.mxu0 0.0
      %3374 = vmatprep.subr.mxu0 0.0
      %3375 = vmatpush1.msra.mxu0 0.0
      %3376 = vmatprep.subr.mxu0 0.0
      %3377 = vmatpush1.msra.mxu0 0.0
      %3378 = vmatprep.subr.mxu0 0.0
      %3379 = vmatpush1.msra.mxu0 0.0
      %3380 = vmatprep.subr.mxu0 0.0
      %3381 = vmatpush1.msra.mxu0 0.0
      %3382 = vmatprep.subr.mxu0 0.0
      %3383 = vmatpush1.msra.mxu0 0.0
      %3384 = vmatprep.subr.mxu0 0.0
      %3385 = vmatpush1.msra.mxu0 0.0
      %3386 = vmatprep.subr.mxu0 0.0
      %3387 = vmatpush1.msra.mxu0 0.0
      %3388 = vmatprep.subr.mxu0 0.0
      %3389 = vmatpush1.msra.mxu0 0.0
      %3390 = vmatprep.subr.mxu0 0.0
      %3391 = vmatpush1.msra.mxu0 0.0
      %3392 = vmatprep.subr.mxu0 0.0
      %3393 = vmatpush1.msra.mxu0 0.0
      %3394 = vmatprep.subr.mxu0 0.0
      %3395 = vmatpush1.msra.mxu0 0.0
      %3396 = vmatprep.subr.mxu0 0.0
      %3397 = vmatpush1.msra.mxu0 0.0
      %3398 = vmatprep.subr.mxu0 0.0
      %3399 = vmatpush1.msra.mxu0 0.0
      %3400 = vmatprep.subr.mxu0 0.0
      %3401 = vmatpush1.msra.mxu0 0.0
      %3402 = vmatprep.subr.mxu0 0.0
      %3403 = vmatpush1.msra.mxu0 0.0
      %3404 = vmatprep.subr.mxu0 0.0
      %3405 = vmatpush1.msra.mxu0 0.0
      %3406 = vmatprep.subr.mxu0 0.0
      %3407 = vmatpush1.msra.mxu0 0.0
      %3408 = vmatprep.subr.mxu0 0.0
      %3409 = vmatpush1.msra.mxu0 0.0
      %3410 = vmatprep.subr.mxu0 0.0
      %3411 = vmatpush1.msra.mxu0 0.0
      %3412 = vmatprep.subr.mxu0 0.0
      %3413 = vmatpush1.msra.mxu0 0.0
      %3414 = vmatprep.subr.mxu0 0.0
      %3415 = vmatpush1.msra.mxu0 0.0
      %3416 = vmatprep.subr.mxu0 0.0
      %3417 = vmatpush1.msra.mxu0 0.0
      %3418 = vmatprep.subr.mxu0 0.0
      %3419 = vmatpush1.msra.mxu0 0.0
      %3420 = vmatprep.subr.mxu0 0.0
      %3421 = vmatpush1.msra.mxu0 0.0
      %3422 = vmatprep.subr.mxu0 0.0
      %3423 = vmatpush1.msra.mxu0 0.0
      %3424 = vmatprep.subr.mxu0 0.0
      %3425 = vmatpush1.msra.mxu0 0.0
      %3426 = vmatprep.subr.mxu0 0.0
      %3427 = vmatpush1.msra.mxu0 0.0
      %3428 = vmatprep.mubr.f32.mxu0 0.0
      %3429 = vmatmul.mubr.f32.gmra.mrb[0].mxu0 %v3359
      %v3430 = vpop.f32.mrb[0].mxu0
      %v3431 = vadd.f32 %v3348, %v3430
      %v3432 = vpop.f32.mrb[0].mxu0
      %v3433 = vadd.f32 %v3350, %v3432
      %3434 = vmatprep.mubr.f32.mxu0 0.0
      %3435 = vmatmul.mubr.f32.gmra.mrb[0].mxu0 %v3362
      %v3436 = vpop.f32.mrb[0].mxu0
      %v3437 = vadd.f32 %v3354, %v3436
      %v3438 = vpop.f32.mrb[0].mxu0
      %v3439 = vadd.f32 %v3356, %v3438
      %3440 = vdwg.mxu0
      %3441 = vrot.lane.b32.xlu0 %v3219, 15
      %v3442 = vpop.permute.xlu0 %3441
      %3443 = vrot.lane.b32.xlu0 %v3221, 15
      %v3444 = vpop.permute.xlu0 %3443
      %3447 = vrot.lane.b32.xlu0 %v3218, 15
      %v3448 = vpop.permute.xlu0 %3447
      %3449 = vrot.lane.b32.xlu0 %v3220, 15
      %v3450 = vpop.permute.xlu0 %3449
      %v3451 = vsel %vm858, %v3448, %v3442
      %v3452 = vsel %vm858, %v3450, %v3444
      %v3457 = vsel %vm858, %v3442, %v3448
      %v3458 = vsel %vm858, %v3444, %v3450
      %v3459 = vmul.f32 %v3457, %v869
      %v3460 = vmul.f32 %v3451, %v873
      %v3461 = vmul.f32 %v3458, %v869
      %v3462 = vmul.f32 %v3452, %v873
      %s3463 = scalar_lea.vmem %s12, 32
      %v3464 = vld [vmem:[%s3463] sm:$0xff]
      %v3465 = vld [vmem:[%s3463 + $0x8] sm:$0xff]
      %v3467 = vsel %vm612, %v3464, 0
      %v3470 = vsel %vm612, %v3465, 0
      %3472 = vmatprep.subr.mxu0 %v3460
      %3473 = vmatpush1.msra.mxu0 %v3459
      %3474 = vmatprep.subr.mxu0 %v3462
      %3475 = vmatpush1.msra.mxu0 %v3461
      %3476 = vmatprep.subr.mxu0 0.0
      %3477 = vmatpush1.msra.mxu0 0.0
      %3478 = vmatprep.subr.mxu0 0.0
      %3479 = vmatpush1.msra.mxu0 0.0
      %3480 = vmatprep.subr.mxu0 0.0
      %3481 = vmatpush1.msra.mxu0 0.0
      %3482 = vmatprep.subr.mxu0 0.0
      %3483 = vmatpush1.msra.mxu0 0.0
      %3484 = vmatprep.subr.mxu0 0.0
      %3485 = vmatpush1.msra.mxu0 0.0
      %3486 = vmatprep.subr.mxu0 0.0
      %3487 = vmatpush1.msra.mxu0 0.0
      %3488 = vmatprep.subr.mxu0 0.0
      %3489 = vmatpush1.msra.mxu0 0.0
      %3490 = vmatprep.subr.mxu0 0.0
      %3491 = vmatpush1.msra.mxu0 0.0
      %3492 = vmatprep.subr.mxu0 0.0
      %3493 = vmatpush1.msra.mxu0 0.0
      %3494 = vmatprep.subr.mxu0 0.0
      %3495 = vmatpush1.msra.mxu0 0.0
      %3496 = vmatprep.subr.mxu0 0.0
      %3497 = vmatpush1.msra.mxu0 0.0
      %3498 = vmatprep.subr.mxu0 0.0
      %3499 = vmatpush1.msra.mxu0 0.0
      %3500 = vmatprep.subr.mxu0 0.0
      %3501 = vmatpush1.msra.mxu0 0.0
      %3502 = vmatprep.subr.mxu0 0.0
      %3503 = vmatpush1.msra.mxu0 0.0
      %3504 = vmatprep.subr.mxu0 0.0
      %3505 = vmatpush1.msra.mxu0 0.0
      %3506 = vmatprep.subr.mxu0 0.0
      %3507 = vmatpush1.msra.mxu0 0.0
      %3508 = vmatprep.subr.mxu0 0.0
      %3509 = vmatpush1.msra.mxu0 0.0
      %3510 = vmatprep.subr.mxu0 0.0
      %3511 = vmatpush1.msra.mxu0 0.0
      %3512 = vmatprep.subr.mxu0 0.0
      %3513 = vmatpush1.msra.mxu0 0.0
      %3514 = vmatprep.subr.mxu0 0.0
      %3515 = vmatpush1.msra.mxu0 0.0
      %3516 = vmatprep.subr.mxu0 0.0
      %3517 = vmatpush1.msra.mxu0 0.0
      %3518 = vmatprep.subr.mxu0 0.0
      %3519 = vmatpush1.msra.mxu0 0.0
      %3520 = vmatprep.subr.mxu0 0.0
      %3521 = vmatpush1.msra.mxu0 0.0
      %3522 = vmatprep.subr.mxu0 0.0
      %3523 = vmatpush1.msra.mxu0 0.0
      %3524 = vmatprep.subr.mxu0 0.0
      %3525 = vmatpush1.msra.mxu0 0.0
      %3526 = vmatprep.subr.mxu0 0.0
      %3527 = vmatpush1.msra.mxu0 0.0
      %3528 = vmatprep.subr.mxu0 0.0
      %3529 = vmatpush1.msra.mxu0 0.0
      %3530 = vmatprep.subr.mxu0 0.0
      %3531 = vmatpush1.msra.mxu0 0.0
      %3532 = vmatprep.subr.mxu0 0.0
      %3533 = vmatpush1.msra.mxu0 0.0
      %3534 = vmatprep.subr.mxu0 0.0
      %3535 = vmatpush1.msra.mxu0 0.0
      %3536 = vmatprep.mubr.f32.mxu0 0.0
      %3537 = vmatmul.mubr.f32.gmra.mrb[0].mxu0 %v3467
      %v3538 = vpop.f32.mrb[0].mxu0
      %v3539 = vadd.f32 0.0, %v3538
      %v3540 = vpop.f32.mrb[0].mxu0
      %v3541 = vadd.f32 0.0, %v3540
      %3542 = vmatprep.mubr.f32.mxu0 0.0
      %3543 = vmatmul.mubr.f32.gmra.mrb[0].mxu0 %v3470
      %v3544 = vpop.f32.mrb[0].mxu0
      %v3545 = vadd.f32 0.0, %v3544
      %v3546 = vpop.f32.mrb[0].mxu0
      %v3547 = vadd.f32 0.0, %v3546
      %3548 = vdwg.mxu0
      %v3549 = vadd.f32 %v3431, %v3539
      %v3550 = vadd.f32 %v3433, %v3541
      %v3551 = vadd.f32 %v3437, %v3545
      %v3552 = vadd.f32 %v3439, %v3547
      %3553 = vrot.lane.b32.xlu0 %v3219, 1
      %v3554 = vpop.permute.xlu0 %3553
      %3555 = vrot.lane.b32.xlu0 %v3221, 1
      %v3556 = vpop.permute.xlu0 %3555
      %3559 = vrot.lane.b32.xlu0 %v3218, 1
      %v3560 = vpop.permute.xlu0 %3559
      %3561 = vrot.lane.b32.xlu0 %v3220, 1
      %v3562 = vpop.permute.xlu0 %3561
      %v3563 = vsel %vm1003, %v3560, %v3554
      %v3564 = vsel %vm1003, %v3562, %v3556
      %v3569 = vsel %vm1003, %v3554, %v3560
      %v3570 = vsel %vm1003, %v3556, %v3562
      %v3571 = vmul.f32 %v3569, %v1014
      %v3572 = vmul.f32 %v3563, %v1018
      %v3573 = vmul.f32 %v3570, %v1014
      %v3574 = vmul.f32 %v3564, %v1018
      %s3575 = scalar_lea.vmem %s12, 48
      %v3576 = vld [vmem:[%s3575] sm:$0xff]
      %v3577 = vld [vmem:[%s3575 + $0x8] sm:$0xff]
      %v3579 = vsel %vm612, %v3576, 0
      %v3582 = vsel %vm612, %v3577, 0
      %3584 = vmatprep.subr.mxu0 %v3572
      %3585 = vmatpush1.msra.mxu0 %v3571
      %3586 = vmatprep.subr.mxu0 %v3574
      %3587 = vmatpush1.msra.mxu0 %v3573
      %3588 = vmatprep.subr.mxu0 0.0
      %3589 = vmatpush1.msra.mxu0 0.0
      %3590 = vmatprep.subr.mxu0 0.0
      %3591 = vmatpush1.msra.mxu0 0.0
      %3592 = vmatprep.subr.mxu0 0.0
      %3593 = vmatpush1.msra.mxu0 0.0
      %3594 = vmatprep.subr.mxu0 0.0
      %3595 = vmatpush1.msra.mxu0 0.0
      %3596 = vmatprep.subr.mxu0 0.0
      %3597 = vmatpush1.msra.mxu0 0.0
      %3598 = vmatprep.subr.mxu0 0.0
      %3599 = vmatpush1.msra.mxu0 0.0
      %3600 = vmatprep.subr.mxu0 0.0
      %3601 = vmatpush1.msra.mxu0 0.0
      %3602 = vmatprep.subr.mxu0 0.0
      %3603 = vmatpush1.msra.mxu0 0.0
      %3604 = vmatprep.subr.mxu0 0.0
      %3605 = vmatpush1.msra.mxu0 0.0
      %3606 = vmatprep.subr.mxu0 0.0
      %3607 = vmatpush1.msra.mxu0 0.0
      %3608 = vmatprep.subr.mxu0 0.0
      %3609 = vmatpush1.msra.mxu0 0.0
      %3610 = vmatprep.subr.mxu0 0.0
      %3611 = vmatpush1.msra.mxu0 0.0
      %3612 = vmatprep.subr.mxu0 0.0
      %3613 = vmatpush1.msra.mxu0 0.0
      %3614 = vmatprep.subr.mxu0 0.0
      %3615 = vmatpush1.msra.mxu0 0.0
      %3616 = vmatprep.subr.mxu0 0.0
      %3617 = vmatpush1.msra.mxu0 0.0
      %3618 = vmatprep.subr.mxu0 0.0
      %3619 = vmatpush1.msra.mxu0 0.0
      %3620 = vmatprep.subr.mxu0 0.0
      %3621 = vmatpush1.msra.mxu0 0.0
      %3622 = vmatprep.subr.mxu0 0.0
      %3623 = vmatpush1.msra.mxu0 0.0
      %3624 = vmatprep.subr.mxu0 0.0
      %3625 = vmatpush1.msra.mxu0 0.0
      %3626 = vmatprep.subr.mxu0 0.0
      %3627 = vmatpush1.msra.mxu0 0.0
      %3628 = vmatprep.subr.mxu0 0.0
      %3629 = vmatpush1.msra.mxu0 0.0
      %3630 = vmatprep.subr.mxu0 0.0
      %3631 = vmatpush1.msra.mxu0 0.0
      %3632 = vmatprep.subr.mxu0 0.0
      %3633 = vmatpush1.msra.mxu0 0.0
      %3634 = vmatprep.subr.mxu0 0.0
      %3635 = vmatpush1.msra.mxu0 0.0
      %3636 = vmatprep.subr.mxu0 0.0
      %3637 = vmatpush1.msra.mxu0 0.0
      %3638 = vmatprep.subr.mxu0 0.0
      %3639 = vmatpush1.msra.mxu0 0.0
      %3640 = vmatprep.subr.mxu0 0.0
      %3641 = vmatpush1.msra.mxu0 0.0
      %3642 = vmatprep.subr.mxu0 0.0
      %3643 = vmatpush1.msra.mxu0 0.0
      %3644 = vmatprep.subr.mxu0 0.0
      %3645 = vmatpush1.msra.mxu0 0.0
      %3646 = vmatprep.subr.mxu0 0.0
      %3647 = vmatpush1.msra.mxu0 0.0
      %3648 = vmatprep.mubr.f32.mxu0 0.0
      %3649 = vmatmul.mubr.f32.gmra.mrb[0].mxu0 %v3579
      %v3650 = vpop.f32.mrb[0].mxu0
      %v3651 = vadd.f32 0.0, %v3650
      %v3652 = vpop.f32.mrb[0].mxu0
      %v3653 = vadd.f32 0.0, %v3652
      %3654 = vmatprep.mubr.f32.mxu0 0.0
      %3655 = vmatmul.mubr.f32.gmra.mrb[0].mxu0 %v3582
      %v3656 = vpop.f32.mrb[0].mxu0
      %v3657 = vadd.f32 0.0, %v3656
      %v3658 = vpop.f32.mrb[0].mxu0
      %v3659 = vadd.f32 0.0, %v3658
      %3660 = vdwg.mxu0
      %v3661 = vadd.f32 %v3549, %v3651
      %v3662 = vadd.f32 %v3550, %v3653
      %v3663 = vadd.f32 %v3551, %v3657
      %v3664 = vadd.f32 %v3552, %v3659
      %s3665 = scalar_lea.vmem %s12, 64
      %v3666 = vld [vmem:[%s3665] sm:$0xff]
      %v3667 = vld [vmem:[%s3665 + $0x8] sm:$0xff]
      %v3669 = vsel %vm612, %v3666, 0
      %v3672 = vsel %vm612, %v3667, 0
      %3674 = vmatprep.subr.mxu0 %v3219
      %3675 = vmatpush1.msra.mxu0 %v3218
      %3676 = vmatprep.subr.mxu0 %v3221
      %3677 = vmatpush1.msra.mxu0 %v3220
      %3678 = vmatprep.subr.mxu0 0.0
      %3679 = vmatpush1.msra.mxu0 0.0
      %3680 = vmatprep.subr.mxu0 0.0
      %3681 = vmatpush1.msra.mxu0 0.0
      %3682 = vmatprep.subr.mxu0 0.0
      %3683 = vmatpush1.msra.mxu0 0.0
      %3684 = vmatprep.subr.mxu0 0.0
      %3685 = vmatpush1.msra.mxu0 0.0
      %3686 = vmatprep.subr.mxu0 0.0
      %3687 = vmatpush1.msra.mxu0 0.0
      %3688 = vmatprep.subr.mxu0 0.0
      %3689 = vmatpush1.msra.mxu0 0.0
      %3690 = vmatprep.subr.mxu0 0.0
      %3691 = vmatpush1.msra.mxu0 0.0
      %3692 = vmatprep.subr.mxu0 0.0
      %3693 = vmatpush1.msra.mxu0 0.0
      %3694 = vmatprep.subr.mxu0 0.0
      %3695 = vmatpush1.msra.mxu0 0.0
      %3696 = vmatprep.subr.mxu0 0.0
      %3697 = vmatpush1.msra.mxu0 0.0
      %3698 = vmatprep.subr.mxu0 0.0
      %3699 = vmatpush1.msra.mxu0 0.0
      %3700 = vmatprep.subr.mxu0 0.0
      %3701 = vmatpush1.msra.mxu0 0.0
      %3702 = vmatprep.subr.mxu0 0.0
      %3703 = vmatpush1.msra.mxu0 0.0
      %3704 = vmatprep.subr.mxu0 0.0
      %3705 = vmatpush1.msra.mxu0 0.0
      %3706 = vmatprep.subr.mxu0 0.0
      %3707 = vmatpush1.msra.mxu0 0.0
      %3708 = vmatprep.subr.mxu0 0.0
      %3709 = vmatpush1.msra.mxu0 0.0
      %3710 = vmatprep.subr.mxu0 0.0
      %3711 = vmatpush1.msra.mxu0 0.0
      %3712 = vmatprep.subr.mxu0 0.0
      %3713 = vmatpush1.msra.mxu0 0.0
      %3714 = vmatprep.subr.mxu0 0.0
      %3715 = vmatpush1.msra.mxu0 0.0
      %3716 = vmatprep.subr.mxu0 0.0
      %3717 = vmatpush1.msra.mxu0 0.0
      %3718 = vmatprep.subr.mxu0 0.0
      %3719 = vmatpush1.msra.mxu0 0.0
      %3720 = vmatprep.subr.mxu0 0.0
      %3721 = vmatpush1.msra.mxu0 0.0
      %3722 = vmatprep.subr.mxu0 0.0
      %3723 = vmatpush1.msra.mxu0 0.0
      %3724 = vmatprep.subr.mxu0 0.0
      %3725 = vmatpush1.msra.mxu0 0.0
      %3726 = vmatprep.subr.mxu0 0.0
      %3727 = vmatpush1.msra.mxu0 0.0
      %3728 = vmatprep.subr.mxu0 0.0
      %3729 = vmatpush1.msra.mxu0 0.0
      %3730 = vmatprep.subr.mxu0 0.0
      %3731 = vmatpush1.msra.mxu0 0.0
      %3732 = vmatprep.subr.mxu0 0.0
      %3733 = vmatpush1.msra.mxu0 0.0
      %3734 = vmatprep.subr.mxu0 0.0
      %3735 = vmatpush1.msra.mxu0 0.0
      %3736 = vmatprep.subr.mxu0 0.0
      %3737 = vmatpush1.msra.mxu0 0.0
      %3738 = vmatprep.mubr.f32.mxu0 0.0
      %3739 = vmatmul.mubr.f32.gmra.mrb[0].mxu0 %v3669
      %v3740 = vpop.f32.mrb[0].mxu0
      %v3741 = vadd.f32 0.0, %v3740
      %v3742 = vpop.f32.mrb[0].mxu0
      %v3743 = vadd.f32 0.0, %v3742
      %3744 = vmatprep.mubr.f32.mxu0 0.0
      %3745 = vmatmul.mubr.f32.gmra.mrb[0].mxu0 %v3672
      %v3746 = vpop.f32.mrb[0].mxu0
      %v3747 = vadd.f32 0.0, %v3746
      %v3748 = vpop.f32.mrb[0].mxu0
      %v3749 = vadd.f32 0.0, %v3748
      %3750 = vdwg.mxu0
      %v3751 = vadd.f32 %v3661, %v3741
      %v3752 = vadd.f32 %v3662, %v3743
      %v3753 = vadd.f32 %v3663, %v3747
      %v3754 = vadd.f32 %v3664, %v3749
      %3755 = vrot.lane.b32.xlu0 %v3218, 127
      %v3756 = vpop.permute.xlu0 %3755
      %3757 = vrot.lane.b32.xlu0 %v3219, 127
      %v3758 = vpop.permute.xlu0 %3757
      %3759 = vrot.lane.b32.xlu0 %v3220, 127
      %v3760 = vpop.permute.xlu0 %3759
      %3761 = vrot.lane.b32.xlu0 %v3221, 127
      %v3762 = vpop.permute.xlu0 %3761
      %v3763 = vsel %vm1265, %v3756, %v3758
      %v3764 = vsel %vm1265, %v3760, %v3762
      %v3771 = vsel %vm1265, %v3758, %v3756
      %v3772 = vsel %vm1265, %v3762, %v3760
      %v3773 = vmul.f32 %v3763, %v1277
      %v3774 = vmul.f32 %v3771, %v1281
      %v3775 = vmul.f32 %v3764, %v1277
      %v3776 = vmul.f32 %v3772, %v1281
      %s3777 = scalar_lea.vmem %s12, 80
      %v3778 = vld [vmem:[%s3777] sm:$0xff]
      %v3779 = vld [vmem:[%s3777 + $0x8] sm:$0xff]
      %v3781 = vsel %vm612, %v3778, 0
      %v3784 = vsel %vm612, %v3779, 0
      %3786 = vmatprep.subr.mxu0 %v3774
      %3787 = vmatpush1.msra.mxu0 %v3773
      %3788 = vmatprep.subr.mxu0 %v3776
      %3789 = vmatpush1.msra.mxu0 %v3775
      %3790 = vmatprep.subr.mxu0 0.0
      %3791 = vmatpush1.msra.mxu0 0.0
      %3792 = vmatprep.subr.mxu0 0.0
      %3793 = vmatpush1.msra.mxu0 0.0
      %3794 = vmatprep.subr.mxu0 0.0
      %3795 = vmatpush1.msra.mxu0 0.0
      %3796 = vmatprep.subr.mxu0 0.0
      %3797 = vmatpush1.msra.mxu0 0.0
      %3798 = vmatprep.subr.mxu0 0.0
      %3799 = vmatpush1.msra.mxu0 0.0
      %3800 = vmatprep.subr.mxu0 0.0
      %3801 = vmatpush1.msra.mxu0 0.0
      %3802 = vmatprep.subr.mxu0 0.0
      %3803 = vmatpush1.msra.mxu0 0.0
      %3804 = vmatprep.subr.mxu0 0.0
      %3805 = vmatpush1.msra.mxu0 0.0
      %3806 = vmatprep.subr.mxu0 0.0
      %3807 = vmatpush1.msra.mxu0 0.0
      %3808 = vmatprep.subr.mxu0 0.0
      %3809 = vmatpush1.msra.mxu0 0.0
      %3810 = vmatprep.subr.mxu0 0.0
      %3811 = vmatpush1.msra.mxu0 0.0
      %3812 = vmatprep.subr.mxu0 0.0
      %3813 = vmatpush1.msra.mxu0 0.0
      %3814 = vmatprep.subr.mxu0 0.0
      %3815 = vmatpush1.msra.mxu0 0.0
      %3816 = vmatprep.subr.mxu0 0.0
      %3817 = vmatpush1.msra.mxu0 0.0
      %3818 = vmatprep.subr.mxu0 0.0
      %3819 = vmatpush1.msra.mxu0 0.0
      %3820 = vmatprep.subr.mxu0 0.0
      %3821 = vmatpush1.msra.mxu0 0.0
      %3822 = vmatprep.subr.mxu0 0.0
      %3823 = vmatpush1.msra.mxu0 0.0
      %3824 = vmatprep.subr.mxu0 0.0
      %3825 = vmatpush1.msra.mxu0 0.0
      %3826 = vmatprep.subr.mxu0 0.0
      %3827 = vmatpush1.msra.mxu0 0.0
      %3828 = vmatprep.subr.mxu0 0.0
      %3829 = vmatpush1.msra.mxu0 0.0
      %3830 = vmatprep.subr.mxu0 0.0
      %3831 = vmatpush1.msra.mxu0 0.0
      %3832 = vmatprep.subr.mxu0 0.0
      %3833 = vmatpush1.msra.mxu0 0.0
      %3834 = vmatprep.subr.mxu0 0.0
      %3835 = vmatpush1.msra.mxu0 0.0
      %3836 = vmatprep.subr.mxu0 0.0
      %3837 = vmatpush1.msra.mxu0 0.0
      %3838 = vmatprep.subr.mxu0 0.0
      %3839 = vmatpush1.msra.mxu0 0.0
      %3840 = vmatprep.subr.mxu0 0.0
      %3841 = vmatpush1.msra.mxu0 0.0
      %3842 = vmatprep.subr.mxu0 0.0
      %3843 = vmatpush1.msra.mxu0 0.0
      %3844 = vmatprep.subr.mxu0 0.0
      %3845 = vmatpush1.msra.mxu0 0.0
      %3846 = vmatprep.subr.mxu0 0.0
      %3847 = vmatpush1.msra.mxu0 0.0
      %3848 = vmatprep.subr.mxu0 0.0
      %3849 = vmatpush1.msra.mxu0 0.0
      %3850 = vmatprep.mubr.f32.mxu0 0.0
      %3851 = vmatmul.mubr.f32.gmra.mrb[0].mxu0 %v3781
      %v3852 = vpop.f32.mrb[0].mxu0
      %v3853 = vadd.f32 0.0, %v3852
      %v3854 = vpop.f32.mrb[0].mxu0
      %v3855 = vadd.f32 0.0, %v3854
      %3856 = vmatprep.mubr.f32.mxu0 0.0
      %3857 = vmatmul.mubr.f32.gmra.mrb[0].mxu0 %v3784
      %v3858 = vpop.f32.mrb[0].mxu0
      %v3859 = vadd.f32 0.0, %v3858
      %v3860 = vpop.f32.mrb[0].mxu0
      %v3861 = vadd.f32 0.0, %v3860
      %3862 = vdwg.mxu0
      %v3863 = vadd.f32 %v3751, %v3853
      %v3864 = vadd.f32 %v3752, %v3855
      %v3865 = vadd.f32 %v3753, %v3859
      %v3866 = vadd.f32 %v3754, %v3861
      %3867 = vrot.lane.b32.xlu0 %v3218, 113
      %v3868 = vpop.permute.xlu0 %3867
      %3869 = vrot.lane.b32.xlu0 %v3219, 113
      %v3870 = vpop.permute.xlu0 %3869
      %3871 = vrot.lane.b32.xlu0 %v3220, 113
      %v3872 = vpop.permute.xlu0 %3871
      %3873 = vrot.lane.b32.xlu0 %v3221, 113
      %v3874 = vpop.permute.xlu0 %3873
      %v3875 = vsel %vm1410, %v3868, %v3870
      %v3876 = vsel %vm1410, %v3872, %v3874
      %v3883 = vsel %vm1410, %v3870, %v3868
      %v3884 = vsel %vm1410, %v3874, %v3872
      %v3885 = vmul.f32 %v3875, %v1422
      %v3886 = vmul.f32 %v3883, %v1426
      %v3887 = vmul.f32 %v3876, %v1422
      %v3888 = vmul.f32 %v3884, %v1426
      %s3889 = scalar_lea.vmem %s12, 96
      %v3890 = vld [vmem:[%s3889] sm:$0xff]
      %v3891 = vld [vmem:[%s3889 + $0x8] sm:$0xff]
      %v3893 = vsel %vm612, %v3890, 0
      %v3896 = vsel %vm612, %v3891, 0
      %3898 = vmatprep.subr.mxu0 %v3886
      %3899 = vmatpush1.msra.mxu0 %v3885
      %3900 = vmatprep.subr.mxu0 %v3888
      %3901 = vmatpush1.msra.mxu0 %v3887
      %3902 = vmatprep.subr.mxu0 0.0
      %3903 = vmatpush1.msra.mxu0 0.0
      %3904 = vmatprep.subr.mxu0 0.0
      %3905 = vmatpush1.msra.mxu0 0.0
      %3906 = vmatprep.subr.mxu0 0.0
      %3907 = vmatpush1.msra.mxu0 0.0
      %3908 = vmatprep.subr.mxu0 0.0
      %3909 = vmatpush1.msra.mxu0 0.0
      %3910 = vmatprep.subr.mxu0 0.0
      %3911 = vmatpush1.msra.mxu0 0.0
      %3912 = vmatprep.subr.mxu0 0.0
      %3913 = vmatpush1.msra.mxu0 0.0
      %3914 = vmatprep.subr.mxu0 0.0
      %3915 = vmatpush1.msra.mxu0 0.0
      %3916 = vmatprep.subr.mxu0 0.0
      %3917 = vmatpush1.msra.mxu0 0.0
      %3918 = vmatprep.subr.mxu0 0.0
      %3919 = vmatpush1.msra.mxu0 0.0
      %3920 = vmatprep.subr.mxu0 0.0
      %3921 = vmatpush1.msra.mxu0 0.0
      %3922 = vmatprep.subr.mxu0 0.0
      %3923 = vmatpush1.msra.mxu0 0.0
      %3924 = vmatprep.subr.mxu0 0.0
      %3925 = vmatpush1.msra.mxu0 0.0
      %3926 = vmatprep.subr.mxu0 0.0
      %3927 = vmatpush1.msra.mxu0 0.0
      %3928 = vmatprep.subr.mxu0 0.0
      %3929 = vmatpush1.msra.mxu0 0.0
      %3930 = vmatprep.subr.mxu0 0.0
      %3931 = vmatpush1.msra.mxu0 0.0
      %3932 = vmatprep.subr.mxu0 0.0
      %3933 = vmatpush1.msra.mxu0 0.0
      %3934 = vmatprep.subr.mxu0 0.0
      %3935 = vmatpush1.msra.mxu0 0.0
      %3936 = vmatprep.subr.mxu0 0.0
      %3937 = vmatpush1.msra.mxu0 0.0
      %3938 = vmatprep.subr.mxu0 0.0
      %3939 = vmatpush1.msra.mxu0 0.0
      %3940 = vmatprep.subr.mxu0 0.0
      %3941 = vmatpush1.msra.mxu0 0.0
      %3942 = vmatprep.subr.mxu0 0.0
      %3943 = vmatpush1.msra.mxu0 0.0
      %3944 = vmatprep.subr.mxu0 0.0
      %3945 = vmatpush1.msra.mxu0 0.0
      %3946 = vmatprep.subr.mxu0 0.0
      %3947 = vmatpush1.msra.mxu0 0.0
      %3948 = vmatprep.subr.mxu0 0.0
      %3949 = vmatpush1.msra.mxu0 0.0
      %3950 = vmatprep.subr.mxu0 0.0
      %3951 = vmatpush1.msra.mxu0 0.0
      %3952 = vmatprep.subr.mxu0 0.0
      %3953 = vmatpush1.msra.mxu0 0.0
      %3954 = vmatprep.subr.mxu0 0.0
      %3955 = vmatpush1.msra.mxu0 0.0
      %3956 = vmatprep.subr.mxu0 0.0
      %3957 = vmatpush1.msra.mxu0 0.0
      %3958 = vmatprep.subr.mxu0 0.0
      %3959 = vmatpush1.msra.mxu0 0.0
      %3960 = vmatprep.subr.mxu0 0.0
      %3961 = vmatpush1.msra.mxu0 0.0
      %3962 = vmatprep.mubr.f32.mxu0 0.0
      %3963 = vmatmul.mubr.f32.gmra.mrb[0].mxu0 %v3893
      %v3964 = vpop.f32.mrb[0].mxu0
      %v3965 = vadd.f32 0.0, %v3964
      %v3966 = vpop.f32.mrb[0].mxu0
      %v3967 = vadd.f32 0.0, %v3966
      %3968 = vmatprep.mubr.f32.mxu0 0.0
      %3969 = vmatmul.mubr.f32.gmra.mrb[0].mxu0 %v3896
      %v3970 = vpop.f32.mrb[0].mxu0
      %v3971 = vadd.f32 0.0, %v3970
      %v3972 = vpop.f32.mrb[0].mxu0
      %v3973 = vadd.f32 0.0, %v3972
      %3974 = vdwg.mxu0
      %v3975 = vadd.f32 %v3863, %v3965
      %v3976 = vadd.f32 %v3864, %v3967
      %v3977 = vadd.f32 %v3865, %v3971
      %v3978 = vadd.f32 %v3866, %v3973
      %3979 = vrot.lane.b32.xlu0 %v3218, 112
      %v3980 = vpop.permute.xlu0 %3979
      %3981 = vrot.lane.b32.xlu0 %v3219, 112
      %v3982 = vpop.permute.xlu0 %3981
      %3983 = vrot.lane.b32.xlu0 %v3220, 112
      %v3984 = vpop.permute.xlu0 %3983
      %3985 = vrot.lane.b32.xlu0 %v3221, 112
      %v3986 = vpop.permute.xlu0 %3985
      %v3987 = vsel %vm1555, %v3980, %v3982
      %v3988 = vsel %vm1555, %v3984, %v3986
      %v3995 = vsel %vm1555, %v3982, %v3980
      %v3996 = vsel %vm1555, %v3986, %v3984
      %v3997 = vmul.f32 %v3987, %v1567
      %v3998 = vmul.f32 %v3995, %v1571
      %v3999 = vmul.f32 %v3988, %v1567
      %v4000 = vmul.f32 %v3996, %v1571
      %s4001 = scalar_lea.vmem %s12, 112
      %v4002 = vld [vmem:[%s4001] sm:$0xff]
      %v4003 = vld [vmem:[%s4001 + $0x8] sm:$0xff]
      %v4005 = vsel %vm612, %v4002, 0
      %v4008 = vsel %vm612, %v4003, 0
      %4010 = vmatprep.subr.mxu0 %v3998
      %4011 = vmatpush1.msra.mxu0 %v3997
      %4012 = vmatprep.subr.mxu0 %v4000
      %4013 = vmatpush1.msra.mxu0 %v3999
      %4014 = vmatprep.subr.mxu0 0.0
      %4015 = vmatpush1.msra.mxu0 0.0
      %4016 = vmatprep.subr.mxu0 0.0
      %4017 = vmatpush1.msra.mxu0 0.0
      %4018 = vmatprep.subr.mxu0 0.0
      %4019 = vmatpush1.msra.mxu0 0.0
      %4020 = vmatprep.subr.mxu0 0.0
      %4021 = vmatpush1.msra.mxu0 0.0
      %4022 = vmatprep.subr.mxu0 0.0
      %4023 = vmatpush1.msra.mxu0 0.0
      %4024 = vmatprep.subr.mxu0 0.0
      %4025 = vmatpush1.msra.mxu0 0.0
      %4026 = vmatprep.subr.mxu0 0.0
      %4027 = vmatpush1.msra.mxu0 0.0
      %4028 = vmatprep.subr.mxu0 0.0
      %4029 = vmatpush1.msra.mxu0 0.0
      %4030 = vmatprep.subr.mxu0 0.0
      %4031 = vmatpush1.msra.mxu0 0.0
      %4032 = vmatprep.subr.mxu0 0.0
      %4033 = vmatpush1.msra.mxu0 0.0
      %4034 = vmatprep.subr.mxu0 0.0
      %4035 = vmatpush1.msra.mxu0 0.0
      %4036 = vmatprep.subr.mxu0 0.0
      %4037 = vmatpush1.msra.mxu0 0.0
      %4038 = vmatprep.subr.mxu0 0.0
      %4039 = vmatpush1.msra.mxu0 0.0
      %4040 = vmatprep.subr.mxu0 0.0
      %4041 = vmatpush1.msra.mxu0 0.0
      %4042 = vmatprep.subr.mxu0 0.0
      %4043 = vmatpush1.msra.mxu0 0.0
      %4044 = vmatprep.subr.mxu0 0.0
      %4045 = vmatpush1.msra.mxu0 0.0
      %4046 = vmatprep.subr.mxu0 0.0
      %4047 = vmatpush1.msra.mxu0 0.0
      %4048 = vmatprep.subr.mxu0 0.0
      %4049 = vmatpush1.msra.mxu0 0.0
      %4050 = vmatprep.subr.mxu0 0.0
      %4051 = vmatpush1.msra.mxu0 0.0
      %4052 = vmatprep.subr.mxu0 0.0
      %4053 = vmatpush1.msra.mxu0 0.0
      %4054 = vmatprep.subr.mxu0 0.0
      %4055 = vmatpush1.msra.mxu0 0.0
      %4056 = vmatprep.subr.mxu0 0.0
      %4057 = vmatpush1.msra.mxu0 0.0
      %4058 = vmatprep.subr.mxu0 0.0
      %4059 = vmatpush1.msra.mxu0 0.0
      %4060 = vmatprep.subr.mxu0 0.0
      %4061 = vmatpush1.msra.mxu0 0.0
      %4062 = vmatprep.subr.mxu0 0.0
      %4063 = vmatpush1.msra.mxu0 0.0
      %4064 = vmatprep.subr.mxu0 0.0
      %4065 = vmatpush1.msra.mxu0 0.0
      %4066 = vmatprep.subr.mxu0 0.0
      %4067 = vmatpush1.msra.mxu0 0.0
      %4068 = vmatprep.subr.mxu0 0.0
      %4069 = vmatpush1.msra.mxu0 0.0
      %4070 = vmatprep.subr.mxu0 0.0
      %4071 = vmatpush1.msra.mxu0 0.0
      %4072 = vmatprep.subr.mxu0 0.0
      %4073 = vmatpush1.msra.mxu0 0.0
      %4074 = vmatprep.mubr.f32.mxu0 0.0
      %4075 = vmatmul.mubr.f32.gmra.mrb[0].mxu0 %v4005
      %v4076 = vpop.f32.mrb[0].mxu0
      %v4077 = vadd.f32 0.0, %v4076
      %v4078 = vpop.f32.mrb[0].mxu0
      %v4079 = vadd.f32 0.0, %v4078
      %4080 = vmatprep.mubr.f32.mxu0 0.0
      %4081 = vmatmul.mubr.f32.gmra.mrb[0].mxu0 %v4008
      %v4082 = vpop.f32.mrb[0].mxu0
      %v4083 = vadd.f32 0.0, %v4082
      %v4084 = vpop.f32.mrb[0].mxu0
      %v4085 = vadd.f32 0.0, %v4084
      %4086 = vdwg.mxu0
      %v4087 = vadd.f32 %v3975, %v4077
      %v4088 = vadd.f32 %v3976, %v4079
      %v4089 = vadd.f32 %v3977, %v4083
      %v4090 = vadd.f32 %v3978, %v4085
      %4091 = vrot.lane.b32.xlu0 %v3218, 111
      %v4092 = vpop.permute.xlu0 %4091
      %4093 = vrot.lane.b32.xlu0 %v3219, 111
      %v4094 = vpop.permute.xlu0 %4093
      %4095 = vrot.lane.b32.xlu0 %v3220, 111
      %v4096 = vpop.permute.xlu0 %4095
      %4097 = vrot.lane.b32.xlu0 %v3221, 111
      %v4098 = vpop.permute.xlu0 %4097
      %v4099 = vsel %vm1700, %v4092, %v4094
      %v4100 = vsel %vm1700, %v4096, %v4098
      %v4107 = vsel %vm1700, %v4094, %v4092
      %v4108 = vsel %vm1700, %v4098, %v4096
      %v4109 = vmul.f32 %v4099, %v1712
      %v4110 = vmul.f32 %v4107, %v1716
      %v4111 = vmul.f32 %v4100, %v1712
      %v4112 = vmul.f32 %v4108, %v1716
      %s4113 = scalar_lea.vmem %s12, 128
      %v4114 = vld [vmem:[%s4113] sm:$0xff]
      %v4115 = vld [vmem:[%s4113 + $0x8] sm:$0xff]
      %v4117 = vsel %vm612, %v4114, 0
      %v4120 = vsel %vm612, %v4115, 0
      %4122 = vmatprep.subr.mxu0 %v4110
      %4123 = vmatpush1.msra.mxu0 %v4109
      %4124 = vmatprep.subr.mxu0 %v4112
      %4125 = vmatpush1.msra.mxu0 %v4111
      %4126 = vmatprep.subr.mxu0 0.0
      %4127 = vmatpush1.msra.mxu0 0.0
      %4128 = vmatprep.subr.mxu0 0.0
      %4129 = vmatpush1.msra.mxu0 0.0
      %4130 = vmatprep.subr.mxu0 0.0
      %4131 = vmatpush1.msra.mxu0 0.0
      %4132 = vmatprep.subr.mxu0 0.0
      %4133 = vmatpush1.msra.mxu0 0.0
      %4134 = vmatprep.subr.mxu0 0.0
      %4135 = vmatpush1.msra.mxu0 0.0
      %4136 = vmatprep.subr.mxu0 0.0
      %4137 = vmatpush1.msra.mxu0 0.0
      %4138 = vmatprep.subr.mxu0 0.0
      %4139 = vmatpush1.msra.mxu0 0.0
      %4140 = vmatprep.subr.mxu0 0.0
      %4141 = vmatpush1.msra.mxu0 0.0
      %4142 = vmatprep.subr.mxu0 0.0
      %4143 = vmatpush1.msra.mxu0 0.0
      %4144 = vmatprep.subr.mxu0 0.0
      %4145 = vmatpush1.msra.mxu0 0.0
      %4146 = vmatprep.subr.mxu0 0.0
      %4147 = vmatpush1.msra.mxu0 0.0
      %4148 = vmatprep.subr.mxu0 0.0
      %4149 = vmatpush1.msra.mxu0 0.0
      %4150 = vmatprep.subr.mxu0 0.0
      %4151 = vmatpush1.msra.mxu0 0.0
      %4152 = vmatprep.subr.mxu0 0.0
      %4153 = vmatpush1.msra.mxu0 0.0
      %4154 = vmatprep.subr.mxu0 0.0
      %4155 = vmatpush1.msra.mxu0 0.0
      %4156 = vmatprep.subr.mxu0 0.0
      %4157 = vmatpush1.msra.mxu0 0.0
      %4158 = vmatprep.subr.mxu0 0.0
      %4159 = vmatpush1.msra.mxu0 0.0
      %4160 = vmatprep.subr.mxu0 0.0
      %4161 = vmatpush1.msra.mxu0 0.0
      %4162 = vmatprep.subr.mxu0 0.0
      %4163 = vmatpush1.msra.mxu0 0.0
      %4164 = vmatprep.subr.mxu0 0.0
      %4165 = vmatpush1.msra.mxu0 0.0
      %4166 = vmatprep.subr.mxu0 0.0
      %4167 = vmatpush1.msra.mxu0 0.0
      %4168 = vmatprep.subr.mxu0 0.0
      %4169 = vmatpush1.msra.mxu0 0.0
      %4170 = vmatprep.subr.mxu0 0.0
      %4171 = vmatpush1.msra.mxu0 0.0
      %4172 = vmatprep.subr.mxu0 0.0
      %4173 = vmatpush1.msra.mxu0 0.0
      %4174 = vmatprep.subr.mxu0 0.0
      %4175 = vmatpush1.msra.mxu0 0.0
      %4176 = vmatprep.subr.mxu0 0.0
      %4177 = vmatpush1.msra.mxu0 0.0
      %4178 = vmatprep.subr.mxu0 0.0
      %4179 = vmatpush1.msra.mxu0 0.0
      %4180 = vmatprep.subr.mxu0 0.0
      %4181 = vmatpush1.msra.mxu0 0.0
      %4182 = vmatprep.subr.mxu0 0.0
      %4183 = vmatpush1.msra.mxu0 0.0
      %4184 = vmatprep.subr.mxu0 0.0
      %4185 = vmatpush1.msra.mxu0 0.0
      %4186 = vmatprep.mubr.f32.mxu0 0.0
      %4187 = vmatmul.mubr.f32.gmra.mrb[0].mxu0 %v4117
      %v4188 = vpop.f32.mrb[0].mxu0
      %v4189 = vadd.f32 0.0, %v4188
      %v4190 = vpop.f32.mrb[0].mxu0
      %v4191 = vadd.f32 0.0, %v4190
      %4192 = vmatprep.mubr.f32.mxu0 0.0
      %4193 = vmatmul.mubr.f32.gmra.mrb[0].mxu0 %v4120
      %v4194 = vpop.f32.mrb[0].mxu0
      %v4195 = vadd.f32 0.0, %v4194
      %v4196 = vpop.f32.mrb[0].mxu0
      %v4197 = vadd.f32 0.0, %v4196
      %4198 = vdwg.mxu0
      %v4199 = vadd.f32 %v4087, %v4189
      %v4200 = vadd.f32 %v4088, %v4191
      %v4201 = vadd.f32 %v4089, %v4195
      %v4202 = vadd.f32 %v4090, %v4197
      %v4203 = vld [vmem:[%s13] sm:$0xff]
      %v4204 = vld [vmem:[%s13 + $0x8] sm:$0xff]
      %4206 = vset.pattern.permute.xlu0 0
      %4207 = vperm.xlu0 %4206, %v4203
      %v4208 = vpop.permute.xlu0 %4207
      %4211 = vset.pattern.permute.xlu0 0
      %4212 = vperm.xlu0 %4211, %v4204
      %v4213 = vpop.permute.xlu0 %4212
      %v4215 = vadd.f32 %v4199, %v4208
      %v4216 = vadd.f32 %v4200, %v4208
      %v4217 = vadd.f32 %v4201, %v4213
      %v4218 = vadd.f32 %v4202, %v4213
      %v4219 = vmax.f32 %v4215, 0.0
      %v4220 = vmax.f32 %v4216, 0.0
      %v4221 = vmax.f32 %v4217, 0.0
      %v4222 = vmax.f32 %v4218, 0.0
      %v4223 = vld [vmem:[%s14] sm:$0xff]
      %v4224 = vld [vmem:[%s14 + $0x8] sm:$0xff]
      %v4225 = vld [vmem:[%s14 + $0x10] sm:$0xff]
      %v4226 = vld [vmem:[%s14 + $0x18] sm:$0xff]
      %v4227 = vld [vmem:[%s15] sm:$0xff]
      %v4228 = vld [vmem:[%s15 + $0x8] sm:$0xff]
      %v4229 = vld [vmem:[%s15 + $0x10] sm:$0xff]
      %v4230 = vld [vmem:[%s15 + $0x18] sm:$0xff]
      %4232 = vset.pattern.permute.xlu0 0
      %4233 = vperm.xlu0 %4232, %v4227
      %v4234 = vpop.permute.xlu0 %4233
      %4237 = vset.pattern.permute.xlu0 0
      %4238 = vperm.xlu0 %4237, %v4228
      %v4239 = vpop.permute.xlu0 %4238
      %4242 = vset.pattern.permute.xlu0 0
      %4243 = vperm.xlu0 %4242, %v4229
      %v4244 = vpop.permute.xlu0 %4243
      %4247 = vset.pattern.permute.xlu0 0
      %4248 = vperm.xlu0 %4247, %v4230
      %v4249 = vpop.permute.xlu0 %4248
      %v4252 = vsel %vm612, %v4223, 0
      %v4255 = vsel %vm612, %v4224, 0
      %v4258 = vsel %vm612, %v4225, 0
      %v4261 = vsel %vm612, %v4226, 0
      %4263 = vmatprep.subr.mxu0 %v4220
      %4264 = vmatpush1.msra.mxu0 %v4219
      %4265 = vmatprep.subr.mxu0 %v4222
      %4266 = vmatpush1.msra.mxu0 %v4221
      %4267 = vmatprep.subr.mxu0 0.0
      %4268 = vmatpush1.msra.mxu0 0.0
      %4269 = vmatprep.subr.mxu0 0.0
      %4270 = vmatpush1.msra.mxu0 0.0
      %4271 = vmatprep.subr.mxu0 0.0
      %4272 = vmatpush1.msra.mxu0 0.0
      %4273 = vmatprep.subr.mxu0 0.0
      %4274 = vmatpush1.msra.mxu0 0.0
      %4275 = vmatprep.subr.mxu0 0.0
      %4276 = vmatpush1.msra.mxu0 0.0
      %4277 = vmatprep.subr.mxu0 0.0
      %4278 = vmatpush1.msra.mxu0 0.0
      %4279 = vmatprep.subr.mxu0 0.0
      %4280 = vmatpush1.msra.mxu0 0.0
      %4281 = vmatprep.subr.mxu0 0.0
      %4282 = vmatpush1.msra.mxu0 0.0
      %4283 = vmatprep.subr.mxu0 0.0
      %4284 = vmatpush1.msra.mxu0 0.0
      %4285 = vmatprep.subr.mxu0 0.0
      %4286 = vmatpush1.msra.mxu0 0.0
      %4287 = vmatprep.subr.mxu0 0.0
      %4288 = vmatpush1.msra.mxu0 0.0
      %4289 = vmatprep.subr.mxu0 0.0
      %4290 = vmatpush1.msra.mxu0 0.0
      %4291 = vmatprep.subr.mxu0 0.0
      %4292 = vmatpush1.msra.mxu0 0.0
      %4293 = vmatprep.subr.mxu0 0.0
      %4294 = vmatpush1.msra.mxu0 0.0
      %4295 = vmatprep.subr.mxu0 0.0
      %4296 = vmatpush1.msra.mxu0 0.0
      %4297 = vmatprep.subr.mxu0 0.0
      %4298 = vmatpush1.msra.mxu0 0.0
      %4299 = vmatprep.subr.mxu0 0.0
      %4300 = vmatpush1.msra.mxu0 0.0
      %4301 = vmatprep.subr.mxu0 0.0
      %4302 = vmatpush1.msra.mxu0 0.0
      %4303 = vmatprep.subr.mxu0 0.0
      %4304 = vmatpush1.msra.mxu0 0.0
      %4305 = vmatprep.subr.mxu0 0.0
      %4306 = vmatpush1.msra.mxu0 0.0
      %4307 = vmatprep.subr.mxu0 0.0
      %4308 = vmatpush1.msra.mxu0 0.0
      %4309 = vmatprep.subr.mxu0 0.0
      %4310 = vmatpush1.msra.mxu0 0.0
      %4311 = vmatprep.subr.mxu0 0.0
      %4312 = vmatpush1.msra.mxu0 0.0
      %4313 = vmatprep.subr.mxu0 0.0
      %4314 = vmatpush1.msra.mxu0 0.0
      %4315 = vmatprep.subr.mxu0 0.0
      %4316 = vmatpush1.msra.mxu0 0.0
      %4317 = vmatprep.subr.mxu0 0.0
      %4318 = vmatpush1.msra.mxu0 0.0
      %4319 = vmatprep.subr.mxu0 0.0
      %4320 = vmatpush1.msra.mxu0 0.0
      %4321 = vmatprep.subr.mxu0 0.0
      %4322 = vmatpush1.msra.mxu0 0.0
      %4323 = vmatprep.subr.mxu0 0.0
      %4324 = vmatpush1.msra.mxu0 0.0
      %4325 = vmatprep.subr.mxu0 0.0
      %4326 = vmatpush1.msra.mxu0 0.0
      %4327 = vmatprep.mubr.f32.mxu0 0.0
      %4328 = vmatmul.mubr.f32.gmra.mrb[0].mxu0 %v4252
      %v4329 = vpop.f32.mrb[0].mxu0
      %v4330 = vadd.f32 %v4234, %v4329
      %v4331 = vpop.f32.mrb[0].mxu0
      %v4332 = vadd.f32 %v4234, %v4331
      %4333 = vmatprep.mubr.f32.mxu0 0.0
      %4334 = vmatmul.mubr.f32.gmra.mrb[0].mxu0 %v4255
      %v4335 = vpop.f32.mrb[0].mxu0
      %v4336 = vadd.f32 %v4239, %v4335
      %v4337 = vpop.f32.mrb[0].mxu0
      %v4338 = vadd.f32 %v4239, %v4337
      %4339 = vmatprep.mubr.f32.mxu0 0.0
      %4340 = vmatmul.mubr.f32.gmra.mrb[0].mxu0 %v4258
      %v4341 = vpop.f32.mrb[0].mxu0
      %v4342 = vadd.f32 %v4244, %v4341
      %v4343 = vpop.f32.mrb[0].mxu0
      %v4344 = vadd.f32 %v4244, %v4343
      %4345 = vmatprep.mubr.f32.mxu0 0.0
      %4346 = vmatmul.mubr.f32.gmra.mrb[0].mxu0 %v4261
      %v4347 = vpop.f32.mrb[0].mxu0
      %v4348 = vadd.f32 %v4249, %v4347
      %v4349 = vpop.f32.mrb[0].mxu0
      %v4350 = vadd.f32 %v4249, %v4349
      %4351 = vdwg.mxu0
      %v4352 = vadd.f32 %v3113, %v4330
      %v4353 = vadd.f32 %v3114, %v4332
      %v4354 = vadd.f32 %v3115, %v4336
      %v4355 = vadd.f32 %v3116, %v4338
      %v4356 = vadd.f32 %v3117, %v4342
      %v4357 = vadd.f32 %v3118, %v4344
      %v4358 = vadd.f32 %v3119, %v4348
      %v4359 = vadd.f32 %v3120, %v4350
      %v4360 = vmax.f32 %v4352, 0.0
      %v4361 = vmax.f32 %v4353, 0.0
      %v4362 = vmax.f32 %v4354, 0.0
      %v4363 = vmax.f32 %v4355, 0.0
      %v4364 = vmax.f32 %v4356, 0.0
      %v4365 = vmax.f32 %v4357, 0.0
      %v4366 = vmax.f32 %v4358, 0.0
      %v4367 = vmax.f32 %v4359, 0.0
      %4372 = vrot.lane.b32.xlu0 %v4361, 17
      %v4373 = vpop.permute.xlu0 %4372
      %4374 = vrot.lane.b32.xlu0 %v4363, 17
      %v4375 = vpop.permute.xlu0 %4374
      %4376 = vrot.lane.b32.xlu0 %v4365, 17
      %v4377 = vpop.permute.xlu0 %4376
      %4378 = vrot.lane.b32.xlu0 %v4367, 17
      %v4379 = vpop.permute.xlu0 %4378
      %4388 = vrot.lane.b32.xlu0 %v4360, 17
      %v4389 = vpop.permute.xlu0 %4388
      %4390 = vrot.lane.b32.xlu0 %v4362, 17
      %v4391 = vpop.permute.xlu0 %4390
      %4392 = vrot.lane.b32.xlu0 %v4364, 17
      %v4393 = vpop.permute.xlu0 %4392
      %4394 = vrot.lane.b32.xlu0 %v4366, 17
      %v4395 = vpop.permute.xlu0 %4394
      %v4396 = vsel %vm584, %v4389, %v4373
      %v4397 = vsel %vm584, %v4391, %v4375
      %v4398 = vsel %vm584, %v4393, %v4377
      %v4399 = vsel %vm584, %v4395, %v4379
      %v4408 = vsel %vm584, %v4373, %v4389
      %v4409 = vsel %vm584, %v4375, %v4391
      %v4410 = vsel %vm584, %v4377, %v4393
      %v4411 = vsel %vm584, %v4379, %v4395
      %v4412 = vmul.f32 %v4408, %v594
      %v4413 = vmul.f32 %v4396, %v598
      %v4414 = vmul.f32 %v4409, %v594
      %v4415 = vmul.f32 %v4397, %v598
      %v4416 = vmul.f32 %v4410, %v594
      %v4417 = vmul.f32 %v4398, %v598
      %v4418 = vmul.f32 %v4411, %v594
      %v4419 = vmul.f32 %v4399, %v598
      %v4420 = vld [vmem:[%s16] sm:$0xf]
      %4421 = vrot.lane.b32.xlu0 %v4361, 16
      %v4422 = vpop.permute.xlu0 %4421
      %4423 = vrot.lane.b32.xlu0 %v4363, 16
      %v4424 = vpop.permute.xlu0 %4423
      %4425 = vrot.lane.b32.xlu0 %v4365, 16
      %v4426 = vpop.permute.xlu0 %4425
      %4427 = vrot.lane.b32.xlu0 %v4367, 16
      %v4428 = vpop.permute.xlu0 %4427
      %4433 = vrot.lane.b32.xlu0 %v4360, 16
      %v4434 = vpop.permute.xlu0 %4433
      %4435 = vrot.lane.b32.xlu0 %v4362, 16
      %v4436 = vpop.permute.xlu0 %4435
      %4437 = vrot.lane.b32.xlu0 %v4364, 16
      %v4438 = vpop.permute.xlu0 %4437
      %4439 = vrot.lane.b32.xlu0 %v4366, 16
      %v4440 = vpop.permute.xlu0 %4439
      %v4441 = vsel %vm612, %v4434, %v4422
      %v4442 = vsel %vm612, %v4436, %v4424
      %v4443 = vsel %vm612, %v4438, %v4426
      %v4444 = vsel %vm612, %v4440, %v4428
      %v4453 = vsel %vm612, %v4422, %v4434
      %v4454 = vsel %vm612, %v4424, %v4436
      %v4455 = vsel %vm612, %v4426, %v4438
      %v4456 = vsel %vm612, %v4428, %v4440
      %v4457 = vmul.f32 %v4453, %v623
      %v4458 = vmul.f32 %v4441, %v627
      %v4459 = vmul.f32 %v4454, %v623
      %v4460 = vmul.f32 %v4442, %v627
      %v4461 = vmul.f32 %v4455, %v623
      %v4462 = vmul.f32 %v4443, %v627
      %v4463 = vmul.f32 %v4456, %v623
      %v4464 = vmul.f32 %v4444, %v627
      %s4465 = scalar_lea.vmem %s16, 4
      %v4466 = vld [vmem:[%s4465] sm:$0xf]
      %v4468 = vsel %vm1895, %v4466, 0
      %4470 = vmatprep.subr.mxu0 %v4458
      %4471 = vmatpush1.msra.mxu0 %v4457
      %4472 = vmatprep.subr.mxu0 %v4460
      %4473 = vmatpush1.msra.mxu0 %v4459
      %4474 = vmatprep.subr.mxu0 %v4462
      %4475 = vmatpush1.msra.mxu0 %v4461
      %4476 = vmatprep.subr.mxu0 %v4464
      %4477 = vmatpush1.msra.mxu0 %v4463
      %4478 = vmatprep.subr.mxu0 0.0
      %4479 = vmatpush1.msra.mxu0 0.0
      %4480 = vmatprep.subr.mxu0 0.0
      %4481 = vmatpush1.msra.mxu0 0.0
      %4482 = vmatprep.subr.mxu0 0.0
      %4483 = vmatpush1.msra.mxu0 0.0
      %4484 = vmatprep.subr.mxu0 0.0
      %4485 = vmatpush1.msra.mxu0 0.0
      %4486 = vmatprep.subr.mxu0 0.0
      %4487 = vmatpush1.msra.mxu0 0.0
      %4488 = vmatprep.subr.mxu0 0.0
      %4489 = vmatpush1.msra.mxu0 0.0
      %4490 = vmatprep.subr.mxu0 0.0
      %4491 = vmatpush1.msra.mxu0 0.0
      %4492 = vmatprep.subr.mxu0 0.0
      %4493 = vmatpush1.msra.mxu0 0.0
      %4494 = vmatprep.subr.mxu0 0.0
      %4495 = vmatpush1.msra.mxu0 0.0
      %4496 = vmatprep.subr.mxu0 0.0
      %4497 = vmatpush1.msra.mxu0 0.0
      %4498 = vmatprep.subr.mxu0 0.0
      %4499 = vmatpush1.msra.mxu0 0.0
      %4500 = vmatprep.subr.mxu0 0.0
      %4501 = vmatpush1.msra.mxu0 0.0
      %4502 = vmatprep.subr.mxu0 0.0
      %4503 = vmatpush1.msra.mxu0 0.0
      %4504 = vmatprep.subr.mxu0 0.0
      %4505 = vmatpush1.msra.mxu0 0.0
      %4506 = vmatprep.subr.mxu0 0.0
      %4507 = vmatpush1.msra.mxu0 0.0
      %4508 = vmatprep.subr.mxu0 0.0
      %4509 = vmatpush1.msra.mxu0 0.0
      %4510 = vmatprep.subr.mxu0 0.0
      %4511 = vmatpush1.msra.mxu0 0.0
      %4512 = vmatprep.subr.mxu0 0.0
      %4513 = vmatpush1.msra.mxu0 0.0
      %4514 = vmatprep.subr.mxu0 0.0
      %4515 = vmatpush1.msra.mxu0 0.0
      %4516 = vmatprep.subr.mxu0 0.0
      %4517 = vmatpush1.msra.mxu0 0.0
      %4518 = vmatprep.subr.mxu0 0.0
      %4519 = vmatpush1.msra.mxu0 0.0
      %4520 = vmatprep.subr.mxu0 0.0
      %4521 = vmatpush1.msra.mxu0 0.0
      %4522 = vmatprep.subr.mxu0 0.0
      %4523 = vmatpush1.msra.mxu0 0.0
      %4524 = vmatprep.subr.mxu0 0.0
      %4525 = vmatpush1.msra.mxu0 0.0
      %4526 = vmatprep.subr.mxu0 0.0
      %4527 = vmatpush1.msra.mxu0 0.0
      %4528 = vmatprep.subr.mxu0 0.0
      %4529 = vmatpush1.msra.mxu0 0.0
      %4530 = vmatprep.subr.mxu0 0.0
      %4531 = vmatpush1.msra.mxu0 0.0
      %4532 = vmatprep.subr.mxu0 0.0
      %4533 = vmatpush1.msra.mxu0 0.0
      %4534 = vmatprep.mubr.f32.mxu0 0.0
      %4535 = vmatmul.mubr.f32.gmra.mrb[0].mxu0 %v4468
      %v4536 = vpop.f32.mrb[0].mxu0
      %v4537 = vadd.f32 0.0, %v4536
      %v4538 = vpop.f32.mrb[0].mxu0
      %v4539 = vadd.f32 0.0, %v4538
      %4540 = vdwg.mxu0
      %v4542 = vsel %vm1895, %v4420, 0
      %4544 = vmatprep.subr.mxu0 %v4413
      %4545 = vmatpush1.msra.mxu0 %v4412
      %4546 = vmatprep.subr.mxu0 %v4415
      %4547 = vmatpush1.msra.mxu0 %v4414
      %4548 = vmatprep.subr.mxu0 %v4417
      %4549 = vmatpush1.msra.mxu0 %v4416
      %4550 = vmatprep.subr.mxu0 %v4419
      %4551 = vmatpush1.msra.mxu0 %v4418
      %4552 = vmatprep.subr.mxu0 0.0
      %4553 = vmatpush1.msra.mxu0 0.0
      %4554 = vmatprep.subr.mxu0 0.0
      %4555 = vmatpush1.msra.mxu0 0.0
      %4556 = vmatprep.subr.mxu0 0.0
      %4557 = vmatpush1.msra.mxu0 0.0
      %4558 = vmatprep.subr.mxu0 0.0
      %4559 = vmatpush1.msra.mxu0 0.0
      %4560 = vmatprep.subr.mxu0 0.0
      %4561 = vmatpush1.msra.mxu0 0.0
      %4562 = vmatprep.subr.mxu0 0.0
      %4563 = vmatpush1.msra.mxu0 0.0
      %4564 = vmatprep.subr.mxu0 0.0
      %4565 = vmatpush1.msra.mxu0 0.0
      %4566 = vmatprep.subr.mxu0 0.0
      %4567 = vmatpush1.msra.mxu0 0.0
      %4568 = vmatprep.subr.mxu0 0.0
      %4569 = vmatpush1.msra.mxu0 0.0
      %4570 = vmatprep.subr.mxu0 0.0
      %4571 = vmatpush1.msra.mxu0 0.0
      %4572 = vmatprep.subr.mxu0 0.0
      %4573 = vmatpush1.msra.mxu0 0.0
      %4574 = vmatprep.subr.mxu0 0.0
      %4575 = vmatpush1.msra.mxu0 0.0
      %4576 = vmatprep.subr.mxu0 0.0
      %4577 = vmatpush1.msra.mxu0 0.0
      %4578 = vmatprep.subr.mxu0 0.0
      %4579 = vmatpush1.msra.mxu0 0.0
      %4580 = vmatprep.subr.mxu0 0.0
      %4581 = vmatpush1.msra.mxu0 0.0
      %4582 = vmatprep.subr.mxu0 0.0
      %4583 = vmatpush1.msra.mxu0 0.0
      %4584 = vmatprep.subr.mxu0 0.0
      %4585 = vmatpush1.msra.mxu0 0.0
      %4586 = vmatprep.subr.mxu0 0.0
      %4587 = vmatpush1.msra.mxu0 0.0
      %4588 = vmatprep.subr.mxu0 0.0
      %4589 = vmatpush1.msra.mxu0 0.0
      %4590 = vmatprep.subr.mxu0 0.0
      %4591 = vmatpush1.msra.mxu0 0.0
      %4592 = vmatprep.subr.mxu0 0.0
      %4593 = vmatpush1.msra.mxu0 0.0
      %4594 = vmatprep.subr.mxu0 0.0
      %4595 = vmatpush1.msra.mxu0 0.0
      %4596 = vmatprep.subr.mxu0 0.0
      %4597 = vmatpush1.msra.mxu0 0.0
      %4598 = vmatprep.subr.mxu0 0.0
      %4599 = vmatpush1.msra.mxu0 0.0
      %4600 = vmatprep.subr.mxu0 0.0
      %4601 = vmatpush1.msra.mxu0 0.0
      %4602 = vmatprep.subr.mxu0 0.0
      %4603 = vmatpush1.msra.mxu0 0.0
      %4604 = vmatprep.subr.mxu0 0.0
      %4605 = vmatpush1.msra.mxu0 0.0
      %4606 = vmatprep.subr.mxu0 0.0
      %4607 = vmatpush1.msra.mxu0 0.0
      %4608 = vmatprep.mubr.f32.mxu0 0.0
      %4609 = vmatmul.mubr.f32.gmra.mrb[0].mxu0 %v4542
      %v4610 = vpop.f32.mrb[0].mxu0
      %v4611 = vadd.f32 %v4537, %v4610
      %v4612 = vpop.f32.mrb[0].mxu0
      %v4613 = vadd.f32 %v4539, %v4612
      %4614 = vdwg.mxu0
      %4615 = vrot.lane.b32.xlu0 %v4361, 15
      %v4616 = vpop.permute.xlu0 %4615
      %4617 = vrot.lane.b32.xlu0 %v4363, 15
      %v4618 = vpop.permute.xlu0 %4617
      %4619 = vrot.lane.b32.xlu0 %v4365, 15
      %v4620 = vpop.permute.xlu0 %4619
      %4621 = vrot.lane.b32.xlu0 %v4367, 15
      %v4622 = vpop.permute.xlu0 %4621
      %4627 = vrot.lane.b32.xlu0 %v4360, 15
      %v4628 = vpop.permute.xlu0 %4627
      %4629 = vrot.lane.b32.xlu0 %v4362, 15
      %v4630 = vpop.permute.xlu0 %4629
      %4631 = vrot.lane.b32.xlu0 %v4364, 15
      %v4632 = vpop.permute.xlu0 %4631
      %4633 = vrot.lane.b32.xlu0 %v4366, 15
      %v4634 = vpop.permute.xlu0 %4633
      %v4635 = vsel %vm858, %v4628, %v4616
      %v4636 = vsel %vm858, %v4630, %v4618
      %v4637 = vsel %vm858, %v4632, %v4620
      %v4638 = vsel %vm858, %v4634, %v4622
      %v4647 = vsel %vm858, %v4616, %v4628
      %v4648 = vsel %vm858, %v4618, %v4630
      %v4649 = vsel %vm858, %v4620, %v4632
      %v4650 = vsel %vm858, %v4622, %v4634
      %v4651 = vmul.f32 %v4647, %v869
      %v4652 = vmul.f32 %v4635, %v873
      %v4653 = vmul.f32 %v4648, %v869
      %v4654 = vmul.f32 %v4636, %v873
      %v4655 = vmul.f32 %v4649, %v869
      %v4656 = vmul.f32 %v4637, %v873
      %v4657 = vmul.f32 %v4650, %v869
      %v4658 = vmul.f32 %v4638, %v873
      %s4659 = scalar_lea.vmem %s16, 8
      %v4660 = vld [vmem:[%s4659] sm:$0xf]
      %v4662 = vsel %vm1895, %v4660, 0
      %4664 = vmatprep.subr.mxu0 %v4652
      %4665 = vmatpush1.msra.mxu0 %v4651
      %4666 = vmatprep.subr.mxu0 %v4654
      %4667 = vmatpush1.msra.mxu0 %v4653
      %4668 = vmatprep.subr.mxu0 %v4656
      %4669 = vmatpush1.msra.mxu0 %v4655
      %4670 = vmatprep.subr.mxu0 %v4658
      %4671 = vmatpush1.msra.mxu0 %v4657
      %4672 = vmatprep.subr.mxu0 0.0
      %4673 = vmatpush1.msra.mxu0 0.0
      %4674 = vmatprep.subr.mxu0 0.0
      %4675 = vmatpush1.msra.mxu0 0.0
      %4676 = vmatprep.subr.mxu0 0.0
      %4677 = vmatpush1.msra.mxu0 0.0
      %4678 = vmatprep.subr.mxu0 0.0
      %4679 = vmatpush1.msra.mxu0 0.0
      %4680 = vmatprep.subr.mxu0 0.0
      %4681 = vmatpush1.msra.mxu0 0.0
      %4682 = vmatprep.subr.mxu0 0.0
      %4683 = vmatpush1.msra.mxu0 0.0
      %4684 = vmatprep.subr.mxu0 0.0
      %4685 = vmatpush1.msra.mxu0 0.0
      %4686 = vmatprep.subr.mxu0 0.0
      %4687 = vmatpush1.msra.mxu0 0.0
      %4688 = vmatprep.subr.mxu0 0.0
      %4689 = vmatpush1.msra.mxu0 0.0
      %4690 = vmatprep.subr.mxu0 0.0
      %4691 = vmatpush1.msra.mxu0 0.0
      %4692 = vmatprep.subr.mxu0 0.0
      %4693 = vmatpush1.msra.mxu0 0.0
      %4694 = vmatprep.subr.mxu0 0.0
      %4695 = vmatpush1.msra.mxu0 0.0
      %4696 = vmatprep.subr.mxu0 0.0
      %4697 = vmatpush1.msra.mxu0 0.0
      %4698 = vmatprep.subr.mxu0 0.0
      %4699 = vmatpush1.msra.mxu0 0.0
      %4700 = vmatprep.subr.mxu0 0.0
      %4701 = vmatpush1.msra.mxu0 0.0
      %4702 = vmatprep.subr.mxu0 0.0
      %4703 = vmatpush1.msra.mxu0 0.0
      %4704 = vmatprep.subr.mxu0 0.0
      %4705 = vmatpush1.msra.mxu0 0.0
      %4706 = vmatprep.subr.mxu0 0.0
      %4707 = vmatpush1.msra.mxu0 0.0
      %4708 = vmatprep.subr.mxu0 0.0
      %4709 = vmatpush1.msra.mxu0 0.0
      %4710 = vmatprep.subr.mxu0 0.0
      %4711 = vmatpush1.msra.mxu0 0.0
      %4712 = vmatprep.subr.mxu0 0.0
      %4713 = vmatpush1.msra.mxu0 0.0
      %4714 = vmatprep.subr.mxu0 0.0
      %4715 = vmatpush1.msra.mxu0 0.0
      %4716 = vmatprep.subr.mxu0 0.0
      %4717 = vmatpush1.msra.mxu0 0.0
      %4718 = vmatprep.subr.mxu0 0.0
      %4719 = vmatpush1.msra.mxu0 0.0
      %4720 = vmatprep.subr.mxu0 0.0
      %4721 = vmatpush1.msra.mxu0 0.0
      %4722 = vmatprep.subr.mxu0 0.0
      %4723 = vmatpush1.msra.mxu0 0.0
      %4724 = vmatprep.subr.mxu0 0.0
      %4725 = vmatpush1.msra.mxu0 0.0
      %4726 = vmatprep.subr.mxu0 0.0
      %4727 = vmatpush1.msra.mxu0 0.0
      %4728 = vmatprep.mubr.f32.mxu0 0.0
      %4729 = vmatmul.mubr.f32.gmra.mrb[0].mxu0 %v4662
      %v4730 = vpop.f32.mrb[0].mxu0
      %v4731 = vadd.f32 0.0, %v4730
      %v4732 = vpop.f32.mrb[0].mxu0
      %v4733 = vadd.f32 0.0, %v4732
      %4734 = vdwg.mxu0
      %v4735 = vadd.f32 %v4611, %v4731
      %v4736 = vadd.f32 %v4613, %v4733
      %4737 = vrot.lane.b32.xlu0 %v4361, 1
      %v4738 = vpop.permute.xlu0 %4737
      %4739 = vrot.lane.b32.xlu0 %v4363, 1
      %v4740 = vpop.permute.xlu0 %4739
      %4741 = vrot.lane.b32.xlu0 %v4365, 1
      %v4742 = vpop.permute.xlu0 %4741
      %4743 = vrot.lane.b32.xlu0 %v4367, 1
      %v4744 = vpop.permute.xlu0 %4743
      %4749 = vrot.lane.b32.xlu0 %v4360, 1
      %v4750 = vpop.permute.xlu0 %4749
      %4751 = vrot.lane.b32.xlu0 %v4362, 1
      %v4752 = vpop.permute.xlu0 %4751
      %4753 = vrot.lane.b32.xlu0 %v4364, 1
      %v4754 = vpop.permute.xlu0 %4753
      %4755 = vrot.lane.b32.xlu0 %v4366, 1
      %v4756 = vpop.permute.xlu0 %4755
      %v4757 = vsel %vm1003, %v4750, %v4738
      %v4758 = vsel %vm1003, %v4752, %v4740
      %v4759 = vsel %vm1003, %v4754, %v4742
      %v4760 = vsel %vm1003, %v4756, %v4744
      %v4769 = vsel %vm1003, %v4738, %v4750
      %v4770 = vsel %vm1003, %v4740, %v4752
      %v4771 = vsel %vm1003, %v4742, %v4754
      %v4772 = vsel %vm1003, %v4744, %v4756
      %v4773 = vmul.f32 %v4769, %v1014
      %v4774 = vmul.f32 %v4757, %v1018
      %v4775 = vmul.f32 %v4770, %v1014
      %v4776 = vmul.f32 %v4758, %v1018
      %v4777 = vmul.f32 %v4771, %v1014
      %v4778 = vmul.f32 %v4759, %v1018
      %v4779 = vmul.f32 %v4772, %v1014
      %v4780 = vmul.f32 %v4760, %v1018
      %s4781 = scalar_lea.vmem %s16, 12
      %v4782 = vld [vmem:[%s4781] sm:$0xf]
      %v4784 = vsel %vm1895, %v4782, 0
      %4786 = vmatprep.subr.mxu0 %v4774
      %4787 = vmatpush1.msra.mxu0 %v4773
      %4788 = vmatprep.subr.mxu0 %v4776
      %4789 = vmatpush1.msra.mxu0 %v4775
      %4790 = vmatprep.subr.mxu0 %v4778
      %4791 = vmatpush1.msra.mxu0 %v4777
      %4792 = vmatprep.subr.mxu0 %v4780
      %4793 = vmatpush1.msra.mxu0 %v4779
      %4794 = vmatprep.subr.mxu0 0.0
      %4795 = vmatpush1.msra.mxu0 0.0
      %4796 = vmatprep.subr.mxu0 0.0
      %4797 = vmatpush1.msra.mxu0 0.0
      %4798 = vmatprep.subr.mxu0 0.0
      %4799 = vmatpush1.msra.mxu0 0.0
      %4800 = vmatprep.subr.mxu0 0.0
      %4801 = vmatpush1.msra.mxu0 0.0
      %4802 = vmatprep.subr.mxu0 0.0
      %4803 = vmatpush1.msra.mxu0 0.0
      %4804 = vmatprep.subr.mxu0 0.0
      %4805 = vmatpush1.msra.mxu0 0.0
      %4806 = vmatprep.subr.mxu0 0.0
      %4807 = vmatpush1.msra.mxu0 0.0
      %4808 = vmatprep.subr.mxu0 0.0
      %4809 = vmatpush1.msra.mxu0 0.0
      %4810 = vmatprep.subr.mxu0 0.0
      %4811 = vmatpush1.msra.mxu0 0.0
      %4812 = vmatprep.subr.mxu0 0.0
      %4813 = vmatpush1.msra.mxu0 0.0
      %4814 = vmatprep.subr.mxu0 0.0
      %4815 = vmatpush1.msra.mxu0 0.0
      %4816 = vmatprep.subr.mxu0 0.0
      %4817 = vmatpush1.msra.mxu0 0.0
      %4818 = vmatprep.subr.mxu0 0.0
      %4819 = vmatpush1.msra.mxu0 0.0
      %4820 = vmatprep.subr.mxu0 0.0
      %4821 = vmatpush1.msra.mxu0 0.0
      %4822 = vmatprep.subr.mxu0 0.0
      %4823 = vmatpush1.msra.mxu0 0.0
      %4824 = vmatprep.subr.mxu0 0.0
      %4825 = vmatpush1.msra.mxu0 0.0
      %4826 = vmatprep.subr.mxu0 0.0
      %4827 = vmatpush1.msra.mxu0 0.0
      %4828 = vmatprep.subr.mxu0 0.0
      %4829 = vmatpush1.msra.mxu0 0.0
      %4830 = vmatprep.subr.mxu0 0.0
      %4831 = vmatpush1.msra.mxu0 0.0
      %4832 = vmatprep.subr.mxu0 0.0
      %4833 = vmatpush1.msra.mxu0 0.0
      %4834 = vmatprep.subr.mxu0 0.0
      %4835 = vmatpush1.msra.mxu0 0.0
      %4836 = vmatprep.subr.mxu0 0.0
      %4837 = vmatpush1.msra.mxu0 0.0
      %4838 = vmatprep.subr.mxu0 0.0
      %4839 = vmatpush1.msra.mxu0 0.0
      %4840 = vmatprep.subr.mxu0 0.0
      %4841 = vmatpush1.msra.mxu0 0.0
      %4842 = vmatprep.subr.mxu0 0.0
      %4843 = vmatpush1.msra.mxu0 0.0
      %4844 = vmatprep.subr.mxu0 0.0
      %4845 = vmatpush1.msra.mxu0 0.0
      %4846 = vmatprep.subr.mxu0 0.0
      %4847 = vmatpush1.msra.mxu0 0.0
      %4848 = vmatprep.subr.mxu0 0.0
      %4849 = vmatpush1.msra.mxu0 0.0
      %4850 = vmatprep.mubr.f32.mxu0 0.0
      %4851 = vmatmul.mubr.f32.gmra.mrb[0].mxu0 %v4784
      %v4852 = vpop.f32.mrb[0].mxu0
      %v4853 = vadd.f32 0.0, %v4852
      %v4854 = vpop.f32.mrb[0].mxu0
      %v4855 = vadd.f32 0.0, %v4854
      %4856 = vdwg.mxu0
      %v4857 = vadd.f32 %v4735, %v4853
      %v4858 = vadd.f32 %v4736, %v4855
      %s4859 = scalar_lea.vmem %s16, 16
      %v4860 = vld [vmem:[%s4859] sm:$0xf]
      %v4862 = vsel %vm1895, %v4860, 0
      %4864 = vmatprep.subr.mxu0 %v4361
      %4865 = vmatpush1.msra.mxu0 %v4360
      %4866 = vmatprep.subr.mxu0 %v4363
      %4867 = vmatpush1.msra.mxu0 %v4362
      %4868 = vmatprep.subr.mxu0 %v4365
      %4869 = vmatpush1.msra.mxu0 %v4364
      %4870 = vmatprep.subr.mxu0 %v4367
      %4871 = vmatpush1.msra.mxu0 %v4366
      %4872 = vmatprep.subr.mxu0 0.0
      %4873 = vmatpush1.msra.mxu0 0.0
      %4874 = vmatprep.subr.mxu0 0.0
      %4875 = vmatpush1.msra.mxu0 0.0
      %4876 = vmatprep.subr.mxu0 0.0
      %4877 = vmatpush1.msra.mxu0 0.0
      %4878 = vmatprep.subr.mxu0 0.0
      %4879 = vmatpush1.msra.mxu0 0.0
      %4880 = vmatprep.subr.mxu0 0.0
      %4881 = vmatpush1.msra.mxu0 0.0
      %4882 = vmatprep.subr.mxu0 0.0
      %4883 = vmatpush1.msra.mxu0 0.0
      %4884 = vmatprep.subr.mxu0 0.0
      %4885 = vmatpush1.msra.mxu0 0.0
      %4886 = vmatprep.subr.mxu0 0.0
      %4887 = vmatpush1.msra.mxu0 0.0
      %4888 = vmatprep.subr.mxu0 0.0
      %4889 = vmatpush1.msra.mxu0 0.0
      %4890 = vmatprep.subr.mxu0 0.0
      %4891 = vmatpush1.msra.mxu0 0.0
      %4892 = vmatprep.subr.mxu0 0.0
      %4893 = vmatpush1.msra.mxu0 0.0
      %4894 = vmatprep.subr.mxu0 0.0
      %4895 = vmatpush1.msra.mxu0 0.0
      %4896 = vmatprep.subr.mxu0 0.0
      %4897 = vmatpush1.msra.mxu0 0.0
      %4898 = vmatprep.subr.mxu0 0.0
      %4899 = vmatpush1.msra.mxu0 0.0
      %4900 = vmatprep.subr.mxu0 0.0
      %4901 = vmatpush1.msra.mxu0 0.0
      %4902 = vmatprep.subr.mxu0 0.0
      %4903 = vmatpush1.msra.mxu0 0.0
      %4904 = vmatprep.subr.mxu0 0.0
      %4905 = vmatpush1.msra.mxu0 0.0
      %4906 = vmatprep.subr.mxu0 0.0
      %4907 = vmatpush1.msra.mxu0 0.0
      %4908 = vmatprep.subr.mxu0 0.0
      %4909 = vmatpush1.msra.mxu0 0.0
      %4910 = vmatprep.subr.mxu0 0.0
      %4911 = vmatpush1.msra.mxu0 0.0
      %4912 = vmatprep.subr.mxu0 0.0
      %4913 = vmatpush1.msra.mxu0 0.0
      %4914 = vmatprep.subr.mxu0 0.0
      %4915 = vmatpush1.msra.mxu0 0.0
      %4916 = vmatprep.subr.mxu0 0.0
      %4917 = vmatpush1.msra.mxu0 0.0
      %4918 = vmatprep.subr.mxu0 0.0
      %4919 = vmatpush1.msra.mxu0 0.0
      %4920 = vmatprep.subr.mxu0 0.0
      %4921 = vmatpush1.msra.mxu0 0.0
      %4922 = vmatprep.subr.mxu0 0.0
      %4923 = vmatpush1.msra.mxu0 0.0
      %4924 = vmatprep.subr.mxu0 0.0
      %4925 = vmatpush1.msra.mxu0 0.0
      %4926 = vmatprep.subr.mxu0 0.0
      %4927 = vmatpush1.msra.mxu0 0.0
      %4928 = vmatprep.mubr.f32.mxu0 0.0
      %4929 = vmatmul.mubr.f32.gmra.mrb[0].mxu0 %v4862
      %v4930 = vpop.f32.mrb[0].mxu0
      %v4931 = vadd.f32 0.0, %v4930
      %v4932 = vpop.f32.mrb[0].mxu0
      %v4933 = vadd.f32 0.0, %v4932
      %4934 = vdwg.mxu0
      %v4935 = vadd.f32 %v4857, %v4931
      %v4936 = vadd.f32 %v4858, %v4933
      %4937 = vrot.lane.b32.xlu0 %v4360, 127
      %v4938 = vpop.permute.xlu0 %4937
      %4939 = vrot.lane.b32.xlu0 %v4361, 127
      %v4940 = vpop.permute.xlu0 %4939
      %4941 = vrot.lane.b32.xlu0 %v4362, 127
      %v4942 = vpop.permute.xlu0 %4941
      %4943 = vrot.lane.b32.xlu0 %v4363, 127
      %v4944 = vpop.permute.xlu0 %4943
      %4945 = vrot.lane.b32.xlu0 %v4364, 127
      %v4946 = vpop.permute.xlu0 %4945
      %4947 = vrot.lane.b32.xlu0 %v4365, 127
      %v4948 = vpop.permute.xlu0 %4947
      %4949 = vrot.lane.b32.xlu0 %v4366, 127
      %v4950 = vpop.permute.xlu0 %4949
      %4951 = vrot.lane.b32.xlu0 %v4367, 127
      %v4952 = vpop.permute.xlu0 %4951
      %v4953 = vsel %vm1265, %v4938, %v4940
      %v4954 = vsel %vm1265, %v4942, %v4944
      %v4955 = vsel %vm1265, %v4946, %v4948
      %v4956 = vsel %vm1265, %v4950, %v4952
      %v4969 = vsel %vm1265, %v4940, %v4938
      %v4970 = vsel %vm1265, %v4944, %v4942
      %v4971 = vsel %vm1265, %v4948, %v4946
      %v4972 = vsel %vm1265, %v4952, %v4950
      %v4973 = vmul.f32 %v4953, %v1277
      %v4974 = vmul.f32 %v4969, %v1281
      %v4975 = vmul.f32 %v4954, %v1277
      %v4976 = vmul.f32 %v4970, %v1281
      %v4977 = vmul.f32 %v4955, %v1277
      %v4978 = vmul.f32 %v4971, %v1281
      %v4979 = vmul.f32 %v4956, %v1277
      %v4980 = vmul.f32 %v4972, %v1281
      %s4981 = scalar_lea.vmem %s16, 20
      %v4982 = vld [vmem:[%s4981] sm:$0xf]
      %v4984 = vsel %vm1895, %v4982, 0
      %4986 = vmatprep.subr.mxu0 %v4974
      %4987 = vmatpush1.msra.mxu0 %v4973
      %4988 = vmatprep.subr.mxu0 %v4976
      %4989 = vmatpush1.msra.mxu0 %v4975
      %4990 = vmatprep.subr.mxu0 %v4978
      %4991 = vmatpush1.msra.mxu0 %v4977
      %4992 = vmatprep.subr.mxu0 %v4980
      %4993 = vmatpush1.msra.mxu0 %v4979
      %4994 = vmatprep.subr.mxu0 0.0
      %4995 = vmatpush1.msra.mxu0 0.0
      %4996 = vmatprep.subr.mxu0 0.0
      %4997 = vmatpush1.msra.mxu0 0.0
      %4998 = vmatprep.subr.mxu0 0.0
      %4999 = vmatpush1.msra.mxu0 0.0
      %5000 = vmatprep.subr.mxu0 0.0
      %5001 = vmatpush1.msra.mxu0 0.0
      %5002 = vmatprep.subr.mxu0 0.0
      %5003 = vmatpush1.msra.mxu0 0.0
      %5004 = vmatprep.subr.mxu0 0.0
      %5005 = vmatpush1.msra.mxu0 0.0
      %5006 = vmatprep.subr.mxu0 0.0
      %5007 = vmatpush1.msra.mxu0 0.0
      %5008 = vmatprep.subr.mxu0 0.0
      %5009 = vmatpush1.msra.mxu0 0.0
      %5010 = vmatprep.subr.mxu0 0.0
      %5011 = vmatpush1.msra.mxu0 0.0
      %5012 = vmatprep.subr.mxu0 0.0
      %5013 = vmatpush1.msra.mxu0 0.0
      %5014 = vmatprep.subr.mxu0 0.0
      %5015 = vmatpush1.msra.mxu0 0.0
      %5016 = vmatprep.subr.mxu0 0.0
      %5017 = vmatpush1.msra.mxu0 0.0
      %5018 = vmatprep.subr.mxu0 0.0
      %5019 = vmatpush1.msra.mxu0 0.0
      %5020 = vmatprep.subr.mxu0 0.0
      %5021 = vmatpush1.msra.mxu0 0.0
      %5022 = vmatprep.subr.mxu0 0.0
      %5023 = vmatpush1.msra.mxu0 0.0
      %5024 = vmatprep.subr.mxu0 0.0
      %5025 = vmatpush1.msra.mxu0 0.0
      %5026 = vmatprep.subr.mxu0 0.0
      %5027 = vmatpush1.msra.mxu0 0.0
      %5028 = vmatprep.subr.mxu0 0.0
      %5029 = vmatpush1.msra.mxu0 0.0
      %5030 = vmatprep.subr.mxu0 0.0
      %5031 = vmatpush1.msra.mxu0 0.0
      %5032 = vmatprep.subr.mxu0 0.0
      %5033 = vmatpush1.msra.mxu0 0.0
      %5034 = vmatprep.subr.mxu0 0.0
      %5035 = vmatpush1.msra.mxu0 0.0
      %5036 = vmatprep.subr.mxu0 0.0
      %5037 = vmatpush1.msra.mxu0 0.0
      %5038 = vmatprep.subr.mxu0 0.0
      %5039 = vmatpush1.msra.mxu0 0.0
      %5040 = vmatprep.subr.mxu0 0.0
      %5041 = vmatpush1.msra.mxu0 0.0
      %5042 = vmatprep.subr.mxu0 0.0
      %5043 = vmatpush1.msra.mxu0 0.0
      %5044 = vmatprep.subr.mxu0 0.0
      %5045 = vmatpush1.msra.mxu0 0.0
      %5046 = vmatprep.subr.mxu0 0.0
      %5047 = vmatpush1.msra.mxu0 0.0
      %5048 = vmatprep.subr.mxu0 0.0
      %5049 = vmatpush1.msra.mxu0 0.0
      %5050 = vmatprep.mubr.f32.mxu0 0.0
      %5051 = vmatmul.mubr.f32.gmra.mrb[0].mxu0 %v4984
      %v5052 = vpop.f32.mrb[0].mxu0
      %v5053 = vadd.f32 0.0, %v5052
      %v5054 = vpop.f32.mrb[0].mxu0
      %v5055 = vadd.f32 0.0, %v5054
      %5056 = vdwg.mxu0
      %v5057 = vadd.f32 %v4935, %v5053
      %v5058 = vadd.f32 %v4936, %v5055
      %5059 = vrot.lane.b32.xlu0 %v4360, 113
      %v5060 = vpop.permute.xlu0 %5059
      %5061 = vrot.lane.b32.xlu0 %v4361, 113
      %v5062 = vpop.permute.xlu0 %5061
      %5063 = vrot.lane.b32.xlu0 %v4362, 113
      %v5064 = vpop.permute.xlu0 %5063
      %5065 = vrot.lane.b32.xlu0 %v4363, 113
      %v5066 = vpop.permute.xlu0 %5065
      %5067 = vrot.lane.b32.xlu0 %v4364, 113
      %v5068 = vpop.permute.xlu0 %5067
      %5069 = vrot.lane.b32.xlu0 %v4365, 113
      %v5070 = vpop.permute.xlu0 %5069
      %5071 = vrot.lane.b32.xlu0 %v4366, 113
      %v5072 = vpop.permute.xlu0 %5071
      %5073 = vrot.lane.b32.xlu0 %v4367, 113
      %v5074 = vpop.permute.xlu0 %5073
      %v5075 = vsel %vm1410, %v5060, %v5062
      %v5076 = vsel %vm1410, %v5064, %v5066
      %v5077 = vsel %vm1410, %v5068, %v5070
      %v5078 = vsel %vm1410, %v5072, %v5074
      %v5091 = vsel %vm1410, %v5062, %v5060
      %v5092 = vsel %vm1410, %v5066, %v5064
      %v5093 = vsel %vm1410, %v5070, %v5068
      %v5094 = vsel %vm1410, %v5074, %v5072
      %v5095 = vmul.f32 %v5075, %v1422
      %v5096 = vmul.f32 %v5091, %v1426
      %v5097 = vmul.f32 %v5076, %v1422
      %v5098 = vmul.f32 %v5092, %v1426
      %v5099 = vmul.f32 %v5077, %v1422
      %v5100 = vmul.f32 %v5093, %v1426
      %v5101 = vmul.f32 %v5078, %v1422
      %v5102 = vmul.f32 %v5094, %v1426
      %s5103 = scalar_lea.vmem %s16, 24
      %v5104 = vld [vmem:[%s5103] sm:$0xf]
      %v5106 = vsel %vm1895, %v5104, 0
      %5108 = vmatprep.subr.mxu0 %v5096
      %5109 = vmatpush1.msra.mxu0 %v5095
      %5110 = vmatprep.subr.mxu0 %v5098
      %5111 = vmatpush1.msra.mxu0 %v5097
      %5112 = vmatprep.subr.mxu0 %v5100
      %5113 = vmatpush1.msra.mxu0 %v5099
      %5114 = vmatprep.subr.mxu0 %v5102
      %5115 = vmatpush1.msra.mxu0 %v5101
      %5116 = vmatprep.subr.mxu0 0.0
      %5117 = vmatpush1.msra.mxu0 0.0
      %5118 = vmatprep.subr.mxu0 0.0
      %5119 = vmatpush1.msra.mxu0 0.0
      %5120 = vmatprep.subr.mxu0 0.0
      %5121 = vmatpush1.msra.mxu0 0.0
      %5122 = vmatprep.subr.mxu0 0.0
      %5123 = vmatpush1.msra.mxu0 0.0
      %5124 = vmatprep.subr.mxu0 0.0
      %5125 = vmatpush1.msra.mxu0 0.0
      %5126 = vmatprep.subr.mxu0 0.0
      %5127 = vmatpush1.msra.mxu0 0.0
      %5128 = vmatprep.subr.mxu0 0.0
      %5129 = vmatpush1.msra.mxu0 0.0
      %5130 = vmatprep.subr.mxu0 0.0
      %5131 = vmatpush1.msra.mxu0 0.0
      %5132 = vmatprep.subr.mxu0 0.0
      %5133 = vmatpush1.msra.mxu0 0.0
      %5134 = vmatprep.subr.mxu0 0.0
      %5135 = vmatpush1.msra.mxu0 0.0
      %5136 = vmatprep.subr.mxu0 0.0
      %5137 = vmatpush1.msra.mxu0 0.0
      %5138 = vmatprep.subr.mxu0 0.0
      %5139 = vmatpush1.msra.mxu0 0.0
      %5140 = vmatprep.subr.mxu0 0.0
      %5141 = vmatpush1.msra.mxu0 0.0
      %5142 = vmatprep.subr.mxu0 0.0
      %5143 = vmatpush1.msra.mxu0 0.0
      %5144 = vmatprep.subr.mxu0 0.0
      %5145 = vmatpush1.msra.mxu0 0.0
      %5146 = vmatprep.subr.mxu0 0.0
      %5147 = vmatpush1.msra.mxu0 0.0
      %5148 = vmatprep.subr.mxu0 0.0
      %5149 = vmatpush1.msra.mxu0 0.0
      %5150 = vmatprep.subr.mxu0 0.0
      %5151 = vmatpush1.msra.mxu0 0.0
      %5152 = vmatprep.subr.mxu0 0.0
      %5153 = vmatpush1.msra.mxu0 0.0
      %5154 = vmatprep.subr.mxu0 0.0
      %5155 = vmatpush1.msra.mxu0 0.0
      %5156 = vmatprep.subr.mxu0 0.0
      %5157 = vmatpush1.msra.mxu0 0.0
      %5158 = vmatprep.subr.mxu0 0.0
      %5159 = vmatpush1.msra.mxu0 0.0
      %5160 = vmatprep.subr.mxu0 0.0
      %5161 = vmatpush1.msra.mxu0 0.0
      %5162 = vmatprep.subr.mxu0 0.0
      %5163 = vmatpush1.msra.mxu0 0.0
      %5164 = vmatprep.subr.mxu0 0.0
      %5165 = vmatpush1.msra.mxu0 0.0
      %5166 = vmatprep.subr.mxu0 0.0
      %5167 = vmatpush1.msra.mxu0 0.0
      %5168 = vmatprep.subr.mxu0 0.0
      %5169 = vmatpush1.msra.mxu0 0.0
      %5170 = vmatprep.subr.mxu0 0.0
      %5171 = vmatpush1.msra.mxu0 0.0
      %5172 = vmatprep.mubr.f32.mxu0 0.0
      %5173 = vmatmul.mubr.f32.gmra.mrb[0].mxu0 %v5106
      %v5174 = vpop.f32.mrb[0].mxu0
      %v5175 = vadd.f32 0.0, %v5174
      %v5176 = vpop.f32.mrb[0].mxu0
      %v5177 = vadd.f32 0.0, %v5176
      %5178 = vdwg.mxu0
      %v5179 = vadd.f32 %v5057, %v5175
      %v5180 = vadd.f32 %v5058, %v5177
      %5181 = vrot.lane.b32.xlu0 %v4360, 112
      %v5182 = vpop.permute.xlu0 %5181
      %5183 = vrot.lane.b32.xlu0 %v4361, 112
      %v5184 = vpop.permute.xlu0 %5183
      %5185 = vrot.lane.b32.xlu0 %v4362, 112
      %v5186 = vpop.permute.xlu0 %5185
      %5187 = vrot.lane.b32.xlu0 %v4363, 112
      %v5188 = vpop.permute.xlu0 %5187
      %5189 = vrot.lane.b32.xlu0 %v4364, 112
      %v5190 = vpop.permute.xlu0 %5189
      %5191 = vrot.lane.b32.xlu0 %v4365, 112
      %v5192 = vpop.permute.xlu0 %5191
      %5193 = vrot.lane.b32.xlu0 %v4366, 112
      %v5194 = vpop.permute.xlu0 %5193
      %5195 = vrot.lane.b32.xlu0 %v4367, 112
      %v5196 = vpop.permute.xlu0 %5195
      %v5197 = vsel %vm1555, %v5182, %v5184
      %v5198 = vsel %vm1555, %v5186, %v5188
      %v5199 = vsel %vm1555, %v5190, %v5192
      %v5200 = vsel %vm1555, %v5194, %v5196
      %v5213 = vsel %vm1555, %v5184, %v5182
      %v5214 = vsel %vm1555, %v5188, %v5186
      %v5215 = vsel %vm1555, %v5192, %v5190
      %v5216 = vsel %vm1555, %v5196, %v5194
      %v5217 = vmul.f32 %v5197, %v1567
      %v5218 = vmul.f32 %v5213, %v1571
      %v5219 = vmul.f32 %v5198, %v1567
      %v5220 = vmul.f32 %v5214, %v1571
      %v5221 = vmul.f32 %v5199, %v1567
      %v5222 = vmul.f32 %v5215, %v1571
      %v5223 = vmul.f32 %v5200, %v1567
      %v5224 = vmul.f32 %v5216, %v1571
      %s5225 = scalar_lea.vmem %s16, 28
      %v5226 = vld [vmem:[%s5225] sm:$0xf]
      %v5228 = vsel %vm1895, %v5226, 0
      %5230 = vmatprep.subr.mxu0 %v5218
      %5231 = vmatpush1.msra.mxu0 %v5217
      %5232 = vmatprep.subr.mxu0 %v5220
      %5233 = vmatpush1.msra.mxu0 %v5219
      %5234 = vmatprep.subr.mxu0 %v5222
      %5235 = vmatpush1.msra.mxu0 %v5221
      %5236 = vmatprep.subr.mxu0 %v5224
      %5237 = vmatpush1.msra.mxu0 %v5223
      %5238 = vmatprep.subr.mxu0 0.0
      %5239 = vmatpush1.msra.mxu0 0.0
      %5240 = vmatprep.subr.mxu0 0.0
      %5241 = vmatpush1.msra.mxu0 0.0
      %5242 = vmatprep.subr.mxu0 0.0
      %5243 = vmatpush1.msra.mxu0 0.0
      %5244 = vmatprep.subr.mxu0 0.0
      %5245 = vmatpush1.msra.mxu0 0.0
      %5246 = vmatprep.subr.mxu0 0.0
      %5247 = vmatpush1.msra.mxu0 0.0
      %5248 = vmatprep.subr.mxu0 0.0
      %5249 = vmatpush1.msra.mxu0 0.0
      %5250 = vmatprep.subr.mxu0 0.0
      %5251 = vmatpush1.msra.mxu0 0.0
      %5252 = vmatprep.subr.mxu0 0.0
      %5253 = vmatpush1.msra.mxu0 0.0
      %5254 = vmatprep.subr.mxu0 0.0
      %5255 = vmatpush1.msra.mxu0 0.0
      %5256 = vmatprep.subr.mxu0 0.0
      %5257 = vmatpush1.msra.mxu0 0.0
      %5258 = vmatprep.subr.mxu0 0.0
      %5259 = vmatpush1.msra.mxu0 0.0
      %5260 = vmatprep.subr.mxu0 0.0
      %5261 = vmatpush1.msra.mxu0 0.0
      %5262 = vmatprep.subr.mxu0 0.0
      %5263 = vmatpush1.msra.mxu0 0.0
      %5264 = vmatprep.subr.mxu0 0.0
      %5265 = vmatpush1.msra.mxu0 0.0
      %5266 = vmatprep.subr.mxu0 0.0
      %5267 = vmatpush1.msra.mxu0 0.0
      %5268 = vmatprep.subr.mxu0 0.0
      %5269 = vmatpush1.msra.mxu0 0.0
      %5270 = vmatprep.subr.mxu0 0.0
      %5271 = vmatpush1.msra.mxu0 0.0
      %5272 = vmatprep.subr.mxu0 0.0
      %5273 = vmatpush1.msra.mxu0 0.0
      %5274 = vmatprep.subr.mxu0 0.0
      %5275 = vmatpush1.msra.mxu0 0.0
      %5276 = vmatprep.subr.mxu0 0.0
      %5277 = vmatpush1.msra.mxu0 0.0
      %5278 = vmatprep.subr.mxu0 0.0
      %5279 = vmatpush1.msra.mxu0 0.0
      %5280 = vmatprep.subr.mxu0 0.0
      %5281 = vmatpush1.msra.mxu0 0.0
      %5282 = vmatprep.subr.mxu0 0.0
      %5283 = vmatpush1.msra.mxu0 0.0
      %5284 = vmatprep.subr.mxu0 0.0
      %5285 = vmatpush1.msra.mxu0 0.0
      %5286 = vmatprep.subr.mxu0 0.0
      %5287 = vmatpush1.msra.mxu0 0.0
      %5288 = vmatprep.subr.mxu0 0.0
      %5289 = vmatpush1.msra.mxu0 0.0
      %5290 = vmatprep.subr.mxu0 0.0
      %5291 = vmatpush1.msra.mxu0 0.0
      %5292 = vmatprep.subr.mxu0 0.0
      %5293 = vmatpush1.msra.mxu0 0.0
      %5294 = vmatprep.mubr.f32.mxu0 0.0
      %5295 = vmatmul.mubr.f32.gmra.mrb[0].mxu0 %v5228
      %v5296 = vpop.f32.mrb[0].mxu0
      %v5297 = vadd.f32 0.0, %v5296
      %v5298 = vpop.f32.mrb[0].mxu0
      %v5299 = vadd.f32 0.0, %v5298
      %5300 = vdwg.mxu0
      %v5301 = vadd.f32 %v5179, %v5297
      %v5302 = vadd.f32 %v5180, %v5299
      %5303 = vrot.lane.b32.xlu0 %v4360, 111
      %v5304 = vpop.permute.xlu0 %5303
      %5305 = vrot.lane.b32.xlu0 %v4361, 111
      %v5306 = vpop.permute.xlu0 %5305
      %5307 = vrot.lane.b32.xlu0 %v4362, 111
      %v5308 = vpop.permute.xlu0 %5307
      %5309 = vrot.lane.b32.xlu0 %v4363, 111
      %v5310 = vpop.permute.xlu0 %5309
      %5311 = vrot.lane.b32.xlu0 %v4364, 111
      %v5312 = vpop.permute.xlu0 %5311
      %5313 = vrot.lane.b32.xlu0 %v4365, 111
      %v5314 = vpop.permute.xlu0 %5313
      %5315 = vrot.lane.b32.xlu0 %v4366, 111
      %v5316 = vpop.permute.xlu0 %5315
      %5317 = vrot.lane.b32.xlu0 %v4367, 111
      %v5318 = vpop.permute.xlu0 %5317
      %v5319 = vsel %vm1700, %v5304, %v5306
      %v5320 = vsel %vm1700, %v5308, %v5310
      %v5321 = vsel %vm1700, %v5312, %v5314
      %v5322 = vsel %vm1700, %v5316, %v5318
      %v5335 = vsel %vm1700, %v5306, %v5304
      %v5336 = vsel %vm1700, %v5310, %v5308
      %v5337 = vsel %vm1700, %v5314, %v5312
      %v5338 = vsel %vm1700, %v5318, %v5316
      %v5339 = vmul.f32 %v5319, %v1712
      %v5340 = vmul.f32 %v5335, %v1716
      %v5341 = vmul.f32 %v5320, %v1712
      %v5342 = vmul.f32 %v5336, %v1716
      %v5343 = vmul.f32 %v5321, %v1712
      %v5344 = vmul.f32 %v5337, %v1716
      %v5345 = vmul.f32 %v5322, %v1712
      %v5346 = vmul.f32 %v5338, %v1716
      %s5347 = scalar_lea.vmem %s16, 32
      %v5348 = vld [vmem:[%s5347] sm:$0xf]
      %v5350 = vsel %vm1895, %v5348, 0
      %5352 = vmatprep.subr.mxu0 %v5340
      %5353 = vmatpush1.msra.mxu0 %v5339
      %5354 = vmatprep.subr.mxu0 %v5342
      %5355 = vmatpush1.msra.mxu0 %v5341
      %5356 = vmatprep.subr.mxu0 %v5344
      %5357 = vmatpush1.msra.mxu0 %v5343
      %5358 = vmatprep.subr.mxu0 %v5346
      %5359 = vmatpush1.msra.mxu0 %v5345
      %5360 = vmatprep.subr.mxu0 0.0
      %5361 = vmatpush1.msra.mxu0 0.0
      %5362 = vmatprep.subr.mxu0 0.0
      %5363 = vmatpush1.msra.mxu0 0.0
      %5364 = vmatprep.subr.mxu0 0.0
      %5365 = vmatpush1.msra.mxu0 0.0
      %5366 = vmatprep.subr.mxu0 0.0
      %5367 = vmatpush1.msra.mxu0 0.0
      %5368 = vmatprep.subr.mxu0 0.0
      %5369 = vmatpush1.msra.mxu0 0.0
      %5370 = vmatprep.subr.mxu0 0.0
      %5371 = vmatpush1.msra.mxu0 0.0
      %5372 = vmatprep.subr.mxu0 0.0
      %5373 = vmatpush1.msra.mxu0 0.0
      %5374 = vmatprep.subr.mxu0 0.0
      %5375 = vmatpush1.msra.mxu0 0.0
      %5376 = vmatprep.subr.mxu0 0.0
      %5377 = vmatpush1.msra.mxu0 0.0
      %5378 = vmatprep.subr.mxu0 0.0
      %5379 = vmatpush1.msra.mxu0 0.0
      %5380 = vmatprep.subr.mxu0 0.0
      %5381 = vmatpush1.msra.mxu0 0.0
      %5382 = vmatprep.subr.mxu0 0.0
      %5383 = vmatpush1.msra.mxu0 0.0
      %5384 = vmatprep.subr.mxu0 0.0
      %5385 = vmatpush1.msra.mxu0 0.0
      %5386 = vmatprep.subr.mxu0 0.0
      %5387 = vmatpush1.msra.mxu0 0.0
      %5388 = vmatprep.subr.mxu0 0.0
      %5389 = vmatpush1.msra.mxu0 0.0
      %5390 = vmatprep.subr.mxu0 0.0
      %5391 = vmatpush1.msra.mxu0 0.0
      %5392 = vmatprep.subr.mxu0 0.0
      %5393 = vmatpush1.msra.mxu0 0.0
      %5394 = vmatprep.subr.mxu0 0.0
      %5395 = vmatpush1.msra.mxu0 0.0
      %5396 = vmatprep.subr.mxu0 0.0
      %5397 = vmatpush1.msra.mxu0 0.0
      %5398 = vmatprep.subr.mxu0 0.0
      %5399 = vmatpush1.msra.mxu0 0.0
      %5400 = vmatprep.subr.mxu0 0.0
      %5401 = vmatpush1.msra.mxu0 0.0
      %5402 = vmatprep.subr.mxu0 0.0
      %5403 = vmatpush1.msra.mxu0 0.0
      %5404 = vmatprep.subr.mxu0 0.0
      %5405 = vmatpush1.msra.mxu0 0.0
      %5406 = vmatprep.subr.mxu0 0.0
      %5407 = vmatpush1.msra.mxu0 0.0
      %5408 = vmatprep.subr.mxu0 0.0
      %5409 = vmatpush1.msra.mxu0 0.0
      %5410 = vmatprep.subr.mxu0 0.0
      %5411 = vmatpush1.msra.mxu0 0.0
      %5412 = vmatprep.subr.mxu0 0.0
      %5413 = vmatpush1.msra.mxu0 0.0
      %5414 = vmatprep.subr.mxu0 0.0
      %5415 = vmatpush1.msra.mxu0 0.0
      %5416 = vmatprep.mubr.f32.mxu0 0.0
      %5417 = vmatmul.mubr.f32.gmra.mrb[0].mxu0 %v5350
      %v5418 = vpop.f32.mrb[0].mxu0
      %v5419 = vadd.f32 0.0, %v5418
      %v5420 = vpop.f32.mrb[0].mxu0
      %v5421 = vadd.f32 0.0, %v5420
      %5422 = vdwg.mxu0
      %v5423 = vadd.f32 %v5301, %v5419
      %v5424 = vadd.f32 %v5302, %v5421
      %v5425 = vld [vmem:[%s17] sm:$0xf]
      %5427 = vset.pattern.permute.xlu0 0
      %5428 = vperm.xlu0 %5427, %v5425
      %v5429 = vpop.permute.xlu0 %5428
      %v5431 = vadd.f32 %v5423, %v5429
      %v5432 = vadd.f32 %v5424, %v5429
      %v5435 = vcombine.low %v5431, %v5432
      %5437 = vst [vmem:[%s575] sm:$0xff] %v5435
      %p5438 = scmp.lt.s32.totalorder %s29, 1
      %s5439 = scalar_select %p5438, %s29, 1
      %s5440 = smul.addr %s5439, 2
      %s5441 = smul.addr %s5440, 4
      %s5442 = scalar_lea.vmem %s18, %s5441
      // Predicated region
      $region93: #{resnet_apply.1} parent=91 // pred_check
        %p5443 = pneg %p430
      $region94: #{resnet_apply.1} parent=91 // pred_check_branch
        %5445 = sbr.rel (%p5443) target = $region96
      $region95: #{resnet_apply.1} parent=91 // pred_region
        _
      $region96: #{resnet_apply.1} parent=91 // pred_fallthru
        _
    $region92: #{resnet_apply.1} parent=5 // pred_fallthru
      _
    %p5446 = scmp.le.s32.totalorder 2, %s24
    // Predicated region
    $region97: #{resnet_apply.1} parent=5 // pred_check
      %p5447 = pneg %p5446
    $region98: #{resnet_apply.1} parent=5 // pred_check_branch
      %5449 = sbr.rel (%p5447) target = $region100
    $region99: #{resnet_apply.1} parent=5 // pred_region
      %s5450 = ssub.s32 %s24, 2
      // Predicated region
      $region101: #{resnet_apply.1} parent=99 // pred_check
        %p5451 = pneg %p436
      $region102: #{resnet_apply.1} parent=99 // pred_check_branch
        %5453 = sbr.rel (%p5451) target = $region104
      $region103: #{resnet_apply.1} parent=99 // pred_region
        %p5454 = scmp.lt.s32.totalorder %s30, 1
        %s5455 = scalar_select %p5454, %s30, 1
        %s5456 = smul.addr %s5455, 2
        %s5457 = smul.addr %s5456, 4
        %s5458 = scalar_lea.vmem %s18, %s5457
      $region104: #{resnet_apply.1} parent=99 // pred_fallthru
        _
    $region100: #{resnet_apply.1} parent=5 // pred_fallthru
      _
  $region6: #{resnet_apply.1} parent=0 // loop_footer
    %s28 = sadd.s32 1, %s24
  $region7: #{resnet_apply.1} parent=0 // loop_footer_branch
    %23 = sbr.rel target = $region3
  $region8: #{resnet_apply.1} parent=0 // loop_exit
    _

</llo_original>
